<compile_context>
chip_gen: v7x
topology: tpu7x:2x2x1
jax: 0.10.0
libtpu: 0.0.40
codegen_flags: <defaults>
</compile_context>

<pallas_src>
import functools

import jax
import jax.numpy as jnp
from jax.experimental import pallas as pl
from jax.experimental.pallas import tpu as pltpu

DT = jnp.bfloat16      # matmul operand / activation storage dtype
TM_MAX = 512           # max row tile


# ------------------------------ tiling helpers ------------------------------

def _round_up(x, m):
    return (x + m - 1) // m * m


def _row_tiling(m):
    """Pick a row tile (multiple of 8/16) and padded row count for m rows,
    preferring >= 2 grid steps so both v7x TensorCores get work."""
    mp8 = _round_up(m, 8)
    if mp8 < 32:
        tm = mp8                              # single tile == full rows
    elif mp8 <= TM_MAX:
        tm = _round_up(mp8 // 2, 16)          # 2 row tiles
    else:
        tm = TM_MAX
    return tm, _round_up(m, tm)


# ----------------------------- Pallas kernels -------------------------------

def _mm_kernel(*refs, has_bias, act, want_stats):
    """Matmul with optional bias / tanh epilogue and fused per-column
    sum / sum-of-squares statistics (one (8, N) partial-stats block per row
    tile: row 0 = sum, row 1 = sum of squares)."""
    idx = 0
    x_ref = refs[idx]; idx += 1
    w_ref = refs[idx]; idx += 1
    b_ref = None
    if has_bias:
        b_ref = refs[idx]; idx += 1
    o_ref = refs[idx]; idx += 1
    st_ref = refs[idx] if want_stats else None

    acc = jnp.dot(x_ref[...], w_ref[...], preferred_element_type=jnp.float32)
    if has_bias:
        acc = acc + b_ref[...]
    if want_stats:
        s = jnp.sum(acc, axis=0, keepdims=True)
        sq = jnp.sum(acc * acc, axis=0, keepdims=True)
        pad = jnp.zeros((6, s.shape[1]), jnp.float32)
        st_ref[...] = jnp.concatenate([s, sq, pad], axis=0)
    if act == "tanh":
        acc = jnp.tanh(acc)
    o_ref[...] = acc.astype(o_ref.dtype)


def _bn_relu_kernel(x_ref, scale_ref, shift_ref, o_ref):
    y = x_ref[...] * scale_ref[...] + shift_ref[...]
    o_ref[...] = jnp.maximum(y, 0.0).astype(o_ref.dtype)


# ----------------------------- Pallas wrappers ------------------------------

def _pallas_matmul(x, w, *, bias=None, act=None, want_stats=False):
    """(M, K) @ (K, N)  [+ bias] [+ tanh] with optional fused column stats.
    Returns (padded output (Mp, N) f32, M, stats-or-None)."""
    m, k = x.shape
    n = w.shape[1]
    tm, mp = _row_tiling(m)
    if mp != m:
        x = jnp.pad(x, ((0, mp - m), (0, 0)))
    grid = mp // tm

    in_specs = [pl.BlockSpec((tm, k), lambda i: (i, 0)),
                pl.BlockSpec((k, n), lambda i: (0, 0))]
    args = [x, w]
    if bias is not None:
        in_specs.append(pl.BlockSpec((1, n), lambda i: (0, 0)))
        args.append(bias.reshape(1, n).astype(jnp.float32))

    if want_stats:
        out_shape = (jax.ShapeDtypeStruct((mp, n), jnp.float32),
                     jax.ShapeDtypeStruct((grid * 8, n), jnp.float32))
        out_specs = (pl.BlockSpec((tm, n), lambda i: (i, 0)),
                     pl.BlockSpec((8, n), lambda i: (i, 0)))
    else:
        out_shape = jax.ShapeDtypeStruct((mp, n), jnp.float32)
        out_specs = pl.BlockSpec((tm, n), lambda i: (i, 0))

    kernel = functools.partial(_mm_kernel, has_bias=bias is not None,
                               act=act, want_stats=want_stats)
    outs = pl.pallas_call(
        kernel,
        out_shape=out_shape,
        grid_spec=pltpu.PrefetchScalarGridSpec(
            num_scalar_prefetch=0,
            grid=(grid,),
            in_specs=in_specs,
            out_specs=out_specs),
        compiler_params=pltpu.CompilerParams(
            dimension_semantics=("parallel",),
            vmem_limit_bytes=64 << 20),
    )(*args)

    if want_stats:
        y_pad, st = outs
        st = st.reshape(grid, 8, n)
        return y_pad, m, (st[:, 0, :].sum(axis=0), st[:, 1, :].sum(axis=0))
    return outs, m, None


def _pallas_bn_relu(y_pad, scale_cols, shift_cols, m):
    """Apply per-column scale/shift + ReLU to the (padded) matmul output and
    downcast to bf16.  Row tiling matches the producing matmul."""
    mp, n = y_pad.shape
    tm, mp2 = _row_tiling(m)
    assert mp2 == mp
    out = pl.pallas_call(
        _bn_relu_kernel,
        out_shape=jax.ShapeDtypeStruct((mp, n), DT),
        grid_spec=pltpu.PrefetchScalarGridSpec(
            num_scalar_prefetch=0,
            grid=(mp // tm,),
            in_specs=[pl.BlockSpec((tm, n), lambda i: (i, 0)),
                      pl.BlockSpec((1, n), lambda i: (0, 0)),
                      pl.BlockSpec((1, n), lambda i: (0, 0))],
            out_specs=pl.BlockSpec((tm, n), lambda i: (i, 0)),
        ),
        compiler_params=pltpu.CompilerParams(
            dimension_semantics=("parallel",),
            vmem_limit_bytes=64 << 20),
    )(y_pad, scale_cols.reshape(1, n).astype(jnp.float32),
      shift_cols.reshape(1, n).astype(jnp.float32))
    return out[:m]


def _linear_bn_relu(x, w, gamma, beta, group, eps=1e-5):
    """relu(batchnorm(x @ w)) where the matmul output columns are `group`
    packed copies (sub-pixel / kernel positions) of the same channel set.
    Train-mode BatchNorm (batch statistics, biased variance)."""
    c = gamma.shape[0]
    y_pad, m, (s_cols, sq_cols) = _pallas_matmul(x, w, want_stats=True)
    cnt = m * group
    s = s_cols.reshape(group, c).sum(axis=0)
    sq = sq_cols.reshape(group, c).sum(axis=0)
    mean = s / cnt
    var = jnp.maximum(sq / cnt - mean * mean, 0.0)   # clamp f32 cancellation
    inv = gamma / jnp.sqrt(var + eps)
    scale = jnp.tile(inv, group)
    shift = jnp.tile(beta - mean * inv, group)
    return _pallas_bn_relu(y_pad, scale, shift, m)   # (m, group*c) bf16


def _linear_bias_tanh(x, w, b):
    y_pad, m, _ = _pallas_matmul(x, w, bias=b, act="tanh")
    return y_pad[:m]


# ----------------------- ConvTranspose lowering glue ------------------------

def _im2col3(a):
    """3x3 windows of the 1-padded channels-last input.
    a: (N, H, W, C) -> (N*H*W, 9*C), tap order (r, s) with channels fastest."""
    n, h, w, c = a.shape
    ap = jnp.pad(a, ((0, 0), (1, 1), (1, 1), (0, 0)))
    taps = [ap[:, r:r + h, s:s + w, :] for r in range(3) for s in range(3)]
    return jnp.concatenate(taps, axis=-1).reshape(n * h * w, 9 * c)


def _make_subpixel_weight(w):
    """ConvTranspose2d(k=4, s=2, p=1) weight (Cin, Cout, 4, 4) -> matmul weight
    (9*Cin, 4*Cout) acting on 3x3 windows of the 1-padded input; output columns
    ordered (row-parity a, col-parity b, cout), cout fastest."""
    cin, cout = w.shape[0], w.shape[1]
    wm = jnp.zeros((3, 3, cin, 2, 2, cout), w.dtype)
    taps = [(0, 0, 3), (1, 0, 1), (1, 1, 2), (2, 1, 0)]   # (offset, parity, k)
    for r, a, kh in taps:
        for s, b, kw in taps:
            wm = wm.at[r, s, :, a, b, :].set(w[:, :, kh, kw])
    return wm.reshape(9 * cin, 4 * cout)


def _depth_to_space(y, n, h, w, c):
    """(N*H*W, 4*C) packed (a, b, c) columns -> (N, 2H, 2W, C)."""
    y = y.reshape(n, h, w, 2, 2, c).transpose(0, 1, 3, 2, 4, 5)
    return y.reshape(n, 2 * h, 2 * w, c)


# --------------------------------- Model ------------------------------------

def dcgan_generator_forward(params, z):
    """Equivalent of DCGANGenerator_cifar10.forward (train-mode BatchNorm,
    bias-free hidden ConvTranspose layers, biased final 3x3 + Tanh)."""
    z_dim = params["w1"].shape[0]
    z2 = z.reshape(-1, z_dim).astype(DT)                 # input.view(-1, z, 1, 1)
    n = z2.shape[0]

    # layer 1: ConvTranspose(z_dim, ngf*8, 4, s=1, p=0)  ==  z @ W(z_dim, 16*C)
    c1 = params["w1"].shape[1]
    w1m = params["w1"].transpose(0, 2, 3, 1).reshape(z_dim, 16 * c1).astype(DT)
    y = _linear_bn_relu(z2, w1m, params["g1"], params["b1"], group=16)
    a = y.reshape(n, 4, 4, c1)                           # channels-last, bf16

    # layers 2-4: ConvTranspose(Cin, Cout, 4, s=2, p=1) via sub-pixel matmul
    for wk, gk, bk in (("w2", "g2", "b2"), ("w3", "g3", "b3"), ("w4", "g4", "b4")):
        w = params[wk]
        cout = w.shape[1]
        nb, h, wd, _ = a.shape
        patches = _im2col3(a)                            # (N*H*W, 9*Cin) bf16
        wm = _make_subpixel_weight(w).astype(DT)         # (9*Cin, 4*Cout)
        y = _linear_bn_relu(patches, wm, params[gk], params[bk], group=4)
        a = _depth_to_space(y, nb, h, wd, cout)          # (N, 2H, 2W, Cout)

    # layer 5: ConvTranspose(ngf, out_nc, 3, s=1, p=1, bias=True) + Tanh
    w5 = params["w5"]
    cin, cout = w5.shape[0], w5.shape[1]
    nb, h, wd, _ = a.shape
    patches = _im2col3(a)
    w5m = jnp.flip(w5, axis=(2, 3)).transpose(2, 3, 0, 1).reshape(9 * cin, cout)
    y = _linear_bias_tanh(patches, w5m.astype(DT), params["b5"])
    return y.reshape(nb, h, wd, cout).transpose(0, 3, 1, 2)   # NCHW at boundary


# --------------------------------- Driver ------------------------------------

if __name__ == "__main__":
    # small but structurally faithful config
    z_dim, ngf, output_nc, batch = 16, 8, 3, 2

    key = jax.random.PRNGKey(0)
    ks = jax.random.split(key, 16)

    def nrm(k, shape, s=0.05):
        return s * jax.random.normal(k, shape, jnp.float32)

    params = {
        # ConvTranspose2d weights: (Cin, Cout, K, K); bias only on the last layer
        "w1": nrm(ks[0], (z_dim, ngf * 8, 4, 4)),
        "g1": 1.0 + nrm(ks[1], (ngf * 8,), 0.1), "b1": nrm(ks[2], (ngf * 8,), 0.1),
        "w2": nrm(ks[3], (ngf * 8, ngf * 4, 4, 4)),
        "g2": 1.0 + nrm(ks[4], (ngf * 4,), 0.1), "b2": nrm(ks[5], (ngf * 4,), 0.1),
        "w3": nrm(ks[6], (ngf * 4, ngf * 2, 4, 4)),
        "g3": 1.0 + nrm(ks[7], (ngf * 2,), 0.1), "b3": nrm(ks[8], (ngf * 2,), 0.1),
        "w4": nrm(ks[9], (ngf * 2, ngf, 4, 4)),
        "g4": 1.0 + nrm(ks[10], (ngf,), 0.1), "b4": nrm(ks[11], (ngf,), 0.1),
        "w5": nrm(ks[12], (ngf, output_nc, 3, 3)),
        "b5": nrm(ks[13], (output_nc,), 0.1),
    }

    z = jax.random.normal(ks[14], (batch, z_dim), jnp.float32)

    out = jax.jit(dcgan_generator_forward)(params, z)
    out = jax.block_until_ready(out)

    assert out.shape == (batch, output_nc, 32, 32), out.shape
    assert bool(jnp.all(jnp.isfinite(out)))
    assert bool(jnp.all(jnp.abs(out) <= 1.0 + 1e-6))  # tanh range
    print("KERNEL_OK")
</pallas_src>

<mosaic_0001>
module attributes {stable_mosaic.version = 11 : i64} {
  func.func @_mm_kernel(%arg0: i32, %arg1: memref<8x16xbf16, #tpu.memory_space<vmem>>, %arg2: memref<16x1024xbf16, #tpu.memory_space<vmem>>, %arg3: memref<8x1024xf32, #tpu.memory_space<vmem>>, %arg4: memref<8x1024xf32, #tpu.memory_space<vmem>>) attributes {dimension_semantics = [#tpu.dimension_semantics<parallel>], iteration_bounds = array<i64: 1>, scalar_prefetch = 0 : i64, scratch_operands = 0 : i64, tpu.core_type = #tpu.core_type<tc>, window_params = [{transform_indices = @transform_0, window_bounds = array<i64: 8, 16>}, {pipeline_mode = #tpu.pipeline_mode<synchronous>, transform_indices = @transform_1, window_bounds = array<i64: 16, 1024>}, {transform_indices = @transform_2, window_bounds = array<i64: 8, 1024>}, {transform_indices = @transform_3, window_bounds = array<i64: 8, 1024>}]} {
    %c0 = arith.constant 0 : index
    %c0_0 = arith.constant 0 : index
    %0 = vector.load %arg1[%c0, %c0_0] : memref<8x16xbf16, #tpu.memory_space<vmem>>, vector<8x16xbf16>
    %c0_1 = arith.constant 0 : index
    %c0_2 = arith.constant 0 : index
    %1 = vector.load %arg2[%c0_1, %c0_2] : memref<16x1024xbf16, #tpu.memory_space<vmem>>, vector<16x1024xbf16>
    %cst = arith.constant dense<0.000000e+00> : vector<8x1024xf32>
    %2 = tpu.matmul %0, %1, %cst {dimension_numbers = #tpu.dot_dimension_numbers<[1], [0], [0], [1], [0, 0, 1, 1], [], []>} : vector<8x16xbf16>, vector<16x1024xbf16>, vector<8x1024xf32> -> vector<8x1024xf32>
    %cst_3 = arith.constant dense<0.000000e+00> : vector<1024xf32>
    %3 = vector.multi_reduction <add>, %2, %cst_3 [0] : vector<8x1024xf32> to vector<1024xf32>
    %4 = vector.shape_cast %3 : vector<1024xf32> to vector<1x1024xf32>
    %5 = arith.mulf %2, %2 : vector<8x1024xf32>
    %cst_4 = arith.constant dense<0.000000e+00> : vector<1024xf32>
    %6 = vector.multi_reduction <add>, %5, %cst_4 [0] : vector<8x1024xf32> to vector<1024xf32>
    %7 = vector.shape_cast %6 : vector<1024xf32> to vector<1x1024xf32>
    %cst_5 = arith.constant 0.000000e+00 : f32
    %8 = vector.broadcast %cst_5 : f32 to vector<6x1024xf32>
    %9 = tpu.concatenate %4, %7, %8 in 0 : vector<1x1024xf32>, vector<1x1024xf32>, vector<6x1024xf32> -> vector<8x1024xf32>
    %c0_6 = arith.constant 0 : index
    %c0_7 = arith.constant 0 : index
    %10 = vector.load %arg4[%c0_6, %c0_7] : memref<8x1024xf32, #tpu.memory_space<vmem>>, vector<8x1024xf32>
    tpu.vector_store %arg4[%c0_6, %c0_7], %9 {strides = array<i32>} : memref<8x1024xf32, #tpu.memory_space<vmem>>, vector<8x1024xf32>,
    %c0_8 = arith.constant 0 : index
    %c0_9 = arith.constant 0 : index
    %11 = vector.load %arg3[%c0_8, %c0_9] : memref<8x1024xf32, #tpu.memory_space<vmem>>, vector<8x1024xf32>
    tpu.vector_store %arg3[%c0_8, %c0_9], %2 {strides = array<i32>} : memref<8x1024xf32, #tpu.memory_space<vmem>>, vector<8x1024xf32>,
    return
  }
  func.func @transform_0(%arg0: i32) -> (i32, i32) {
    %c0_i32 = arith.constant 0 : i32
    %c0_i32_0 = arith.constant 0 : i32
    return %arg0, %c0_i32 : i32, i32
  }
  func.func @transform_1(%arg0: i32) -> (i32, i32) {
    %c0_i32 = arith.constant 0 : i32
    %c0_i32_0 = arith.constant 0 : i32
    %c0_i32_1 = arith.constant 0 : i32
    return %c0_i32, %c0_i32_0 : i32, i32
  }
  func.func @transform_2(%arg0: i32) -> (i32, i32) {
    %c0_i32 = arith.constant 0 : i32
    %c0_i32_0 = arith.constant 0 : i32
    return %arg0, %c0_i32 : i32, i32
  }
  func.func @transform_3(%arg0: i32) -> (i32, i32) {
    %c0_i32 = arith.constant 0 : i32
    %c0_i32_0 = arith.constant 0 : i32
    return %arg0, %c0_i32 : i32, i32
  }
}

module attributes {stable_mosaic.version = 11 : i64} {
  func.func @_bn_relu_kernel(%arg0: i32, %arg1: memref<8x1024xf32, #tpu.memory_space<vmem>>, %arg2: memref<1x1024xf32, #tpu.memory_space<vmem>>, %arg3: memref<1x1024xf32, #tpu.memory_space<vmem>>, %arg4: memref<8x1024xbf16, #tpu.memory_space<vmem>>) attributes {dimension_semantics = [#tpu.dimension_semantics<parallel>], iteration_bounds = array<i64: 1>, scalar_prefetch = 0 : i64, scratch_operands = 0 : i64, tpu.core_type = #tpu.core_type<tc>, window_params = [{transform_indices = @transform_0, window_bounds = array<i64: 8, 1024>}, {pipeline_mode = #tpu.pipeline_mode<synchronous>, transform_indices = @transform_1, window_bounds = array<i64: 1, 1024>}, {pipeline_mode = #tpu.pipeline_mode<synchronous>, transform_indices = @transform_2, window_bounds = array<i64: 1, 1024>}, {transform_indices = @transform_3, window_bounds = array<i64: 8, 1024>}]} {
    %c0 = arith.constant 0 : index
    %c0_0 = arith.constant 0 : index
    %0 = vector.load %arg1[%c0, %c0_0] : memref<8x1024xf32, #tpu.memory_space<vmem>>, vector<8x1024xf32>
    %c0_1 = arith.constant 0 : index
    %c0_2 = arith.constant 0 : index
    %1 = vector.load %arg2[%c0_1, %c0_2] : memref<1x1024xf32, #tpu.memory_space<vmem>>, vector<1x1024xf32>
    %2 = vector.broadcast %1 : vector<1x1024xf32> to vector<8x1024xf32>
    %3 = arith.mulf %0, %2 : vector<8x1024xf32>
    %c0_3 = arith.constant 0 : index
    %c0_4 = arith.constant 0 : index
    %4 = vector.load %arg3[%c0_3, %c0_4] : memref<1x1024xf32, #tpu.memory_space<vmem>>, vector<1x1024xf32>
    %5 = vector.broadcast %4 : vector<1x1024xf32> to vector<8x1024xf32>
    %6 = arith.addf %3, %5 : vector<8x1024xf32>
    %cst = arith.constant 0.000000e+00 : f32
    %7 = vector.broadcast %cst : f32 to vector<8x1024xf32>
    %8 = arith.maximumf %6, %7 : vector<8x1024xf32>
    %9 = arith.truncf %8 : vector<8x1024xf32> to vector<8x1024xbf16>
    %c0_5 = arith.constant 0 : index
    %c0_6 = arith.constant 0 : index
    %10 = vector.load %arg4[%c0_5, %c0_6] : memref<8x1024xbf16, #tpu.memory_space<vmem>>, vector<8x1024xbf16>
    tpu.vector_store %arg4[%c0_5, %c0_6], %9 {strides = array<i32>} : memref<8x1024xbf16, #tpu.memory_space<vmem>>, vector<8x1024xbf16>,
    return
  }
  func.func @transform_0(%arg0: i32) -> (i32, i32) {
    %c0_i32 = arith.constant 0 : i32
    %c0_i32_0 = arith.constant 0 : i32
    return %arg0, %c0_i32 : i32, i32
  }
  func.func @transform_1(%arg0: i32) -> (i32, i32) {
    %c0_i32 = arith.constant 0 : i32
    %c0_i32_0 = arith.constant 0 : i32
    %c0_i32_1 = arith.constant 0 : i32
    return %c0_i32, %c0_i32_0 : i32, i32
  }
  func.func @transform_2(%arg0: i32) -> (i32, i32) {
    %c0_i32 = arith.constant 0 : i32
    %c0_i32_0 = arith.constant 0 : i32
    %c0_i32_1 = arith.constant 0 : i32
    return %c0_i32, %c0_i32_0 : i32, i32
  }
  func.func @transform_3(%arg0: i32) -> (i32, i32) {
    %c0_i32 = arith.constant 0 : i32
    %c0_i32_0 = arith.constant 0 : i32
    return %arg0, %c0_i32 : i32, i32
  }
}

module attributes {stable_mosaic.version = 11 : i64} {
  func.func @_mm_kernel(%arg0: i32, %arg1: memref<16x576xbf16, #tpu.memory_space<vmem>>, %arg2: memref<576x128xbf16, #tpu.memory_space<vmem>>, %arg3: memref<16x128xf32, #tpu.memory_space<vmem>>, %arg4: memref<8x128xf32, #tpu.memory_space<vmem>>) attributes {dimension_semantics = [#tpu.dimension_semantics<parallel>], iteration_bounds = array<i64: 2>, scalar_prefetch = 0 : i64, scratch_operands = 0 : i64, tpu.core_type = #tpu.core_type<tc>, window_params = [{transform_indices = @transform_0, window_bounds = array<i64: 16, 576>}, {pipeline_mode = #tpu.pipeline_mode<synchronous>, transform_indices = @transform_1, window_bounds = array<i64: 576, 128>}, {transform_indices = @transform_2, window_bounds = array<i64: 16, 128>}, {transform_indices = @transform_3, window_bounds = array<i64: 8, 128>}]} {
    %c0 = arith.constant 0 : index
    %c0_0 = arith.constant 0 : index
    %0 = vector.load %arg1[%c0, %c0_0] : memref<16x576xbf16, #tpu.memory_space<vmem>>, vector<16x576xbf16>
    %c0_1 = arith.constant 0 : index
    %c0_2 = arith.constant 0 : index
    %1 = vector.load %arg2[%c0_1, %c0_2] : memref<576x128xbf16, #tpu.memory_space<vmem>>, vector<576x128xbf16>
    %cst = arith.constant dense<0.000000e+00> : vector<16x128xf32>
    %2 = tpu.matmul %0, %1, %cst {dimension_numbers = #tpu.dot_dimension_numbers<[1], [0], [0], [1], [0, 0, 1, 1], [], []>} : vector<16x576xbf16>, vector<576x128xbf16>, vector<16x128xf32> -> vector<16x128xf32>
    %cst_3 = arith.constant dense<0.000000e+00> : vector<128xf32>
    %3 = vector.multi_reduction <add>, %2, %cst_3 [0] : vector<16x128xf32> to vector<128xf32>
    %4 = vector.shape_cast %3 : vector<128xf32> to vector<1x128xf32>
    %5 = arith.mulf %2, %2 : vector<16x128xf32>
    %cst_4 = arith.constant dense<0.000000e+00> : vector<128xf32>
    %6 = vector.multi_reduction <add>, %5, %cst_4 [0] : vector<16x128xf32> to vector<128xf32>
    %7 = vector.shape_cast %6 : vector<128xf32> to vector<1x128xf32>
    %cst_5 = arith.constant 0.000000e+00 : f32
    %8 = vector.broadcast %cst_5 : f32 to vector<6x128xf32>
    %9 = tpu.concatenate %4, %7, %8 in 0 : vector<1x128xf32>, vector<1x128xf32>, vector<6x128xf32> -> vector<8x128xf32>
    %c0_6 = arith.constant 0 : index
    %c0_7 = arith.constant 0 : index
    %10 = vector.load %arg4[%c0_6, %c0_7] : memref<8x128xf32, #tpu.memory_space<vmem>>, vector<8x128xf32>
    tpu.vector_store %arg4[%c0_6, %c0_7], %9 {strides = array<i32>} : memref<8x128xf32, #tpu.memory_space<vmem>>, vector<8x128xf32>,
    %c0_8 = arith.constant 0 : index
    %c0_9 = arith.constant 0 : index
    %11 = vector.load %arg3[%c0_8, %c0_9] : memref<16x128xf32, #tpu.memory_space<vmem>>, vector<16x128xf32>
    tpu.vector_store %arg3[%c0_8, %c0_9], %2 {strides = array<i32>} : memref<16x128xf32, #tpu.memory_space<vmem>>, vector<16x128xf32>,
    return
  }
  func.func @transform_0(%arg0: i32) -> (i32, i32) {
    %c0_i32 = arith.constant 0 : i32
    %c0_i32_0 = arith.constant 0 : i32
    return %arg0, %c0_i32 : i32, i32
  }
  func.func @transform_1(%arg0: i32) -> (i32, i32) {
    %c0_i32 = arith.constant 0 : i32
    %c0_i32_0 = arith.constant 0 : i32
    %c0_i32_1 = arith.constant 0 : i32
    return %c0_i32, %c0_i32_0 : i32, i32
  }
  func.func @transform_2(%arg0: i32) -> (i32, i32) {
    %c0_i32 = arith.constant 0 : i32
    %c0_i32_0 = arith.constant 0 : i32
    return %arg0, %c0_i32 : i32, i32
  }
  func.func @transform_3(%arg0: i32) -> (i32, i32) {
    %c0_i32 = arith.constant 0 : i32
    %c0_i32_0 = arith.constant 0 : i32
    return %arg0, %c0_i32 : i32, i32
  }
}

module attributes {stable_mosaic.version = 11 : i64} {
  func.func @_bn_relu_kernel(%arg0: i32, %arg1: memref<16x128xf32, #tpu.memory_space<vmem>>, %arg2: memref<1x128xf32, #tpu.memory_space<vmem>>, %arg3: memref<1x128xf32, #tpu.memory_space<vmem>>, %arg4: memref<16x128xbf16, #tpu.memory_space<vmem>>) attributes {dimension_semantics = [#tpu.dimension_semantics<parallel>], iteration_bounds = array<i64: 2>, scalar_prefetch = 0 : i64, scratch_operands = 0 : i64, tpu.core_type = #tpu.core_type<tc>, window_params = [{transform_indices = @transform_0, window_bounds = array<i64: 16, 128>}, {pipeline_mode = #tpu.pipeline_mode<synchronous>, transform_indices = @transform_1, window_bounds = array<i64: 1, 128>}, {pipeline_mode = #tpu.pipeline_mode<synchronous>, transform_indices = @transform_2, window_bounds = array<i64: 1, 128>}, {transform_indices = @transform_3, window_bounds = array<i64: 16, 128>}]} {
    %c0 = arith.constant 0 : index
    %c0_0 = arith.constant 0 : index
    %0 = vector.load %arg1[%c0, %c0_0] : memref<16x128xf32, #tpu.memory_space<vmem>>, vector<16x128xf32>
    %c0_1 = arith.constant 0 : index
    %c0_2 = arith.constant 0 : index
    %1 = vector.load %arg2[%c0_1, %c0_2] : memref<1x128xf32, #tpu.memory_space<vmem>>, vector<1x128xf32>
    %2 = vector.broadcast %1 : vector<1x128xf32> to vector<16x128xf32>
    %3 = arith.mulf %0, %2 : vector<16x128xf32>
    %c0_3 = arith.constant 0 : index
    %c0_4 = arith.constant 0 : index
    %4 = vector.load %arg3[%c0_3, %c0_4] : memref<1x128xf32, #tpu.memory_space<vmem>>, vector<1x128xf32>
    %5 = vector.broadcast %4 : vector<1x128xf32> to vector<16x128xf32>
    %6 = arith.addf %3, %5 : vector<16x128xf32>
    %cst = arith.constant 0.000000e+00 : f32
    %7 = vector.broadcast %cst : f32 to vector<16x128xf32>
    %8 = arith.maximumf %6, %7 : vector<16x128xf32>
    %9 = arith.truncf %8 : vector<16x128xf32> to vector<16x128xbf16>
    %c0_5 = arith.constant 0 : index
    %c0_6 = arith.constant 0 : index
    %10 = vector.load %arg4[%c0_5, %c0_6] : memref<16x128xbf16, #tpu.memory_space<vmem>>, vector<16x128xbf16>
    tpu.vector_store %arg4[%c0_5, %c0_6], %9 {strides = array<i32>} : memref<16x128xbf16, #tpu.memory_space<vmem>>, vector<16x128xbf16>,
    return
  }
  func.func @transform_0(%arg0: i32) -> (i32, i32) {
    %c0_i32 = arith.constant 0 : i32
    %c0_i32_0 = arith.constant 0 : i32
    return %arg0, %c0_i32 : i32, i32
  }
  func.func @transform_1(%arg0: i32) -> (i32, i32) {
    %c0_i32 = arith.constant 0 : i32
    %c0_i32_0 = arith.constant 0 : i32
    %c0_i32_1 = arith.constant 0 : i32
    return %c0_i32, %c0_i32_0 : i32, i32
  }
  func.func @transform_2(%arg0: i32) -> (i32, i32) {
    %c0_i32 = arith.constant 0 : i32
    %c0_i32_0 = arith.constant 0 : i32
    %c0_i32_1 = arith.constant 0 : i32
    return %c0_i32, %c0_i32_0 : i32, i32
  }
  func.func @transform_3(%arg0: i32) -> (i32, i32) {
    %c0_i32 = arith.constant 0 : i32
    %c0_i32_0 = arith.constant 0 : i32
    return %arg0, %c0_i32 : i32, i32
  }
}

module attributes {stable_mosaic.version = 11 : i64} {
  func.func @_mm_kernel(%arg0: i32, %arg1: memref<64x288xbf16, #tpu.memory_space<vmem>>, %arg2: memref<288x64xbf16, #tpu.memory_space<vmem>>, %arg3: memref<64x64xf32, #tpu.memory_space<vmem>>, %arg4: memref<8x64xf32, #tpu.memory_space<vmem>>) attributes {dimension_semantics = [#tpu.dimension_semantics<parallel>], iteration_bounds = array<i64: 2>, scalar_prefetch = 0 : i64, scratch_operands = 0 : i64, tpu.core_type = #tpu.core_type<tc>, window_params = [{transform_indices = @transform_0, window_bounds = array<i64: 64, 288>}, {pipeline_mode = #tpu.pipeline_mode<synchronous>, transform_indices = @transform_1, window_bounds = array<i64: 288, 64>}, {transform_indices = @transform_2, window_bounds = array<i64: 64, 64>}, {transform_indices = @transform_3, window_bounds = array<i64: 8, 64>}]} {
    %c0 = arith.constant 0 : index
    %c0_0 = arith.constant 0 : index
    %0 = vector.load %arg1[%c0, %c0_0] : memref<64x288xbf16, #tpu.memory_space<vmem>>, vector<64x288xbf16>
    %c0_1 = arith.constant 0 : index
    %c0_2 = arith.constant 0 : index
    %1 = vector.load %arg2[%c0_1, %c0_2] : memref<288x64xbf16, #tpu.memory_space<vmem>>, vector<288x64xbf16>
    %cst = arith.constant dense<0.000000e+00> : vector<64x64xf32>
    %2 = tpu.matmul %0, %1, %cst {dimension_numbers = #tpu.dot_dimension_numbers<[1], [0], [0], [1], [0, 0, 1, 1], [], []>} : vector<64x288xbf16>, vector<288x64xbf16>, vector<64x64xf32> -> vector<64x64xf32>
    %cst_3 = arith.constant dense<0.000000e+00> : vector<64xf32>
    %3 = vector.multi_reduction <add>, %2, %cst_3 [0] : vector<64x64xf32> to vector<64xf32>
    %4 = vector.shape_cast %3 : vector<64xf32> to vector<1x64xf32>
    %5 = arith.mulf %2, %2 : vector<64x64xf32>
    %cst_4 = arith.constant dense<0.000000e+00> : vector<64xf32>
    %6 = vector.multi_reduction <add>, %5, %cst_4 [0] : vector<64x64xf32> to vector<64xf32>
    %7 = vector.shape_cast %6 : vector<64xf32> to vector<1x64xf32>
    %cst_5 = arith.constant 0.000000e+00 : f32
    %8 = vector.broadcast %cst_5 : f32 to vector<6x64xf32>
    %9 = tpu.concatenate %4, %7, %8 in 0 : vector<1x64xf32>, vector<1x64xf32>, vector<6x64xf32> -> vector<8x64xf32>
    %c0_6 = arith.constant 0 : index
    %c0_7 = arith.constant 0 : index
    %10 = vector.load %arg4[%c0_6, %c0_7] : memref<8x64xf32, #tpu.memory_space<vmem>>, vector<8x64xf32>
    tpu.vector_store %arg4[%c0_6, %c0_7], %9 {strides = array<i32>} : memref<8x64xf32, #tpu.memory_space<vmem>>, vector<8x64xf32>,
    %c0_8 = arith.constant 0 : index
    %c0_9 = arith.constant 0 : index
    %11 = vector.load %arg3[%c0_8, %c0_9] : memref<64x64xf32, #tpu.memory_space<vmem>>, vector<64x64xf32>
    tpu.vector_store %arg3[%c0_8, %c0_9], %2 {strides = array<i32>} : memref<64x64xf32, #tpu.memory_space<vmem>>, vector<64x64xf32>,
    return
  }
  func.func @transform_0(%arg0: i32) -> (i32, i32) {
    %c0_i32 = arith.constant 0 : i32
    %c0_i32_0 = arith.constant 0 : i32
    return %arg0, %c0_i32 : i32, i32
  }
  func.func @transform_1(%arg0: i32) -> (i32, i32) {
    %c0_i32 = arith.constant 0 : i32
    %c0_i32_0 = arith.constant 0 : i32
    %c0_i32_1 = arith.constant 0 : i32
    return %c0_i32, %c0_i32_0 : i32, i32
  }
  func.func @transform_2(%arg0: i32) -> (i32, i32) {
    %c0_i32 = arith.constant 0 : i32
    %c0_i32_0 = arith.constant 0 : i32
    return %arg0, %c0_i32 : i32, i32
  }
  func.func @transform_3(%arg0: i32) -> (i32, i32) {
    %c0_i32 = arith.constant 0 : i32
    %c0_i32_0 = arith.constant 0 : i32
    return %arg0, %c0_i32 : i32, i32
  }
}

module attributes {stable_mosaic.version = 11 : i64} {
  func.func @_bn_relu_kernel(%arg0: i32, %arg1: memref<64x64xf32, #tpu.memory_space<vmem>>, %arg2: memref<1x64xf32, #tpu.memory_space<vmem>>, %arg3: memref<1x64xf32, #tpu.memory_space<vmem>>, %arg4: memref<64x64xbf16, #tpu.memory_space<vmem>>) attributes {dimension_semantics = [#tpu.dimension_semantics<parallel>], iteration_bounds = array<i64: 2>, scalar_prefetch = 0 : i64, scratch_operands = 0 : i64, tpu.core_type = #tpu.core_type<tc>, window_params = [{transform_indices = @transform_0, window_bounds = array<i64: 64, 64>}, {pipeline_mode = #tpu.pipeline_mode<synchronous>, transform_indices = @transform_1, window_bounds = array<i64: 1, 64>}, {pipeline_mode = #tpu.pipeline_mode<synchronous>, transform_indices = @transform_2, window_bounds = array<i64: 1, 64>}, {transform_indices = @transform_3, window_bounds = array<i64: 64, 64>}]} {
    %c0 = arith.constant 0 : index
    %c0_0 = arith.constant 0 : index
    %0 = vector.load %arg1[%c0, %c0_0] : memref<64x64xf32, #tpu.memory_space<vmem>>, vector<64x64xf32>
    %c0_1 = arith.constant 0 : index
    %c0_2 = arith.constant 0 : index
    %1 = vector.load %arg2[%c0_1, %c0_2] : memref<1x64xf32, #tpu.memory_space<vmem>>, vector<1x64xf32>
    %2 = vector.broadcast %1 : vector<1x64xf32> to vector<64x64xf32>
    %3 = arith.mulf %0, %2 : vector<64x64xf32>
    %c0_3 = arith.constant 0 : index
    %c0_4 = arith.constant 0 : index
    %4 = vector.load %arg3[%c0_3, %c0_4] : memref<1x64xf32, #tpu.memory_space<vmem>>, vector<1x64xf32>
    %5 = vector.broadcast %4 : vector<1x64xf32> to vector<64x64xf32>
    %6 = arith.addf %3, %5 : vector<64x64xf32>
    %cst = arith.constant 0.000000e+00 : f32
    %7 = vector.broadcast %cst : f32 to vector<64x64xf32>
    %8 = arith.maximumf %6, %7 : vector<64x64xf32>
    %9 = arith.truncf %8 : vector<64x64xf32> to vector<64x64xbf16>
    %c0_5 = arith.constant 0 : index
    %c0_6 = arith.constant 0 : index
    %10 = vector.load %arg4[%c0_5, %c0_6] : memref<64x64xbf16, #tpu.memory_space<vmem>>, vector<64x64xbf16>
    tpu.vector_store %arg4[%c0_5, %c0_6], %9 {strides = array<i32>} : memref<64x64xbf16, #tpu.memory_space<vmem>>, vector<64x64xbf16>,
    return
  }
  func.func @transform_0(%arg0: i32) -> (i32, i32) {
    %c0_i32 = arith.constant 0 : i32
    %c0_i32_0 = arith.constant 0 : i32
    return %arg0, %c0_i32 : i32, i32
  }
  func.func @transform_1(%arg0: i32) -> (i32, i32) {
    %c0_i32 = arith.constant 0 : i32
    %c0_i32_0 = arith.constant 0 : i32
    %c0_i32_1 = arith.constant 0 : i32
    return %c0_i32, %c0_i32_0 : i32, i32
  }
  func.func @transform_2(%arg0: i32) -> (i32, i32) {
    %c0_i32 = arith.constant 0 : i32
    %c0_i32_0 = arith.constant 0 : i32
    %c0_i32_1 = arith.constant 0 : i32
    return %c0_i32, %c0_i32_0 : i32, i32
  }
  func.func @transform_3(%arg0: i32) -> (i32, i32) {
    %c0_i32 = arith.constant 0 : i32
    %c0_i32_0 = arith.constant 0 : i32
    return %arg0, %c0_i32 : i32, i32
  }
}

module attributes {stable_mosaic.version = 11 : i64} {
  func.func @_mm_kernel(%arg0: i32, %arg1: memref<256x144xbf16, #tpu.memory_space<vmem>>, %arg2: memref<144x32xbf16, #tpu.memory_space<vmem>>, %arg3: memref<256x32xf32, #tpu.memory_space<vmem>>, %arg4: memref<8x32xf32, #tpu.memory_space<vmem>>) attributes {dimension_semantics = [#tpu.dimension_semantics<parallel>], iteration_bounds = array<i64: 2>, scalar_prefetch = 0 : i64, scratch_operands = 0 : i64, tpu.core_type = #tpu.core_type<tc>, window_params = [{transform_indices = @transform_0, window_bounds = array<i64: 256, 144>}, {pipeline_mode = #tpu.pipeline_mode<synchronous>, transform_indices = @transform_1, window_bounds = array<i64: 144, 32>}, {transform_indices = @transform_2, window_bounds = array<i64: 256, 32>}, {transform_indices = @transform_3, window_bounds = array<i64: 8, 32>}]} {
    %c0 = arith.constant 0 : index
    %c0_0 = arith.constant 0 : index
    %0 = vector.load %arg1[%c0, %c0_0] : memref<256x144xbf16, #tpu.memory_space<vmem>>, vector<256x144xbf16>
    %c0_1 = arith.constant 0 : index
    %c0_2 = arith.constant 0 : index
    %1 = vector.load %arg2[%c0_1, %c0_2] : memref<144x32xbf16, #tpu.memory_space<vmem>>, vector<144x32xbf16>
    %cst = arith.constant dense<0.000000e+00> : vector<256x32xf32>
    %2 = tpu.matmul %0, %1, %cst {dimension_numbers = #tpu.dot_dimension_numbers<[1], [0], [0], [1], [0, 0, 1, 1], [], []>} : vector<256x144xbf16>, vector<144x32xbf16>, vector<256x32xf32> -> vector<256x32xf32>
    %cst_3 = arith.constant dense<0.000000e+00> : vector<32xf32>
    %3 = vector.multi_reduction <add>, %2, %cst_3 [0] : vector<256x32xf32> to vector<32xf32>
    %4 = vector.shape_cast %3 : vector<32xf32> to vector<1x32xf32>
    %5 = arith.mulf %2, %2 : vector<256x32xf32>
    %cst_4 = arith.constant dense<0.000000e+00> : vector<32xf32>
    %6 = vector.multi_reduction <add>, %5, %cst_4 [0] : vector<256x32xf32> to vector<32xf32>
    %7 = vector.shape_cast %6 : vector<32xf32> to vector<1x32xf32>
    %cst_5 = arith.constant 0.000000e+00 : f32
    %8 = vector.broadcast %cst_5 : f32 to vector<6x32xf32>
    %9 = tpu.concatenate %4, %7, %8 in 0 : vector<1x32xf32>, vector<1x32xf32>, vector<6x32xf32> -> vector<8x32xf32>
    %c0_6 = arith.constant 0 : index
    %c0_7 = arith.constant 0 : index
    %10 = vector.load %arg4[%c0_6, %c0_7] : memref<8x32xf32, #tpu.memory_space<vmem>>, vector<8x32xf32>
    tpu.vector_store %arg4[%c0_6, %c0_7], %9 {strides = array<i32>} : memref<8x32xf32, #tpu.memory_space<vmem>>, vector<8x32xf32>,
    %c0_8 = arith.constant 0 : index
    %c0_9 = arith.constant 0 : index
    %11 = vector.load %arg3[%c0_8, %c0_9] : memref<256x32xf32, #tpu.memory_space<vmem>>, vector<256x32xf32>
    tpu.vector_store %arg3[%c0_8, %c0_9], %2 {strides = array<i32>} : memref<256x32xf32, #tpu.memory_space<vmem>>, vector<256x32xf32>,
    return
  }
  func.func @transform_0(%arg0: i32) -> (i32, i32) {
    %c0_i32 = arith.constant 0 : i32
    %c0_i32_0 = arith.constant 0 : i32
    return %arg0, %c0_i32 : i32, i32
  }
  func.func @transform_1(%arg0: i32) -> (i32, i32) {
    %c0_i32 = arith.constant 0 : i32
    %c0_i32_0 = arith.constant 0 : i32
    %c0_i32_1 = arith.constant 0 : i32
    return %c0_i32, %c0_i32_0 : i32, i32
  }
  func.func @transform_2(%arg0: i32) -> (i32, i32) {
    %c0_i32 = arith.constant 0 : i32
    %c0_i32_0 = arith.constant 0 : i32
    return %arg0, %c0_i32 : i32, i32
  }
  func.func @transform_3(%arg0: i32) -> (i32, i32) {
    %c0_i32 = arith.constant 0 : i32
    %c0_i32_0 = arith.constant 0 : i32
    return %arg0, %c0_i32 : i32, i32
  }
}

module attributes {stable_mosaic.version = 11 : i64} {
  func.func @_bn_relu_kernel(%arg0: i32, %arg1: memref<256x32xf32, #tpu.memory_space<vmem>>, %arg2: memref<1x32xf32, #tpu.memory_space<vmem>>, %arg3: memref<1x32xf32, #tpu.memory_space<vmem>>, %arg4: memref<256x32xbf16, #tpu.memory_space<vmem>>) attributes {dimension_semantics = [#tpu.dimension_semantics<parallel>], iteration_bounds = array<i64: 2>, scalar_prefetch = 0 : i64, scratch_operands = 0 : i64, tpu.core_type = #tpu.core_type<tc>, window_params = [{transform_indices = @transform_0, window_bounds = array<i64: 256, 32>}, {pipeline_mode = #tpu.pipeline_mode<synchronous>, transform_indices = @transform_1, window_bounds = array<i64: 1, 32>}, {pipeline_mode = #tpu.pipeline_mode<synchronous>, transform_indices = @transform_2, window_bounds = array<i64: 1, 32>}, {transform_indices = @transform_3, window_bounds = array<i64: 256, 32>}]} {
    %c0 = arith.constant 0 : index
    %c0_0 = arith.constant 0 : index
    %0 = vector.load %arg1[%c0, %c0_0] : memref<256x32xf32, #tpu.memory_space<vmem>>, vector<256x32xf32>
    %c0_1 = arith.constant 0 : index
    %c0_2 = arith.constant 0 : index
    %1 = vector.load %arg2[%c0_1, %c0_2] : memref<1x32xf32, #tpu.memory_space<vmem>>, vector<1x32xf32>
    %2 = vector.broadcast %1 : vector<1x32xf32> to vector<256x32xf32>
    %3 = arith.mulf %0, %2 : vector<256x32xf32>
    %c0_3 = arith.constant 0 : index
    %c0_4 = arith.constant 0 : index
    %4 = vector.load %arg3[%c0_3, %c0_4] : memref<1x32xf32, #tpu.memory_space<vmem>>, vector<1x32xf32>
    %5 = vector.broadcast %4 : vector<1x32xf32> to vector<256x32xf32>
    %6 = arith.addf %3, %5 : vector<256x32xf32>
    %cst = arith.constant 0.000000e+00 : f32
    %7 = vector.broadcast %cst : f32 to vector<256x32xf32>
    %8 = arith.maximumf %6, %7 : vector<256x32xf32>
    %9 = arith.truncf %8 : vector<256x32xf32> to vector<256x32xbf16>
    %c0_5 = arith.constant 0 : index
    %c0_6 = arith.constant 0 : index
    %10 = vector.load %arg4[%c0_5, %c0_6] : memref<256x32xbf16, #tpu.memory_space<vmem>>, vector<256x32xbf16>
    tpu.vector_store %arg4[%c0_5, %c0_6], %9 {strides = array<i32>} : memref<256x32xbf16, #tpu.memory_space<vmem>>, vector<256x32xbf16>,
    return
  }
  func.func @transform_0(%arg0: i32) -> (i32, i32) {
    %c0_i32 = arith.constant 0 : i32
    %c0_i32_0 = arith.constant 0 : i32
    return %arg0, %c0_i32 : i32, i32
  }
  func.func @transform_1(%arg0: i32) -> (i32, i32) {
    %c0_i32 = arith.constant 0 : i32
    %c0_i32_0 = arith.constant 0 : i32
    %c0_i32_1 = arith.constant 0 : i32
    return %c0_i32, %c0_i32_0 : i32, i32
  }
  func.func @transform_2(%arg0: i32) -> (i32, i32) {
    %c0_i32 = arith.constant 0 : i32
    %c0_i32_0 = arith.constant 0 : i32
    %c0_i32_1 = arith.constant 0 : i32
    return %c0_i32, %c0_i32_0 : i32, i32
  }
  func.func @transform_3(%arg0: i32) -> (i32, i32) {
    %c0_i32 = arith.constant 0 : i32
    %c0_i32_0 = arith.constant 0 : i32
    return %arg0, %c0_i32 : i32, i32
  }
}

module attributes {stable_mosaic.version = 11 : i64} {
  func.func @_mm_kernel(%arg0: i32, %arg1: memref<512x72xbf16, #tpu.memory_space<vmem>>, %arg2: memref<72x3xbf16, #tpu.memory_space<vmem>>, %arg3: memref<1x3xf32, #tpu.memory_space<vmem>>, %arg4: memref<512x3xf32, #tpu.memory_space<vmem>>) attributes {dimension_semantics = [#tpu.dimension_semantics<parallel>], iteration_bounds = array<i64: 4>, scalar_prefetch = 0 : i64, scratch_operands = 0 : i64, tpu.core_type = #tpu.core_type<tc>, window_params = [{transform_indices = @transform_0, window_bounds = array<i64: 512, 72>}, {pipeline_mode = #tpu.pipeline_mode<synchronous>, transform_indices = @transform_1, window_bounds = array<i64: 72, 3>}, {pipeline_mode = #tpu.pipeline_mode<synchronous>, transform_indices = @transform_2, window_bounds = array<i64: 1, 3>}, {transform_indices = @transform_3, window_bounds = array<i64: 512, 3>}]} {
    %c0 = arith.constant 0 : index
    %c0_0 = arith.constant 0 : index
    %0 = vector.load %arg1[%c0, %c0_0] : memref<512x72xbf16, #tpu.memory_space<vmem>>, vector<512x72xbf16>
    %c0_1 = arith.constant 0 : index
    %c0_2 = arith.constant 0 : index
    %1 = vector.load %arg2[%c0_1, %c0_2] : memref<72x3xbf16, #tpu.memory_space<vmem>>, vector<72x3xbf16>
    %cst = arith.constant dense<0.000000e+00> : vector<512x3xf32>
    %2 = tpu.matmul %0, %1, %cst {dimension_numbers = #tpu.dot_dimension_numbers<[1], [0], [0], [1], [0, 0, 1, 1], [], []>} : vector<512x72xbf16>, vector<72x3xbf16>, vector<512x3xf32> -> vector<512x3xf32>
    %c0_3 = arith.constant 0 : index
    %c0_4 = arith.constant 0 : index
    %3 = vector.load %arg3[%c0_3, %c0_4] : memref<1x3xf32, #tpu.memory_space<vmem>>, vector<1x3xf32>
    %4 = vector.broadcast %3 : vector<1x3xf32> to vector<512x3xf32>
    %5 = arith.addf %2, %4 : vector<512x3xf32>
    %6 = math.tanh %5 : vector<512x3xf32>
    %c0_5 = arith.constant 0 : index
    %c0_6 = arith.constant 0 : index
    %7 = vector.load %arg4[%c0_5, %c0_6] : memref<512x3xf32, #tpu.memory_space<vmem>>, vector<512x3xf32>
    tpu.vector_store %arg4[%c0_5, %c0_6], %6 {strides = array<i32>} : memref<512x3xf32, #tpu.memory_space<vmem>>, vector<512x3xf32>,
    return
  }
  func.func @transform_0(%arg0: i32) -> (i32, i32) {
    %c0_i32 = arith.constant 0 : i32
    %c0_i32_0 = arith.constant 0 : i32
    return %arg0, %c0_i32 : i32, i32
  }
  func.func @transform_1(%arg0: i32) -> (i32, i32) {
    %c0_i32 = arith.constant 0 : i32
    %c0_i32_0 = arith.constant 0 : i32
    %c0_i32_1 = arith.constant 0 : i32
    return %c0_i32, %c0_i32_0 : i32, i32
  }
  func.func @transform_2(%arg0: i32) -> (i32, i32) {
    %c0_i32 = arith.constant 0 : i32
    %c0_i32_0 = arith.constant 0 : i32
    %c0_i32_1 = arith.constant 0 : i32
    return %c0_i32, %c0_i32_0 : i32, i32
  }
  func.func @transform_3(%arg0: i32) -> (i32, i32) {
    %c0_i32 = arith.constant 0 : i32
    %c0_i32_0 = arith.constant 0 : i32
    return %arg0, %c0_i32 : i32, i32
  }
}

</mosaic_0001>

<llo_original>
// kernel: tile.43
$region0: #{tile.43}
  #allocation0 [shape = 's32[1]{0}', space=sflag, size = 0x4, scoped, tag = 'scoped memory for tile.43']
  %s0 = inlined_call_operand.vmem [shape: f32[64], index: 0, kind: input, shape index: {}]
  %s1 = inlined_call_operand.vmem [shape: f32[16,64], index: 1, kind: output, shape index: {}]
  // Predicated region
  $region2: #{tile.43} parent=0 // pred_check
    _
  $region3: #{tile.43} parent=0 // pred_check_branch
    %3 = sbr.rel (0) target = $region5
  $region4: #{tile.43} parent=0 // pred_region
    _
  $region5: #{tile.43} parent=0 // pred_fallthru
    _
  %v4 = vld [vmem:[%s0] ss:$0 sm:$0xff]
  %5 = vst [vmem:[%s1] sm:$0xff] %v4
  %s6 = scalar_lea.vmem %s1, 8
  %7 = vst [vmem:[%s6] sm:$0xff] %v4

// kernel: tile.48
$region0: #{tile.48}
  %s0 = inlined_call_operand.vmem [shape: f32[16,64], index: 0, kind: input, shape index: {}]
  %s1 = inlined_call_operand.hbm [shape: f32[1,1024], index: 1, kind: output, shape index: {}]
  $region1: #{tile.48} parent=0
    #allocation0 [shape = 'u8[4096]{0}', space=vmem, size = 0x1000, scoped, tag = 'operand span for operand 1']
    #allocation1 [shape = 's32[1]{0}', space=sflag, size = 0x4, scoped, tag = 'scoped memory for tile.48']
    #allocation2 [shape = 'u8[32768]{0}', space=vmem, size = 0x8000, scoped, tag = 'scoped mem for output reshape']
    %2 = vsyncpa [#allocation1], 0
    %v3 = vld [vmem:[%s0] ss:$2 sm:$0xff]
    %vm4 = vcmask 523264
    %5 = vst.msk [vmem:[#allocation2] ss:$8 sm:$0xf] %vm4, %v3
    %6 = vst.msk [vmem:[#allocation2] ss:$8 sm:$0xf0] %vm4, %v3
    %s7 = scalar_lea.vmem %s0, 1
    %v8 = vld [vmem:[%s7] ss:$2 sm:$0xff]
    %9 = vrot.lane.b32.xlu0 %v8, 64
    %v10 = vpop.permute.xlu0 %9
    %vm11 = vcmask 1048064
    %12 = vst.msk [vmem:[#allocation2] ss:$8 sm:$0xf] %vm11, %v10
    %13 = vst.msk [vmem:[#allocation2] ss:$8 sm:$0xf0] %vm11, %v10
    %s15 = sshllo.u32 0, 1
    %v17 = vld [vmem:[#allocation2] sm:%s15]
    %s18 = sshllo.u32 0, 1
    %19 = vst [vmem:[#allocation0] sm:%s18] %v17
    %s20 = scalar_lea.vmem [#allocation2], 8
    %v21 = vld [vmem:[%s20] sm:%s15]
    %s22 = sshllo.u32 0, 1
    %s23 = scalar_lea.vmem [#allocation0], 1
    %24 = vst [vmem:[%s23] sm:%s22] %v21
    %s25 = scalar_lea.vmem [#allocation2], 16
    %v26 = vld [vmem:[%s25] sm:%s15]
    %s27 = sshllo.u32 0, 1
    %s28 = smul.addr 1, 2
    %s29 = scalar_lea.vmem [#allocation0], %s28
    %30 = vst [vmem:[%s29] sm:%s27] %v26
    %s31 = scalar_lea.vmem [#allocation2], 24
    %v32 = vld [vmem:[%s31] sm:%s15]
    %s33 = sshllo.u32 0, 1
    %s34 = smul.addr 1, 3
    %s35 = scalar_lea.vmem [#allocation0], %s34
    %36 = vst [vmem:[%s35] sm:%s33] %v32
    %s37 = scalar_lea.vmem [#allocation2], 32
    %v38 = vld [vmem:[%s37] sm:%s15]
    %s39 = sshllo.u32 0, 1
    %s40 = smul.addr 1, 4
    %s41 = scalar_lea.vmem [#allocation0], %s40
    %42 = vst [vmem:[%s41] sm:%s39] %v38
    %s43 = scalar_lea.vmem [#allocation2], 40
    %v44 = vld [vmem:[%s43] sm:%s15]
    %s45 = sshllo.u32 0, 1
    %s46 = smul.addr 1, 5
    %s47 = scalar_lea.vmem [#allocation0], %s46
    %48 = vst [vmem:[%s47] sm:%s45] %v44
    %s49 = scalar_lea.vmem [#allocation2], 48
    %v50 = vld [vmem:[%s49] sm:%s15]
    %s51 = sshllo.u32 0, 1
    %s52 = smul.addr 1, 6
    %s53 = scalar_lea.vmem [#allocation0], %s52
    %54 = vst [vmem:[%s53] sm:%s51] %v50
    %s55 = scalar_lea.vmem [#allocation2], 56
    %v56 = vld [vmem:[%s55] sm:%s15]
    %s57 = sshllo.u32 0, 1
    %s58 = smul.addr 1, 7
    %s59 = scalar_lea.vmem [#allocation0], %s58
    %60 = vst [vmem:[%s59] sm:%s57] %v56
    %s62 = ssub.s32 128, 128
    %63 = vsyncadd [#allocation1], %s62
    %s65 = sshll.u32 [#allocation0], 4
    %s66 = int_to_ptr.vmem [resolvable:$true] %s65
    %68 = dma.vmem_to_hbm [thread:$0]  %s66, 128, %s1, [#allocation1]
    %69 = dma.done [#allocation1], 128
    %70 = vsyncpa [#allocation1], 1

// kernel: dcgan_generator_forward.9
$region0: #{dcgan_generator_forward.9}
  #allocation0 [shape = 'u32[]', space=smem, size = 0x4, offset = 0x4, fixed_abs, tag = 'smem constant byte address 0x4 - core index']
  #allocation1 [shape = 'u32[144,128]{1,0:T(1,128)}', space=vmem, size = 0x12000, scoped, tag = 'internal scratch']
  %s0 = inlined_call_operand.hbm [shape: bf16[8,16], index: 0, kind: input, shape index: {}]
  %s1 = inlined_call_operand.hbm [shape: bf16[16,1024], index: 1, kind: input, shape index: {}]
  %s2 = inlined_call_operand.hbm [shape: f32[8,1024], index: 2, kind: output, shape index: {0}]
  %s3 = inlined_call_operand.hbm [shape: f32[8,1024], index: 3, kind: output, shape index: {1}]
  %4 = xla_tuple %s2, %s3
  %s5 = sld [smem:[#allocation0]]
  $region34: #{dcgan_generator_forward.9} parent=0
    _
  %s7 = ssub.s32 1, %s5
  %s8 = scalar_select 0, %s7, %s5
  $region1: #{dcgan_generator_forward.9} parent=0
    #allocation2 [shape = 'u8[2048]{0}', space=vmem, size = 0x800, scoped, tag = 'input window, operand 0, single buffered']
    #allocation3 [shape = 's32[1]{0}', space=sflag, size = 0x4, scoped, tag = 'scoped memory for dcgan_generator_forward.9']
    #allocation4 [shape = 's32[1]{0}', space=sflag, size = 0x4, scoped, tag = 'scoped memory for dcgan_generator_forward.9']
    #allocation5 [shape = 'u8[32768]{0}', space=vmem, size = 0x8000, scoped, tag = 'input window, operand 1, single buffered']
    #allocation6 [shape = 's32[1]{0}', space=sflag, size = 0x4, scoped, tag = 'scoped memory for dcgan_generator_forward.9']
    #allocation7 [shape = 'u8[32768]{0}', space=vmem, size = 0x8000, scoped, tag = 'output window, operand 0, single buffered']
    #allocation8 [shape = 'u8[32768]{0}', space=vmem, size = 0x8000, scoped, tag = 'output window, operand 1, single buffered']
    #allocation9 [shape = 's32[1]{0}', space=sflag, size = 0x4, scoped, tag = 'scoped memory for dcgan_generator_forward.9']
    %9 = vsyncpa [#allocation3], 0
    %10 = vsyncpa [#allocation6], 0
    %11 = vsyncpa [#allocation4], 0
    %12 = vsyncpa [#allocation9], 0
    // Predicated region
    $region2: #{dcgan_generator_forward.9} parent=1 // pred_check
      _
    $region3: #{dcgan_generator_forward.9} parent=1 // pred_check_branch
      %14 = sbr.rel (0) target = $region5
    $region4: #{dcgan_generator_forward.9} parent=1 // pred_region
      %s16 = ssub.s32 64, 64
      %17 = vsyncadd [#allocation3], %s16
      %s19 = sshll.u32 [#allocation2], 4
      %s20 = int_to_ptr.vmem [resolvable:$true] %s19
      %22 = dma.hbm_to_vmem [thread:$0]  %s0, 64, %s20, [#allocation3]
    $region5: #{dcgan_generator_forward.9} parent=1 // pred_fallthru
      _
    // Predicated region
    $region6: #{dcgan_generator_forward.9} parent=1 // pred_check
      _
    $region7: #{dcgan_generator_forward.9} parent=1 // pred_check_branch
      %24 = sbr.rel (0) target = $region9
    $region8: #{dcgan_generator_forward.9} parent=1 // pred_region
      %s26 = ssub.s32 1024, 1024
      %27 = vsyncadd [#allocation6], %s26
      %s28 = sshll.u32 [#allocation5], 4
      %s29 = int_to_ptr.vmem [resolvable:$true] %s28
      %34 = dma.hbm_to_vmem [thread:$0]  %s1, 1024, %s29, [#allocation6], 512, 512, 32
    $region9: #{dcgan_generator_forward.9} parent=1 // pred_fallthru
      _
    // Predicated region
    $region10: #{dcgan_generator_forward.9} parent=1 // pred_check
      _
    $region11: #{dcgan_generator_forward.9} parent=1 // pred_check_branch
      %36 = sbr.rel (0) target = $region13
    $region12: #{dcgan_generator_forward.9} parent=1 // pred_region
      %37 = dma.done [#allocation3], 64
    $region13: #{dcgan_generator_forward.9} parent=1 // pred_fallthru
      _
    // Predicated region
    $region14: #{dcgan_generator_forward.9} parent=1 // pred_check
      _
    $region15: #{dcgan_generator_forward.9} parent=1 // pred_check_branch
      %39 = sbr.rel (0) target = $region17
    $region16: #{dcgan_generator_forward.9} parent=1 // pred_region
      %40 = dma.done [#allocation6], 1024
    $region17: #{dcgan_generator_forward.9} parent=1 // pred_fallthru
      _
    %v42 = vld [vmem:[#allocation2] sm:$0xf]
    %v43 = vld [vmem:[#allocation5] sm:$0xff]
    %v44 = vld [vmem:[#allocation5 + $0x8] sm:$0xff]
    %v45 = vld [vmem:[#allocation5 + $0x10] sm:$0xff]
    %v46 = vld [vmem:[#allocation5 + $0x18] sm:$0xff]
    %v47 = vld [vmem:[#allocation5 + $0x20] sm:$0xff]
    %v48 = vld [vmem:[#allocation5 + $0x28] sm:$0xff]
    %v49 = vld [vmem:[#allocation5 + $0x30] sm:$0xff]
    %v50 = vld [vmem:[#allocation5 + $0x38] sm:$0xff]
    %v59 = vunpack.c.l.b16 %v43
    %v60 = vunpack.c.h.b16 %v43
    %v61 = vunpack.c.l.b16 %v44
    %v62 = vunpack.c.h.b16 %v44
    %v63 = vunpack.c.l.b16 %v45
    %v64 = vunpack.c.h.b16 %v45
    %v65 = vunpack.c.l.b16 %v46
    %v66 = vunpack.c.h.b16 %v46
    %v67 = vunpack.c.l.b16 %v47
    %v68 = vunpack.c.h.b16 %v47
    %v69 = vunpack.c.l.b16 %v48
    %v70 = vunpack.c.h.b16 %v48
    %v71 = vunpack.c.l.b16 %v49
    %v72 = vunpack.c.h.b16 %v49
    %v73 = vunpack.c.l.b16 %v50
    %v74 = vunpack.c.h.b16 %v50
    %v75 = vpack.c.b16 %v67, %v59
    %v76 = vpack.c.b16 %v68, %v60
    %v77 = vpack.c.b16 %v69, %v61
    %v78 = vpack.c.b16 %v70, %v62
    %v79 = vpack.c.b16 %v71, %v63
    %v80 = vpack.c.b16 %v72, %v64
    %v81 = vpack.c.b16 %v73, %v65
    %v82 = vpack.c.b16 %v74, %v66
    %vm91 = vcmask 130048
    %v93 = vsel %vm91, %v42, 0
    %95 = vmatprep.subr.bf16.mxu0 %v76
    %96 = vmatpush1.bf16.msra.mxu0 %v75
    %97 = vmatprep.subr.bf16.mxu0 0
    %98 = vmatpush1.bf16.msra.mxu0 0
    %99 = vmatprep.subr.bf16.mxu0 0
    %100 = vmatpush1.bf16.msra.mxu0 0
    %101 = vmatprep.subr.bf16.mxu0 0
    %102 = vmatpush1.bf16.msra.mxu0 0
    %103 = vmatprep.subr.bf16.mxu0 0
    %104 = vmatpush1.bf16.msra.mxu0 0
    %105 = vmatprep.subr.bf16.mxu0 0
    %106 = vmatpush1.bf16.msra.mxu0 0
    %107 = vmatprep.subr.bf16.mxu0 0
    %108 = vmatpush1.bf16.msra.mxu0 0
    %109 = vmatprep.subr.bf16.mxu0 0
    %110 = vmatpush1.bf16.msra.mxu0 0
    %111 = vmatprep.subr.bf16.mxu0 0
    %112 = vmatpush1.bf16.msra.mxu0 0
    %113 = vmatprep.subr.bf16.mxu0 0
    %114 = vmatpush1.bf16.msra.mxu0 0
    %115 = vmatprep.subr.bf16.mxu0 0
    %116 = vmatpush1.bf16.msra.mxu0 0
    %117 = vmatprep.subr.bf16.mxu0 0
    %118 = vmatpush1.bf16.msra.mxu0 0
    %119 = vmatprep.subr.bf16.mxu0 0
    %120 = vmatpush1.bf16.msra.mxu0 0
    %121 = vmatprep.subr.bf16.mxu0 0
    %122 = vmatpush1.bf16.msra.mxu0 0
    %123 = vmatprep.subr.bf16.mxu0 0
    %124 = vmatpush1.bf16.msra.mxu0 0
    %125 = vmatprep.subr.bf16.mxu0 0
    %126 = vmatpush1.bf16.msra.mxu0 0
    %127 = vmatprep.mubr.bf16.mxu0 0
    %128 = vmatmul.mubr.bf16.gmra.mrb[0].mxu0 %v93
    %v129 = vpop.f32.mrb[0].mxu0
    %v130 = vadd.f32 0.0, %v129
    %v131 = vpop.f32.mrb[0].mxu0
    %v132 = vadd.f32 0.0, %v131
    %v133 = vpop.f32.mrb[0].mxu0
    %v134 = vpop.f32.mrb[0].mxu0
    %135 = vdwg.mxu0
    %136 = vmatprep.subr.bf16.mxu0 %v78
    %137 = vmatpush1.bf16.msra.mxu0 %v77
    %138 = vmatprep.subr.bf16.mxu0 0
    %139 = vmatpush1.bf16.msra.mxu0 0
    %140 = vmatprep.subr.bf16.mxu0 0
    %141 = vmatpush1.bf16.msra.mxu0 0
    %142 = vmatprep.subr.bf16.mxu0 0
    %143 = vmatpush1.bf16.msra.mxu0 0
    %144 = vmatprep.subr.bf16.mxu0 0
    %145 = vmatpush1.bf16.msra.mxu0 0
    %146 = vmatprep.subr.bf16.mxu0 0
    %147 = vmatpush1.bf16.msra.mxu0 0
    %148 = vmatprep.subr.bf16.mxu0 0
    %149 = vmatpush1.bf16.msra.mxu0 0
    %150 = vmatprep.subr.bf16.mxu0 0
    %151 = vmatpush1.bf16.msra.mxu0 0
    %152 = vmatprep.subr.bf16.mxu0 0
    %153 = vmatpush1.bf16.msra.mxu0 0
    %154 = vmatprep.subr.bf16.mxu0 0
    %155 = vmatpush1.bf16.msra.mxu0 0
    %156 = vmatprep.subr.bf16.mxu0 0
    %157 = vmatpush1.bf16.msra.mxu0 0
    %158 = vmatprep.subr.bf16.mxu0 0
    %159 = vmatpush1.bf16.msra.mxu0 0
    %160 = vmatprep.subr.bf16.mxu0 0
    %161 = vmatpush1.bf16.msra.mxu0 0
    %162 = vmatprep.subr.bf16.mxu0 0
    %163 = vmatpush1.bf16.msra.mxu0 0
    %164 = vmatprep.subr.bf16.mxu0 0
    %165 = vmatpush1.bf16.msra.mxu0 0
    %166 = vmatprep.subr.bf16.mxu0 0
    %167 = vmatpush1.bf16.msra.mxu0 0
    %168 = vmatprep.mubr.bf16.mxu0 0
    %169 = vmatmul.mubr.bf16.gmra.mrb[0].mxu0 %v93
    %v170 = vpop.f32.mrb[0].mxu0
    %v171 = vadd.f32 0.0, %v170
    %v172 = vpop.f32.mrb[0].mxu0
    %v173 = vadd.f32 0.0, %v172
    %v174 = vpop.f32.mrb[0].mxu0
    %v175 = vpop.f32.mrb[0].mxu0
    %176 = vdwg.mxu0
    %177 = vmatprep.subr.bf16.mxu0 %v80
    %178 = vmatpush1.bf16.msra.mxu0 %v79
    %179 = vmatprep.subr.bf16.mxu0 0
    %180 = vmatpush1.bf16.msra.mxu0 0
    %181 = vmatprep.subr.bf16.mxu0 0
    %182 = vmatpush1.bf16.msra.mxu0 0
    %183 = vmatprep.subr.bf16.mxu0 0
    %184 = vmatpush1.bf16.msra.mxu0 0
    %185 = vmatprep.subr.bf16.mxu0 0
    %186 = vmatpush1.bf16.msra.mxu0 0
    %187 = vmatprep.subr.bf16.mxu0 0
    %188 = vmatpush1.bf16.msra.mxu0 0
    %189 = vmatprep.subr.bf16.mxu0 0
    %190 = vmatpush1.bf16.msra.mxu0 0
    %191 = vmatprep.subr.bf16.mxu0 0
    %192 = vmatpush1.bf16.msra.mxu0 0
    %193 = vmatprep.subr.bf16.mxu0 0
    %194 = vmatpush1.bf16.msra.mxu0 0
    %195 = vmatprep.subr.bf16.mxu0 0
    %196 = vmatpush1.bf16.msra.mxu0 0
    %197 = vmatprep.subr.bf16.mxu0 0
    %198 = vmatpush1.bf16.msra.mxu0 0
    %199 = vmatprep.subr.bf16.mxu0 0
    %200 = vmatpush1.bf16.msra.mxu0 0
    %201 = vmatprep.subr.bf16.mxu0 0
    %202 = vmatpush1.bf16.msra.mxu0 0
    %203 = vmatprep.subr.bf16.mxu0 0
    %204 = vmatpush1.bf16.msra.mxu0 0
    %205 = vmatprep.subr.bf16.mxu0 0
    %206 = vmatpush1.bf16.msra.mxu0 0
    %207 = vmatprep.subr.bf16.mxu0 0
    %208 = vmatpush1.bf16.msra.mxu0 0
    %209 = vmatprep.mubr.bf16.mxu0 0
    %210 = vmatmul.mubr.bf16.gmra.mrb[0].mxu0 %v93
    %v211 = vpop.f32.mrb[0].mxu0
    %v212 = vadd.f32 0.0, %v211
    %v213 = vpop.f32.mrb[0].mxu0
    %v214 = vadd.f32 0.0, %v213
    %v215 = vpop.f32.mrb[0].mxu0
    %v216 = vpop.f32.mrb[0].mxu0
    %217 = vdwg.mxu0
    %218 = vmatprep.subr.bf16.mxu0 %v82
    %219 = vmatpush1.bf16.msra.mxu0 %v81
    %220 = vmatprep.subr.bf16.mxu0 0
    %221 = vmatpush1.bf16.msra.mxu0 0
    %222 = vmatprep.subr.bf16.mxu0 0
    %223 = vmatpush1.bf16.msra.mxu0 0
    %224 = vmatprep.subr.bf16.mxu0 0
    %225 = vmatpush1.bf16.msra.mxu0 0
    %226 = vmatprep.subr.bf16.mxu0 0
    %227 = vmatpush1.bf16.msra.mxu0 0
    %228 = vmatprep.subr.bf16.mxu0 0
    %229 = vmatpush1.bf16.msra.mxu0 0
    %230 = vmatprep.subr.bf16.mxu0 0
    %231 = vmatpush1.bf16.msra.mxu0 0
    %232 = vmatprep.subr.bf16.mxu0 0
    %233 = vmatpush1.bf16.msra.mxu0 0
    %234 = vmatprep.subr.bf16.mxu0 0
    %235 = vmatpush1.bf16.msra.mxu0 0
    %236 = vmatprep.subr.bf16.mxu0 0
    %237 = vmatpush1.bf16.msra.mxu0 0
    %238 = vmatprep.subr.bf16.mxu0 0
    %239 = vmatpush1.bf16.msra.mxu0 0
    %240 = vmatprep.subr.bf16.mxu0 0
    %241 = vmatpush1.bf16.msra.mxu0 0
    %242 = vmatprep.subr.bf16.mxu0 0
    %243 = vmatpush1.bf16.msra.mxu0 0
    %244 = vmatprep.subr.bf16.mxu0 0
    %245 = vmatpush1.bf16.msra.mxu0 0
    %246 = vmatprep.subr.bf16.mxu0 0
    %247 = vmatpush1.bf16.msra.mxu0 0
    %248 = vmatprep.subr.bf16.mxu0 0
    %249 = vmatpush1.bf16.msra.mxu0 0
    %250 = vmatprep.mubr.bf16.mxu0 0
    %251 = vmatmul.mubr.bf16.gmra.mrb[0].mxu0 %v93
    %v252 = vpop.f32.mrb[0].mxu0
    %v253 = vadd.f32 0.0, %v252
    %v254 = vpop.f32.mrb[0].mxu0
    %v255 = vadd.f32 0.0, %v254
    %v256 = vpop.f32.mrb[0].mxu0
    %v257 = vpop.f32.mrb[0].mxu0
    %258 = vdwg.mxu0
    %v259 = vrot.slane %v130, 4
    %v260 = vadd.f32 %v130, %v259
    %v261 = vrot.slane %v260, 2
    %v262 = vadd.f32 %v260, %v261
    %v263 = vrot.slane %v262, 1
    %v264 = vadd.f32 %v262, %v263
    %v265 = vrot.slane %v132, 4
    %v266 = vadd.f32 %v132, %v265
    %v267 = vrot.slane %v266, 2
    %v268 = vadd.f32 %v266, %v267
    %v269 = vrot.slane %v268, 1
    %v270 = vadd.f32 %v268, %v269
    %v271 = vrot.slane %v171, 4
    %v272 = vadd.f32 %v171, %v271
    %v273 = vrot.slane %v272, 2
    %v274 = vadd.f32 %v272, %v273
    %v275 = vrot.slane %v274, 1
    %v276 = vadd.f32 %v274, %v275
    %v277 = vrot.slane %v173, 4
    %v278 = vadd.f32 %v173, %v277
    %v279 = vrot.slane %v278, 2
    %v280 = vadd.f32 %v278, %v279
    %v281 = vrot.slane %v280, 1
    %v282 = vadd.f32 %v280, %v281
    %v283 = vrot.slane %v212, 4
    %v284 = vadd.f32 %v212, %v283
    %v285 = vrot.slane %v284, 2
    %v286 = vadd.f32 %v284, %v285
    %v287 = vrot.slane %v286, 1
    %v288 = vadd.f32 %v286, %v287
    %v289 = vrot.slane %v214, 4
    %v290 = vadd.f32 %v214, %v289
    %v291 = vrot.slane %v290, 2
    %v292 = vadd.f32 %v290, %v291
    %v293 = vrot.slane %v292, 1
    %v294 = vadd.f32 %v292, %v293
    %v295 = vrot.slane %v253, 4
    %v296 = vadd.f32 %v253, %v295
    %v297 = vrot.slane %v296, 2
    %v298 = vadd.f32 %v296, %v297
    %v299 = vrot.slane %v298, 1
    %v300 = vadd.f32 %v298, %v299
    %v301 = vrot.slane %v255, 4
    %v302 = vadd.f32 %v255, %v301
    %v303 = vrot.slane %v302, 2
    %v304 = vadd.f32 %v302, %v303
    %v305 = vrot.slane %v304, 1
    %v306 = vadd.f32 %v304, %v305
    %v307 = vmul.f32 %v130, %v130
    %v308 = vmul.f32 %v132, %v132
    %v309 = vmul.f32 %v171, %v171
    %v310 = vmul.f32 %v173, %v173
    %v311 = vmul.f32 %v212, %v212
    %v312 = vmul.f32 %v214, %v214
    %v313 = vmul.f32 %v253, %v253
    %v314 = vmul.f32 %v255, %v255
    %v315 = vrot.slane %v307, 4
    %v316 = vadd.f32 %v307, %v315
    %v317 = vrot.slane %v316, 2
    %v318 = vadd.f32 %v316, %v317
    %v319 = vrot.slane %v318, 1
    %v320 = vadd.f32 %v318, %v319
    %v321 = vrot.slane %v308, 4
    %v322 = vadd.f32 %v308, %v321
    %v323 = vrot.slane %v322, 2
    %v324 = vadd.f32 %v322, %v323
    %v325 = vrot.slane %v324, 1
    %v326 = vadd.f32 %v324, %v325
    %v327 = vrot.slane %v309, 4
    %v328 = vadd.f32 %v309, %v327
    %v329 = vrot.slane %v328, 2
    %v330 = vadd.f32 %v328, %v329
    %v331 = vrot.slane %v330, 1
    %v332 = vadd.f32 %v330, %v331
    %v333 = vrot.slane %v310, 4
    %v334 = vadd.f32 %v310, %v333
    %v335 = vrot.slane %v334, 2
    %v336 = vadd.f32 %v334, %v335
    %v337 = vrot.slane %v336, 1
    %v338 = vadd.f32 %v336, %v337
    %v339 = vrot.slane %v311, 4
    %v340 = vadd.f32 %v311, %v339
    %v341 = vrot.slane %v340, 2
    %v342 = vadd.f32 %v340, %v341
    %v343 = vrot.slane %v342, 1
    %v344 = vadd.f32 %v342, %v343
    %v345 = vrot.slane %v312, 4
    %v346 = vadd.f32 %v312, %v345
    %v347 = vrot.slane %v346, 2
    %v348 = vadd.f32 %v346, %v347
    %v349 = vrot.slane %v348, 1
    %v350 = vadd.f32 %v348, %v349
    %v351 = vrot.slane %v313, 4
    %v352 = vadd.f32 %v313, %v351
    %v353 = vrot.slane %v352, 2
    %v354 = vadd.f32 %v352, %v353
    %v355 = vrot.slane %v354, 1
    %v356 = vadd.f32 %v354, %v355
    %v357 = vrot.slane %v314, 4
    %v358 = vadd.f32 %v314, %v357
    %v359 = vrot.slane %v358, 2
    %v360 = vadd.f32 %v358, %v359
    %v361 = vrot.slane %v360, 1
    %v362 = vadd.f32 %v360, %v361
    %vm363 = vcmask 1040384
    %v364 = vsel %vm363, %v264, %v320
    %v365 = vsel %vm363, %v270, %v326
    %v366 = vsel %vm363, %v276, %v332
    %v367 = vsel %vm363, %v282, %v338
    %v368 = vsel %vm363, %v288, %v344
    %v369 = vsel %vm363, %v294, %v350
    %v370 = vsel %vm363, %v300, %v356
    %v371 = vsel %vm363, %v306, %v362
    %vm372 = vcmask 1041408
    %v373 = vsel %vm372, %v364, 0.0
    %v374 = vsel %vm372, %v365, 0.0
    %v375 = vsel %vm372, %v366, 0.0
    %v376 = vsel %vm372, %v367, 0.0
    %v377 = vsel %vm372, %v368, 0.0
    %v378 = vsel %vm372, %v369, 0.0
    %v379 = vsel %vm372, %v370, 0.0
    %v380 = vsel %vm372, %v371, 0.0
    %381 = vst [vmem:[#allocation8] sm:$0xff] %v373
    %382 = vst [vmem:[#allocation8 + $0x8] sm:$0xff] %v374
    %383 = vst [vmem:[#allocation8 + $0x10] sm:$0xff] %v375
    %384 = vst [vmem:[#allocation8 + $0x18] sm:$0xff] %v376
    %385 = vst [vmem:[#allocation8 + $0x20] sm:$0xff] %v377
    %386 = vst [vmem:[#allocation8 + $0x28] sm:$0xff] %v378
    %387 = vst [vmem:[#allocation8 + $0x30] sm:$0xff] %v379
    %388 = vst [vmem:[#allocation8 + $0x38] sm:$0xff] %v380
    %389 = vst [vmem:[#allocation7] sm:$0xff] %v130
    %390 = vst [vmem:[#allocation7 + $0x8] sm:$0xff] %v132
    %391 = vst [vmem:[#allocation7 + $0x10] sm:$0xff] %v171
    %392 = vst [vmem:[#allocation7 + $0x18] sm:$0xff] %v173
    %393 = vst [vmem:[#allocation7 + $0x20] sm:$0xff] %v212
    %394 = vst [vmem:[#allocation7 + $0x28] sm:$0xff] %v214
    %395 = vst [vmem:[#allocation7 + $0x30] sm:$0xff] %v253
    %396 = vst [vmem:[#allocation7 + $0x38] sm:$0xff] %v255
    // Predicated region
    $region18: #{dcgan_generator_forward.9} parent=1 // pred_check
      _
    $region19: #{dcgan_generator_forward.9} parent=1 // pred_check_branch
      %398 = sbr.rel (0) target = $region21
    $region20: #{dcgan_generator_forward.9} parent=1 // pred_region
      %s400 = ssub.s32 1024, 1024
      %401 = vsyncadd [#allocation4], %s400
      %s403 = sshll.u32 [#allocation7], 4
      %s404 = int_to_ptr.vmem [resolvable:$true] %s403
      %406 = dma.vmem_to_hbm [thread:$0]  %s404, 1024, %s2, [#allocation4]
    $region21: #{dcgan_generator_forward.9} parent=1 // pred_fallthru
      _
    // Predicated region
    $region22: #{dcgan_generator_forward.9} parent=1 // pred_check
      _
    $region23: #{dcgan_generator_forward.9} parent=1 // pred_check_branch
      %408 = sbr.rel (0) target = $region25
    $region24: #{dcgan_generator_forward.9} parent=1 // pred_region
      %s410 = ssub.s32 1024, 1024
      %411 = vsyncadd [#allocation9], %s410
      %s413 = sshll.u32 [#allocation8], 4
      %s414 = int_to_ptr.vmem [resolvable:$true] %s413
      %416 = dma.vmem_to_hbm [thread:$0]  %s414, 1024, %s3, [#allocation9]
    $region25: #{dcgan_generator_forward.9} parent=1 // pred_fallthru
      _
    // Predicated region
    $region26: #{dcgan_generator_forward.9} parent=1 // pred_check
      _
    $region27: #{dcgan_generator_forward.9} parent=1 // pred_check_branch
      %418 = sbr.rel (0) target = $region29
    $region28: #{dcgan_generator_forward.9} parent=1 // pred_region
      %419 = dma.done [#allocation4], 1024
    $region29: #{dcgan_generator_forward.9} parent=1 // pred_fallthru
      _
    // Predicated region
    $region30: #{dcgan_generator_forward.9} parent=1 // pred_check
      _
    $region31: #{dcgan_generator_forward.9} parent=1 // pred_check_branch
      %421 = sbr.rel (0) target = $region33
    $region32: #{dcgan_generator_forward.9} parent=1 // pred_region
      %422 = dma.done [#allocation9], 1024
    $region33: #{dcgan_generator_forward.9} parent=1 // pred_fallthru
      _
    %423 = vsyncpa [#allocation3], 1
    %424 = vsyncpa [#allocation6], 1
    %425 = vsyncpa [#allocation4], 1
    %426 = vsyncpa [#allocation9], 1

// kernel: dcgan_generator_forward.10
$region0: #{dcgan_generator_forward.10}
  #allocation0 [shape = 'u32[]', space=smem, size = 0x4, offset = 0x4, fixed_abs, tag = 'smem constant byte address 0x4 - core index']
  #allocation1 [shape = 'u32[144,128]{1,0:T(1,128)}', space=vmem, size = 0x12000, scoped, tag = 'internal scratch']
  %s0 = inlined_call_operand.hbm [shape: f32[8,1024], index: 0, kind: input, shape index: {}]
  %s1 = inlined_call_operand.hbm [shape: f32[1,1024], index: 1, kind: input, shape index: {}]
  %s2 = inlined_call_operand.hbm [shape: f32[1,1024], index: 2, kind: input, shape index: {}]
  %s3 = inlined_call_operand.hbm [shape: bf16[8,1024], index: 3, kind: output, shape index: {}]
  %s4 = sld [smem:[#allocation0]]
  $region34: #{dcgan_generator_forward.10} parent=0
    _
  %s6 = ssub.s32 1, %s4
  %s7 = scalar_select 0, %s6, %s4
  $region1: #{dcgan_generator_forward.10} parent=0
    #allocation2 [shape = 'u8[32768]{0}', space=vmem, size = 0x8000, scoped, tag = 'input window, operand 0, single buffered']
    #allocation3 [shape = 's32[1]{0}', space=sflag, size = 0x4, scoped, tag = 'scoped memory for dcgan_generator_forward.10']
    #allocation4 [shape = 's32[1]{0}', space=sflag, size = 0x4, scoped, tag = 'scoped memory for dcgan_generator_forward.10']
    #allocation5 [shape = 'u8[4096]{0}', space=vmem, size = 0x1000, scoped, tag = 'input window, operand 1, single buffered']
    #allocation6 [shape = 's32[1]{0}', space=sflag, size = 0x4, scoped, tag = 'scoped memory for dcgan_generator_forward.10']
    #allocation7 [shape = 'u8[4096]{0}', space=vmem, size = 0x1000, scoped, tag = 'input window, operand 2, single buffered']
    #allocation8 [shape = 'u8[16384]{0}', space=vmem, size = 0x4000, scoped, tag = 'output window, operand 0, single buffered']
    %8 = vsyncpa [#allocation3], 0
    %9 = vsyncpa [#allocation6], 0
    %10 = vsyncpa [#allocation4], 0
    // Predicated region
    $region2: #{dcgan_generator_forward.10} parent=1 // pred_check
      _
    $region3: #{dcgan_generator_forward.10} parent=1 // pred_check_branch
      %12 = sbr.rel (0) target = $region5
    $region4: #{dcgan_generator_forward.10} parent=1 // pred_region
      %s14 = ssub.s32 1024, 1024
      %15 = vsyncadd [#allocation3], %s14
      %s17 = sshll.u32 [#allocation2], 4
      %s18 = int_to_ptr.vmem [resolvable:$true] %s17
      %20 = dma.hbm_to_vmem [thread:$0]  %s0, 1024, %s18, [#allocation3]
    $region5: #{dcgan_generator_forward.10} parent=1 // pred_fallthru
      _
    // Predicated region
    $region6: #{dcgan_generator_forward.10} parent=1 // pred_check
      _
    $region7: #{dcgan_generator_forward.10} parent=1 // pred_check_branch
      %22 = sbr.rel (0) target = $region9
    $region8: #{dcgan_generator_forward.10} parent=1 // pred_region
      %s24 = ssub.s32 128, 128
      %25 = vsyncadd [#allocation6], %s24
      %s27 = sshll.u32 [#allocation5], 4
      %s28 = int_to_ptr.vmem [resolvable:$true] %s27
      %30 = dma.hbm_to_vmem [thread:$0]  %s1, 128, %s28, [#allocation6]
    $region9: #{dcgan_generator_forward.10} parent=1 // pred_fallthru
      _
    // Predicated region
    $region10: #{dcgan_generator_forward.10} parent=1 // pred_check
      _
    $region11: #{dcgan_generator_forward.10} parent=1 // pred_check_branch
      %32 = sbr.rel (0) target = $region13
    $region12: #{dcgan_generator_forward.10} parent=1 // pred_region
      %s34 = ssub.s32 128, 128
      %35 = vsyncadd [#allocation6], %s34
      %s37 = sshll.u32 [#allocation7], 4
      %s38 = int_to_ptr.vmem [resolvable:$true] %s37
      %40 = dma.hbm_to_vmem [thread:$0]  %s2, 128, %s38, [#allocation6]
    $region13: #{dcgan_generator_forward.10} parent=1 // pred_fallthru
      _
    // Predicated region
    $region14: #{dcgan_generator_forward.10} parent=1 // pred_check
      _
    $region15: #{dcgan_generator_forward.10} parent=1 // pred_check_branch
      %42 = sbr.rel (0) target = $region17
    $region16: #{dcgan_generator_forward.10} parent=1 // pred_region
      %43 = dma.done [#allocation3], 1024
    $region17: #{dcgan_generator_forward.10} parent=1 // pred_fallthru
      _
    // Predicated region
    $region18: #{dcgan_generator_forward.10} parent=1 // pred_check
      _
    $region19: #{dcgan_generator_forward.10} parent=1 // pred_check_branch
      %45 = sbr.rel (0) target = $region21
    $region20: #{dcgan_generator_forward.10} parent=1 // pred_region
      %46 = dma.done [#allocation6], 128
    $region21: #{dcgan_generator_forward.10} parent=1 // pred_fallthru
      _
    // Predicated region
    $region22: #{dcgan_generator_forward.10} parent=1 // pred_check
      _
    $region23: #{dcgan_generator_forward.10} parent=1 // pred_check_branch
      %48 = sbr.rel (0) target = $region25
    $region24: #{dcgan_generator_forward.10} parent=1 // pred_region
      %49 = dma.done [#allocation6], 128
    $region25: #{dcgan_generator_forward.10} parent=1 // pred_fallthru
      _
    %v50 = vld [vmem:[#allocation2] sm:$0xff]
    %v51 = vld [vmem:[#allocation2 + $0x8] sm:$0xff]
    %v52 = vld [vmem:[#allocation2 + $0x10] sm:$0xff]
    %v53 = vld [vmem:[#allocation2 + $0x18] sm:$0xff]
    %v54 = vld [vmem:[#allocation2 + $0x20] sm:$0xff]
    %v55 = vld [vmem:[#allocation2 + $0x28] sm:$0xff]
    %v56 = vld [vmem:[#allocation2 + $0x30] sm:$0xff]
    %v57 = vld [vmem:[#allocation2 + $0x38] sm:$0xff]
    %v58 = vld [vmem:[#allocation5] sm:$0xff]
    %v60 = vlaneseq
    %v61 = vshrl.u32 %v60, 7
    %v62 = vsub.s32 0, %v61
    %v63 = vrot.slane %v58, %v62
    %v64 = vlaneseq
    %v65 = vshrl.u32 %v64, 7
    %v66 = vsub.s32 1, %v65
    %v67 = vrot.slane %v58, %v66
    %v68 = vlaneseq
    %v69 = vshrl.u32 %v68, 7
    %v70 = vsub.s32 2, %v69
    %v71 = vrot.slane %v58, %v70
    %v72 = vlaneseq
    %v73 = vshrl.u32 %v72, 7
    %v74 = vsub.s32 3, %v73
    %v75 = vrot.slane %v58, %v74
    %v76 = vlaneseq
    %v77 = vshrl.u32 %v76, 7
    %v78 = vsub.s32 4, %v77
    %v79 = vrot.slane %v58, %v78
    %v80 = vlaneseq
    %v81 = vshrl.u32 %v80, 7
    %v82 = vsub.s32 5, %v81
    %v83 = vrot.slane %v58, %v82
    %v84 = vlaneseq
    %v85 = vshrl.u32 %v84, 7
    %v86 = vsub.s32 6, %v85
    %v87 = vrot.slane %v58, %v86
    %v88 = vlaneseq
    %v89 = vshrl.u32 %v88, 7
    %v90 = vsub.s32 7, %v89
    %v91 = vrot.slane %v58, %v90
    %v100 = vmul.f32 %v50, %v63
    %v101 = vmul.f32 %v51, %v67
    %v102 = vmul.f32 %v52, %v71
    %v103 = vmul.f32 %v53, %v75
    %v104 = vmul.f32 %v54, %v79
    %v105 = vmul.f32 %v55, %v83
    %v106 = vmul.f32 %v56, %v87
    %v107 = vmul.f32 %v57, %v91
    %v108 = vld [vmem:[#allocation7] sm:$0xff]
    %v110 = vlaneseq
    %v111 = vshrl.u32 %v110, 7
    %v112 = vsub.s32 0, %v111
    %v113 = vrot.slane %v108, %v112
    %v114 = vlaneseq
    %v115 = vshrl.u32 %v114, 7
    %v116 = vsub.s32 1, %v115
    %v117 = vrot.slane %v108, %v116
    %v118 = vlaneseq
    %v119 = vshrl.u32 %v118, 7
    %v120 = vsub.s32 2, %v119
    %v121 = vrot.slane %v108, %v120
    %v122 = vlaneseq
    %v123 = vshrl.u32 %v122, 7
    %v124 = vsub.s32 3, %v123
    %v125 = vrot.slane %v108, %v124
    %v126 = vlaneseq
    %v127 = vshrl.u32 %v126, 7
    %v128 = vsub.s32 4, %v127
    %v129 = vrot.slane %v108, %v128
    %v130 = vlaneseq
    %v131 = vshrl.u32 %v130, 7
    %v132 = vsub.s32 5, %v131
    %v133 = vrot.slane %v108, %v132
    %v134 = vlaneseq
    %v135 = vshrl.u32 %v134, 7
    %v136 = vsub.s32 6, %v135
    %v137 = vrot.slane %v108, %v136
    %v138 = vlaneseq
    %v139 = vshrl.u32 %v138, 7
    %v140 = vsub.s32 7, %v139
    %v141 = vrot.slane %v108, %v140
    %v150 = vadd.f32 %v100, %v113
    %v151 = vadd.f32 %v101, %v117
    %v152 = vadd.f32 %v102, %v121
    %v153 = vadd.f32 %v103, %v125
    %v154 = vadd.f32 %v104, %v129
    %v155 = vadd.f32 %v105, %v133
    %v156 = vadd.f32 %v106, %v137
    %v157 = vadd.f32 %v107, %v141
    %v158 = vmax.f32 %v150, 0.0
    %v159 = vmax.f32 %v151, 0.0
    %v160 = vmax.f32 %v152, 0.0
    %v161 = vmax.f32 %v153, 0.0
    %v162 = vmax.f32 %v154, 0.0
    %v163 = vmax.f32 %v155, 0.0
    %v164 = vmax.f32 %v156, 0.0
    %v165 = vmax.f32 %v157, 0.0
    %v166 = vpack.c.bf16 %v158, %v158
    %v167 = vpack.c.bf16 %v159, %v159
    %v168 = vpack.c.bf16 %v160, %v160
    %v169 = vpack.c.bf16 %v161, %v161
    %v170 = vpack.c.bf16 %v162, %v162
    %v171 = vpack.c.bf16 %v163, %v163
    %v172 = vpack.c.bf16 %v164, %v164
    %v173 = vpack.c.bf16 %v165, %v165
    %v182 = vunpack.c.l.b16 %v166
    %v183 = vunpack.c.l.b16 %v167
    %v184 = vunpack.c.l.b16 %v168
    %v185 = vunpack.c.l.b16 %v169
    %v186 = vunpack.c.l.b16 %v170
    %v187 = vunpack.c.l.b16 %v171
    %v188 = vunpack.c.l.b16 %v172
    %v189 = vunpack.c.l.b16 %v173
    %v190 = vpack.c.b16 %v183, %v182
    %v191 = vpack.c.b16 %v185, %v184
    %v192 = vpack.c.b16 %v187, %v186
    %v193 = vpack.c.b16 %v189, %v188
    %198 = vst [vmem:[#allocation8] sm:$0xff] %v190
    %199 = vst [vmem:[#allocation8 + $0x8] sm:$0xff] %v191
    %200 = vst [vmem:[#allocation8 + $0x10] sm:$0xff] %v192
    %201 = vst [vmem:[#allocation8 + $0x18] sm:$0xff] %v193
    // Predicated region
    $region26: #{dcgan_generator_forward.10} parent=1 // pred_check
      _
    $region27: #{dcgan_generator_forward.10} parent=1 // pred_check_branch
      %203 = sbr.rel (0) target = $region29
    $region28: #{dcgan_generator_forward.10} parent=1 // pred_region
      %s205 = ssub.s32 512, 512
      %206 = vsyncadd [#allocation4], %s205
      %s208 = sshll.u32 [#allocation8], 4
      %s209 = int_to_ptr.vmem [resolvable:$true] %s208
      %211 = dma.vmem_to_hbm [thread:$0]  %s209, 512, %s3, [#allocation4]
    $region29: #{dcgan_generator_forward.10} parent=1 // pred_fallthru
      _
    // Predicated region
    $region30: #{dcgan_generator_forward.10} parent=1 // pred_check
      _
    $region31: #{dcgan_generator_forward.10} parent=1 // pred_check_branch
      %213 = sbr.rel (0) target = $region33
    $region32: #{dcgan_generator_forward.10} parent=1 // pred_region
      %214 = dma.done [#allocation4], 512
    $region33: #{dcgan_generator_forward.10} parent=1 // pred_fallthru
      _
    %215 = vsyncpa [#allocation3], 1
    %216 = vsyncpa [#allocation6], 1
    %217 = vsyncpa [#allocation4], 1

// kernel: tile.53
$region0: #{tile.53}
  #allocation0 [shape = 's32[1]{0}', space=sflag, size = 0x4, scoped, tag = 'scoped memory for tile.53']
  %s0 = inlined_call_operand.vmem [shape: f32[32], index: 0, kind: input, shape index: {}]
  %s1 = inlined_call_operand.vmem [shape: f32[4,32], index: 1, kind: output, shape index: {}]
  // Predicated region
  $region2: #{tile.53} parent=0 // pred_check
    _
  $region3: #{tile.53} parent=0 // pred_check_branch
    %3 = sbr.rel (0) target = $region5
  $region4: #{tile.53} parent=0 // pred_region
    _
  $region5: #{tile.53} parent=0 // pred_fallthru
    _
  %v4 = vld [vmem:[%s0] ss:$0 sm:$0xff]
  %5 = vst [vmem:[%s1] sm:$0xf] %v4

// kernel: tile.58
$region0: #{tile.58}
  %s0 = inlined_call_operand.vmem [shape: f32[4,32], index: 0, kind: input, shape index: {}]
  %s1 = inlined_call_operand.hbm [shape: f32[1,128], index: 1, kind: output, shape index: {}]
  $region1: #{tile.58} parent=0
    #allocation0 [shape = 'u8[512]{0}', space=vmem, size = 0x400, scoped, tag = 'operand span for operand 1']
    #allocation1 [shape = 's32[1]{0}', space=sflag, size = 0x4, scoped, tag = 'scoped memory for tile.58']
    #allocation2 [shape = 'u8[4096]{0}', space=vmem, size = 0x1000, scoped, tag = 'scoped mem for output reshape']
    #allocation3 [shape = 'u8[4096]{0}', space=vmem, size = 0x1000, scoped, tag = 'scoped mem for input reshape']
    %2 = vsyncpa [#allocation1], 0
    %s4 = sshllo.u32 0, 4
    %v5 = vld [vmem:[%s0] sm:%s4]
    %6 = vst [vmem:[#allocation3] sm:%s4] %v5
    %v7 = vld [vmem:[#allocation3] sm:$0x1]
    %vm8 = vcmask 261120
    %9 = vst.msk [vmem:[#allocation2] sm:$0x1] %vm8, %v7
    %s10 = scalar_lea.vmem [#allocation3], 3
    %v11 = vld [vmem:[%s10] sm:$0x1]
    %12 = vrot.lane.b32.xlu0 %v11, 96
    %v13 = vpop.permute.xlu0 %12
    %vm14 = vcmask 1048320
    %15 = vst.msk [vmem:[#allocation2] sm:$0x1] %vm14, %v13
    %s16 = scalar_lea.vmem [#allocation3], 2
    %v17 = vld [vmem:[%s16] sm:$0x1]
    %18 = vrot.lane.b32.xlu0 %v17, 64
    %v19 = vpop.permute.xlu0 %18
    %vm20 = vcmask 785920
    %21 = vst.msk [vmem:[#allocation2] sm:$0x1] %vm20, %v19
    %s22 = scalar_lea.vmem [#allocation3], 1
    %v23 = vld [vmem:[%s22] sm:$0x1]
    %24 = vrot.lane.b32.xlu0 %v23, 32
    %v25 = vpop.permute.xlu0 %24
    %vm26 = vcmask 523520
    %27 = vst.msk [vmem:[#allocation2] sm:$0x1] %vm26, %v25
    %s29 = sshllo.u32 0, 1
    %v31 = vld [vmem:[#allocation2] sm:%s29]
    %s32 = sshllo.u32 0, 1
    %33 = vst [vmem:[#allocation0] sm:%s32] %v31
    %s35 = ssub.s32 16, 16
    %36 = vsyncadd [#allocation1], %s35
    %s38 = sshll.u32 [#allocation0], 4
    %s39 = int_to_ptr.vmem [resolvable:$true] %s38
    %41 = dma.vmem_to_hbm [thread:$0]  %s39, 16, %s1, [#allocation1]
    %42 = dma.done [#allocation1], 16
    %43 = vsyncpa [#allocation1], 1

// kernel: dcgan_generator_forward.11
$region0: #{dcgan_generator_forward.11}
  #allocation0 [shape = 'u32[]', space=smem, size = 0x4, offset = 0x4, fixed_abs, tag = 'smem constant byte address 0x4 - core index']
  #allocation1 [shape = 'u32[144,128]{1,0:T(1,128)}', space=vmem, size = 0x12000, scoped, tag = 'internal scratch']
  %s0 = inlined_call_operand.hbm [shape: bf16[32,576], index: 0, kind: input, shape index: {}]
  %s1 = inlined_call_operand.hbm [shape: bf16[576,128], index: 1, kind: input, shape index: {}]
  %s2 = inlined_call_operand.hbm [shape: f32[32,128], index: 2, kind: output, shape index: {0}]
  %s3 = inlined_call_operand.hbm [shape: f32[16,128], index: 3, kind: output, shape index: {1}]
  %4 = xla_tuple %s2, %s3
  %s5 = sld [smem:[#allocation0]]
  $region57: #{dcgan_generator_forward.11} parent=0
    _
  %s7 = ssub.s32 1, %s5
  %s8 = scalar_select 0, %s7, %s5
  $region1: #{dcgan_generator_forward.11} parent=0
    #allocation2 [shape = 'u8[40960]{0}', space=vmem, size = 0xa000, scoped, tag = 'input window, operand 0']
    #allocation3 [shape = 's32[2]{0}', space=sflag, size = 0x8, scoped, tag = 'scoped memory for dcgan_generator_forward.11']
    #allocation4 [shape = 's32[2]{0}', space=sflag, size = 0x8, scoped, tag = 'scoped memory for dcgan_generator_forward.11']
    #allocation5 [shape = 'u8[147456]{0}', space=vmem, size = 0x24000, scoped, tag = 'input window, operand 1, single buffered']
    #allocation6 [shape = 's32[1]{0}', space=sflag, size = 0x4, scoped, tag = 'scoped memory for dcgan_generator_forward.11']
    #allocation7 [shape = 'u8[16384]{0}', space=vmem, size = 0x4000, scoped, tag = 'output window, operand 0']
    #allocation8 [shape = 'u8[8192]{0}', space=vmem, size = 0x2000, scoped, tag = 'output window, operand 1']
    #allocation9 [shape = 's32[2]{0}', space=sflag, size = 0x8, scoped, tag = 'scoped memory for dcgan_generator_forward.11']
    %9 = vsyncpa [#allocation3], 0
    %s10 = scalar_lea.sflag [#allocation3], 1
    %11 = vsyncpa %s10, 0
    %12 = vsyncpa [#allocation6], 0
    %13 = vsyncpa [#allocation4], 0
    %s14 = scalar_lea.sflag [#allocation4], 1
    %15 = vsyncpa %s14, 0
    %16 = vsyncpa [#allocation9], 0
    %s17 = scalar_lea.sflag [#allocation9], 1
    %18 = vsyncpa %s17, 0
    loop: start=0, step=1, limit=4
    $region2: #{dcgan_generator_forward.11} parent=1 // loop_pre_header
      _
    $region3: #{dcgan_generator_forward.11} parent=1 // loop_header
      %s20 = sphi 0, %s24
      %p21 = scmp.ge.s32.totalorder %s20, 4
      %s30 = sphi 0, %s32
      %s33 = sphi 0, %s30
      %s34 = sphi 0, %s33
      %s50 = sphi 0, %s34
      %s54 = sphi 0, %s54
      %s56 = sphi 0, %s54
      %s57 = sphi 0, %s56
      %s71 = sphi 0, %s57
      %s77 = sphi 0, %s79
      %s80 = sphi 0, %s77
      %s81 = sphi 0, %s80
      %s97 = sphi 0, %s81
      %s103 = sphi 0, %s105
      %s106 = sphi 0, %s103
      %s107 = sphi 0, %s106
      %s123 = sphi 0, %s107
    $region4: #{dcgan_generator_forward.11} parent=1 // loop_header_branch
      %23 = sbr.rel (%p21) target = $region8
    $region5: #{dcgan_generator_forward.11} parent=1 // loop_body
      %s25 = ssub.s32 %s20, 1
      %s26 = ssub.s32 %s20, 2
      %s27 = sadd.s32 %s20, 1
      %s28 = ssub.s32 %s20, %s27
      %p29 = scmp.eq.s32.totalorder %s28, 0
      %s31 = sadd.s32 %s30, 1
      %s32 = scalar_select %p29, %s30, %s31
      %p35 = pneg %p29
      %p36 = scmp.eq.s32.totalorder %s20, 1
      %p37 = por %p35, %p36
      %p38 = scmp.ne.s32.totalorder %s30, %s33
      %p39 = scmp.eq.s32.totalorder %s20, 0
      %p40 = por %p38, %p39
      %p41 = scmp.ne.s32.totalorder %s30, %s33
      %p42 = scmp.eq.s32.totalorder %s25, 1
      %p43 = por %p41, %p42
      %p44 = scmp.ne.s32.totalorder %s33, %s34
      %p45 = scmp.eq.s32.totalorder %s25, 0
      %p46 = por %p44, %p45
      %p47 = scmp.ne.s32.totalorder %s33, %s34
      %p48 = scmp.eq.s32.totalorder %s26, 1
      %p49 = por %p47, %p48
      %p51 = scmp.ne.s32.totalorder %s34, %s50
      %p52 = scmp.eq.s32.totalorder %s26, 0
      %p53 = por %p51, %p52
      %s55 = sadd.s32 %s54, 1
      %p58 = scmp.eq.s32.totalorder %s20, 1
      %p59 = scmp.ne.s32.totalorder %s54, %s56
      %p60 = scmp.eq.s32.totalorder %s20, 0
      %p61 = por %p59, %p60
      %p62 = scmp.ne.s32.totalorder %s54, %s56
      %p63 = scmp.eq.s32.totalorder %s25, 1
      %p64 = por %p62, %p63
      %p65 = scmp.ne.s32.totalorder %s56, %s57
      %p66 = scmp.eq.s32.totalorder %s25, 0
      %p67 = por %p65, %p66
      %p68 = scmp.ne.s32.totalorder %s56, %s57
      %p69 = scmp.eq.s32.totalorder %s26, 1
      %p70 = por %p68, %p69
      %p72 = scmp.ne.s32.totalorder %s57, %s71
      %p73 = scmp.eq.s32.totalorder %s26, 0
      %p74 = por %p72, %p73
      %s75 = ssub.s32 %s20, %s27
      %p76 = scmp.eq.s32.totalorder %s75, 0
      %s78 = sadd.s32 %s77, 1
      %s79 = scalar_select %p76, %s77, %s78
      %p82 = pneg %p76
      %p83 = scmp.eq.s32.totalorder %s20, 1
      %p84 = por %p82, %p83
      %p85 = scmp.ne.s32.totalorder %s77, %s80
      %p86 = scmp.eq.s32.totalorder %s20, 0
      %p87 = por %p85, %p86
      %p88 = scmp.ne.s32.totalorder %s77, %s80
      %p89 = scmp.eq.s32.totalorder %s25, 1
      %p90 = por %p88, %p89
      %p91 = scmp.ne.s32.totalorder %s80, %s81
      %p92 = scmp.eq.s32.totalorder %s25, 0
      %p93 = por %p91, %p92
      %p94 = scmp.ne.s32.totalorder %s80, %s81
      %p95 = scmp.eq.s32.totalorder %s26, 1
      %p96 = por %p94, %p95
      %p98 = scmp.ne.s32.totalorder %s81, %s97
      %p99 = scmp.eq.s32.totalorder %s26, 0
      %p100 = por %p98, %p99
      %s101 = ssub.s32 %s20, %s27
      %p102 = scmp.eq.s32.totalorder %s101, 0
      %s104 = sadd.s32 %s103, 1
      %s105 = scalar_select %p102, %s103, %s104
      %p108 = pneg %p102
      %p109 = scmp.eq.s32.totalorder %s20, 1
      %p110 = por %p108, %p109
      %p111 = scmp.ne.s32.totalorder %s103, %s106
      %p112 = scmp.eq.s32.totalorder %s20, 0
      %p113 = por %p111, %p112
      %p114 = scmp.ne.s32.totalorder %s103, %s106
      %p115 = scmp.eq.s32.totalorder %s25, 1
      %p116 = por %p114, %p115
      %p117 = scmp.ne.s32.totalorder %s106, %s107
      %p118 = scmp.eq.s32.totalorder %s25, 0
      %p119 = por %p117, %p118
      %p120 = scmp.ne.s32.totalorder %s106, %s107
      %p121 = scmp.eq.s32.totalorder %s26, 1
      %p122 = por %p120, %p121
      %p124 = scmp.ne.s32.totalorder %s107, %s123
      %p125 = scmp.eq.s32.totalorder %s26, 0
      %p126 = por %p124, %p125
      %p127 = scmp.le.s32.totalorder 1, %s20
      %p128 = scmp.lt.s32.totalorder %s20, 3
      %p129 = pnand %p127, %p128
      %p130 = pneg %p129
      // Predicated region
      $region9: #{dcgan_generator_forward.11} parent=5 // pred_check
        _
      $region10: #{dcgan_generator_forward.11} parent=5 // pred_check_branch
        %132 = sbr.rel (%p129) target = $region12
      $region11: #{dcgan_generator_forward.11} parent=5 // pred_region
        %s133 = ssub.s32 %s20, 1
        // Predicated region
        $region13: #{dcgan_generator_forward.11} parent=11 // pred_check
          %p134 = pneg %p67
        $region14: #{dcgan_generator_forward.11} parent=11 // pred_check_branch
          %136 = sbr.rel (%p134) target = $region16
        $region15: #{dcgan_generator_forward.11} parent=11 // pred_region
          %s138 = ssub.s32 4608, 4608
          %139 = vsyncadd [#allocation6], %s138
          %s140 = sshll.u32 [#allocation5], 4
          %s141 = int_to_ptr.vmem [resolvable:$true] %s140
          %146 = dma.hbm_to_vmem [thread:$0]  %s1, 4608, %s141, [#allocation6], 64, 64, 4
        $region16: #{dcgan_generator_forward.11} parent=11 // pred_fallthru
          _
      $region12: #{dcgan_generator_forward.11} parent=5 // pred_fallthru
        _
      %p147 = scmp.lt.s32.totalorder %s20, 2
      // Predicated region
      $region17: #{dcgan_generator_forward.11} parent=5 // pred_check
        %p148 = pneg %p147
      $region18: #{dcgan_generator_forward.11} parent=5 // pred_check_branch
        %150 = sbr.rel (%p148) target = $region20
      $region19: #{dcgan_generator_forward.11} parent=5 // pred_region
        // Predicated region
        $region21: #{dcgan_generator_forward.11} parent=19 // pred_check
          %p151 = pneg %p40
        $region22: #{dcgan_generator_forward.11} parent=19 // pred_check_branch
          %153 = sbr.rel (%p151) target = $region24
        $region23: #{dcgan_generator_forward.11} parent=19 // pred_region
          %s154 = sand.u32 %s30, 1
          %s155 = scalar_lea.sflag [#allocation3], %s154
          %s156 = sand.u32 %s30, 1
          %s157 = smul.addr %s156, 40
          %s158 = scalar_lea.vmem [#allocation2], %s157
          %s159 = smul.u32 2, %s20
          %s161 = ssub.s32 640, 640
          %162 = vsyncadd %s155, %s161
          %s163 = smul.addr %s159, 5
          %s164 = smul.addr %s163, 64
          %s165 = scalar_lea.hbm %s0, %s164
          %s166 = sshll.u32 %s158, 4
          %s167 = int_to_ptr.vmem [resolvable:$true] %s166
          %172 = dma.hbm_to_vmem [thread:$0]  %s165, 640, %s167, %s155, 320, 320, 20
        $region24: #{dcgan_generator_forward.11} parent=19 // pred_fallthru
          _
      $region20: #{dcgan_generator_forward.11} parent=5 // pred_fallthru
        _
      %p173 = scmp.le.s32.totalorder 1, %s20
      %p174 = scmp.lt.s32.totalorder %s20, 3
      %p175 = pnand %p173, %p174
      %p176 = pneg %p175
      // Predicated region
      $region25: #{dcgan_generator_forward.11} parent=5 // pred_check
        _
      $region26: #{dcgan_generator_forward.11} parent=5 // pred_check_branch
        %178 = sbr.rel (%p175) target = $region28
      $region27: #{dcgan_generator_forward.11} parent=5 // pred_region
        %s179 = ssub.s32 %s20, 1
        %s180 = sand.u32 %s33, 1
        %s181 = scalar_lea.sflag [#allocation3], %s180
        %s182 = sand.u32 %s33, 1
        %s183 = smul.addr %s182, 40
        %s184 = scalar_lea.vmem [#allocation2], %s183
        // Predicated region
        $region29: #{dcgan_generator_forward.11} parent=27 // pred_check
          %p185 = pneg %p46
        $region30: #{dcgan_generator_forward.11} parent=27 // pred_check_branch
          %187 = sbr.rel (%p185) target = $region32
        $region31: #{dcgan_generator_forward.11} parent=27 // pred_region
          %188 = dma.done %s181, 640
        $region32: #{dcgan_generator_forward.11} parent=27 // pred_fallthru
          _
        // Predicated region
        $region33: #{dcgan_generator_forward.11} parent=27 // pred_check
          %p189 = pneg %p67
        $region34: #{dcgan_generator_forward.11} parent=27 // pred_check_branch
          %191 = sbr.rel (%p189) target = $region36
        $region35: #{dcgan_generator_forward.11} parent=27 // pred_region
          %192 = dma.done [#allocation6], 4608
        $region36: #{dcgan_generator_forward.11} parent=27 // pred_fallthru
          _
        %s193 = sand.u32 %s33, 1
        %s194 = scalar_lea.sflag [#allocation3], %s193
        %s195 = sand.u32 %s33, 1
        %s196 = smul.addr %s195, 40
        %s197 = scalar_lea.vmem [#allocation2], %s196
        %p198 = pneg %p46
        %p199 = pneg %p43
        %p200 = pneg %p67
        %p201 = pneg %p64
        %p202 = pneg %p93
        %p203 = pneg %p90
        %s204 = sand.u32 %s80, 1
        %s205 = scalar_lea.sflag [#allocation4], %s204
        %s206 = sand.u32 %s80, 1
        %s207 = smul.addr %s206, 16
        %s208 = scalar_lea.vmem [#allocation7], %s207
        %p209 = pneg %p119
        %p210 = pneg %p116
        %s211 = sand.u32 %s106, 1
        %s212 = scalar_lea.sflag [#allocation9], %s211
        %s213 = sand.u32 %s106, 1
        %s214 = smul.addr %s213, 8
        %s215 = scalar_lea.vmem [#allocation8], %s214
        %s216 = smul.u32 2, %s25
        %s217 = smul.u32 2, %s25
        %v219 = vld [vmem:[%s184] sm:$0xff]
        %v220 = vld [vmem:[%s184 + $0x8] sm:$0xff]
        %v221 = vld [vmem:[%s184 + $0x10] sm:$0xf]
        %v222 = vld [vmem:[%s184 + $0x14] sm:$0xff]
        %v223 = vld [vmem:[%s184 + $0x1c] sm:$0xff]
        %v224 = vld [vmem:[%s184 + $0x24] sm:$0xf]
        %v225 = vld [vmem:[#allocation5] sm:$0xf]
        %v226 = vld [vmem:[#allocation5 + $0x4] sm:$0xf]
        %v227 = vld [vmem:[#allocation5 + $0x8] sm:$0xf]
        %v228 = vld [vmem:[#allocation5 + $0xc] sm:$0xf]
        %v229 = vld [vmem:[#allocation5 + $0x10] sm:$0xf]
        %v230 = vld [vmem:[#allocation5 + $0x14] sm:$0xf]
        %v231 = vld [vmem:[#allocation5 + $0x18] sm:$0xf]
        %v232 = vld [vmem:[#allocation5 + $0x1c] sm:$0xf]
        %v233 = vld [vmem:[#allocation5 + $0x20] sm:$0xf]
        %v234 = vld [vmem:[#allocation5 + $0x24] sm:$0xf]
        %v235 = vld [vmem:[#allocation5 + $0x28] sm:$0xf]
        %v236 = vld [vmem:[#allocation5 + $0x2c] sm:$0xf]
        %v237 = vld [vmem:[#allocation5 + $0x30] sm:$0xf]
        %v238 = vld [vmem:[#allocation5 + $0x34] sm:$0xf]
        %v239 = vld [vmem:[#allocation5 + $0x38] sm:$0xf]
        %v240 = vld [vmem:[#allocation5 + $0x3c] sm:$0xf]
        %v241 = vld [vmem:[#allocation5 + $0x40] sm:$0xf]
        %v242 = vld [vmem:[#allocation5 + $0x44] sm:$0xf]
        %v243 = vld [vmem:[#allocation5 + $0x48] sm:$0xf]
        %v244 = vld [vmem:[#allocation5 + $0x4c] sm:$0xf]
        %v245 = vld [vmem:[#allocation5 + $0x50] sm:$0xf]
        %v246 = vld [vmem:[#allocation5 + $0x54] sm:$0xf]
        %v247 = vld [vmem:[#allocation5 + $0x58] sm:$0xf]
        %v248 = vld [vmem:[#allocation5 + $0x5c] sm:$0xf]
        %v249 = vld [vmem:[#allocation5 + $0x60] sm:$0xf]
        %v250 = vld [vmem:[#allocation5 + $0x64] sm:$0xf]
        %v251 = vld [vmem:[#allocation5 + $0x68] sm:$0xf]
        %v252 = vld [vmem:[#allocation5 + $0x6c] sm:$0xf]
        %v253 = vld [vmem:[#allocation5 + $0x70] sm:$0xf]
        %v254 = vld [vmem:[#allocation5 + $0x74] sm:$0xf]
        %v255 = vld [vmem:[#allocation5 + $0x78] sm:$0xf]
        %v256 = vld [vmem:[#allocation5 + $0x7c] sm:$0xf]
        %v257 = vld [vmem:[#allocation5 + $0x80] sm:$0xf]
        %v258 = vld [vmem:[#allocation5 + $0x84] sm:$0xf]
        %v259 = vld [vmem:[#allocation5 + $0x88] sm:$0xf]
        %v260 = vld [vmem:[#allocation5 + $0x8c] sm:$0xf]
        %v261 = vld [vmem:[#allocation5 + $0x90] sm:$0xf]
        %v262 = vld [vmem:[#allocation5 + $0x94] sm:$0xf]
        %v263 = vld [vmem:[#allocation5 + $0x98] sm:$0xf]
        %v264 = vld [vmem:[#allocation5 + $0x9c] sm:$0xf]
        %v265 = vld [vmem:[#allocation5 + $0xa0] sm:$0xf]
        %v266 = vld [vmem:[#allocation5 + $0xa4] sm:$0xf]
        %v267 = vld [vmem:[#allocation5 + $0xa8] sm:$0xf]
        %v268 = vld [vmem:[#allocation5 + $0xac] sm:$0xf]
        %v269 = vld [vmem:[#allocation5 + $0xb0] sm:$0xf]
        %v270 = vld [vmem:[#allocation5 + $0xb4] sm:$0xf]
        %v271 = vld [vmem:[#allocation5 + $0xb8] sm:$0xf]
        %v272 = vld [vmem:[#allocation5 + $0xbc] sm:$0xf]
        %v273 = vld [vmem:[#allocation5 + $0xc0] sm:$0xf]
        %v274 = vld [vmem:[#allocation5 + $0xc4] sm:$0xf]
        %v275 = vld [vmem:[#allocation5 + $0xc8] sm:$0xf]
        %v276 = vld [vmem:[#allocation5 + $0xcc] sm:$0xf]
        %v277 = vld [vmem:[#allocation5 + $0xd0] sm:$0xf]
        %v278 = vld [vmem:[#allocation5 + $0xd4] sm:$0xf]
        %v279 = vld [vmem:[#allocation5 + $0xd8] sm:$0xf]
        %v280 = vld [vmem:[#allocation5 + $0xdc] sm:$0xf]
        %v281 = vld [vmem:[#allocation5 + $0xe0] sm:$0xf]
        %v282 = vld [vmem:[#allocation5 + $0xe4] sm:$0xf]
        %v283 = vld [vmem:[#allocation5 + $0xe8] sm:$0xf]
        %v284 = vld [vmem:[#allocation5 + $0xec] sm:$0xf]
        %v285 = vld [vmem:[#allocation5 + $0xf0] sm:$0xf]
        %v286 = vld [vmem:[#allocation5 + $0xf4] sm:$0xf]
        %v287 = vld [vmem:[#allocation5 + $0xf8] sm:$0xf]
        %v288 = vld [vmem:[#allocation5 + $0xfc] sm:$0xf]
        %v289 = vld [vmem:[#allocation5 + $0x100] sm:$0xf]
        %v290 = vld [vmem:[#allocation5 + $0x104] sm:$0xf]
        %v291 = vld [vmem:[#allocation5 + $0x108] sm:$0xf]
        %v292 = vld [vmem:[#allocation5 + $0x10c] sm:$0xf]
        %v293 = vld [vmem:[#allocation5 + $0x110] sm:$0xf]
        %v294 = vld [vmem:[#allocation5 + $0x114] sm:$0xf]
        %v295 = vld [vmem:[#allocation5 + $0x118] sm:$0xf]
        %v296 = vld [vmem:[#allocation5 + $0x11c] sm:$0xf]
        %v303 = vunpack.c.l.b16 %v219
        %v304 = vunpack.c.h.b16 %v219
        %v305 = vunpack.c.l.b16 %v220
        %v306 = vunpack.c.h.b16 %v220
        %v307 = vunpack.c.l.b16 %v221
        %v308 = vunpack.c.l.b16 %v222
        %v309 = vunpack.c.h.b16 %v222
        %v310 = vunpack.c.l.b16 %v223
        %v311 = vunpack.c.h.b16 %v223
        %v312 = vunpack.c.l.b16 %v224
        %v313 = vpack.c.b16 %v308, %v303
        %v314 = vpack.c.b16 %v309, %v304
        %v315 = vpack.c.b16 %v310, %v305
        %v316 = vpack.c.b16 %v311, %v306
        %v317 = vpack.c.b16 %v312, %v307
        %v394 = vunpack.c.l.b16 %v225
        %v395 = vunpack.c.l.b16 %v226
        %v396 = vunpack.c.l.b16 %v227
        %v397 = vunpack.c.l.b16 %v228
        %v398 = vunpack.c.l.b16 %v229
        %v399 = vunpack.c.l.b16 %v230
        %v400 = vunpack.c.l.b16 %v231
        %v401 = vunpack.c.l.b16 %v232
        %v402 = vunpack.c.l.b16 %v233
        %v403 = vunpack.c.l.b16 %v234
        %v404 = vunpack.c.l.b16 %v235
        %v405 = vunpack.c.l.b16 %v236
        %v406 = vunpack.c.l.b16 %v237
        %v407 = vunpack.c.l.b16 %v238
        %v408 = vunpack.c.l.b16 %v239
        %v409 = vunpack.c.l.b16 %v240
        %v410 = vunpack.c.l.b16 %v241
        %v411 = vunpack.c.l.b16 %v242
        %v412 = vunpack.c.l.b16 %v243
        %v413 = vunpack.c.l.b16 %v244
        %v414 = vunpack.c.l.b16 %v245
        %v415 = vunpack.c.l.b16 %v246
        %v416 = vunpack.c.l.b16 %v247
        %v417 = vunpack.c.l.b16 %v248
        %v418 = vunpack.c.l.b16 %v249
        %v419 = vunpack.c.l.b16 %v250
        %v420 = vunpack.c.l.b16 %v251
        %v421 = vunpack.c.l.b16 %v252
        %v422 = vunpack.c.l.b16 %v253
        %v423 = vunpack.c.l.b16 %v254
        %v424 = vunpack.c.l.b16 %v255
        %v425 = vunpack.c.l.b16 %v256
        %v426 = vunpack.c.l.b16 %v257
        %v427 = vunpack.c.l.b16 %v258
        %v428 = vunpack.c.l.b16 %v259
        %v429 = vunpack.c.l.b16 %v260
        %v430 = vunpack.c.l.b16 %v261
        %v431 = vunpack.c.l.b16 %v262
        %v432 = vunpack.c.l.b16 %v263
        %v433 = vunpack.c.l.b16 %v264
        %v434 = vunpack.c.l.b16 %v265
        %v435 = vunpack.c.l.b16 %v266
        %v436 = vunpack.c.l.b16 %v267
        %v437 = vunpack.c.l.b16 %v268
        %v438 = vunpack.c.l.b16 %v269
        %v439 = vunpack.c.l.b16 %v270
        %v440 = vunpack.c.l.b16 %v271
        %v441 = vunpack.c.l.b16 %v272
        %v442 = vunpack.c.l.b16 %v273
        %v443 = vunpack.c.l.b16 %v274
        %v444 = vunpack.c.l.b16 %v275
        %v445 = vunpack.c.l.b16 %v276
        %v446 = vunpack.c.l.b16 %v277
        %v447 = vunpack.c.l.b16 %v278
        %v448 = vunpack.c.l.b16 %v279
        %v449 = vunpack.c.l.b16 %v280
        %v450 = vunpack.c.l.b16 %v281
        %v451 = vunpack.c.l.b16 %v282
        %v452 = vunpack.c.l.b16 %v283
        %v453 = vunpack.c.l.b16 %v284
        %v454 = vunpack.c.l.b16 %v285
        %v455 = vunpack.c.l.b16 %v286
        %v456 = vunpack.c.l.b16 %v287
        %v457 = vunpack.c.l.b16 %v288
        %v458 = vunpack.c.l.b16 %v289
        %v459 = vunpack.c.l.b16 %v290
        %v460 = vunpack.c.l.b16 %v291
        %v461 = vunpack.c.l.b16 %v292
        %v462 = vunpack.c.l.b16 %v293
        %v463 = vunpack.c.l.b16 %v294
        %v464 = vunpack.c.l.b16 %v295
        %v465 = vunpack.c.l.b16 %v296
        %v466 = vpack.c.b16 %v395, %v394
        %v467 = vpack.c.b16 %v397, %v396
        %v468 = vpack.c.b16 %v399, %v398
        %v469 = vpack.c.b16 %v401, %v400
        %v470 = vpack.c.b16 %v403, %v402
        %v471 = vpack.c.b16 %v405, %v404
        %v472 = vpack.c.b16 %v407, %v406
        %v473 = vpack.c.b16 %v409, %v408
        %v474 = vpack.c.b16 %v411, %v410
        %v475 = vpack.c.b16 %v413, %v412
        %v476 = vpack.c.b16 %v415, %v414
        %v477 = vpack.c.b16 %v417, %v416
        %v478 = vpack.c.b16 %v419, %v418
        %v479 = vpack.c.b16 %v421, %v420
        %v480 = vpack.c.b16 %v423, %v422
        %v481 = vpack.c.b16 %v425, %v424
        %v482 = vpack.c.b16 %v427, %v426
        %v483 = vpack.c.b16 %v429, %v428
        %v484 = vpack.c.b16 %v431, %v430
        %v485 = vpack.c.b16 %v433, %v432
        %v486 = vpack.c.b16 %v435, %v434
        %v487 = vpack.c.b16 %v437, %v436
        %v488 = vpack.c.b16 %v439, %v438
        %v489 = vpack.c.b16 %v441, %v440
        %v490 = vpack.c.b16 %v443, %v442
        %v491 = vpack.c.b16 %v445, %v444
        %v492 = vpack.c.b16 %v447, %v446
        %v493 = vpack.c.b16 %v449, %v448
        %v494 = vpack.c.b16 %v451, %v450
        %v495 = vpack.c.b16 %v453, %v452
        %v496 = vpack.c.b16 %v455, %v454
        %v497 = vpack.c.b16 %v457, %v456
        %v498 = vpack.c.b16 %v459, %v458
        %v499 = vpack.c.b16 %v461, %v460
        %v500 = vpack.c.b16 %v463, %v462
        %v501 = vpack.c.b16 %v465, %v464
        %vm538 = vcmask 523264
        %v540 = vsel %vm538, %v317, 0
        %542 = vmatprep.subr.bf16.mxu0 0
        %543 = vmatpush1.bf16.msra.mxu0 %v466
        %544 = vmatprep.subr.bf16.mxu0 0
        %545 = vmatpush1.bf16.msra.mxu0 %v467
        %546 = vmatprep.subr.bf16.mxu0 0
        %547 = vmatpush1.bf16.msra.mxu0 %v468
        %548 = vmatprep.subr.bf16.mxu0 0
        %549 = vmatpush1.bf16.msra.mxu0 %v469
        %550 = vmatprep.subr.bf16.mxu0 0
        %551 = vmatpush1.bf16.msra.mxu0 %v470
        %552 = vmatprep.subr.bf16.mxu0 0
        %553 = vmatpush1.bf16.msra.mxu0 %v471
        %554 = vmatprep.subr.bf16.mxu0 0
        %555 = vmatpush1.bf16.msra.mxu0 %v472
        %556 = vmatprep.subr.bf16.mxu0 0
        %557 = vmatpush1.bf16.msra.mxu0 %v473
        %558 = vmatprep.subr.bf16.mxu0 0
        %559 = vmatpush1.bf16.msra.mxu0 %v474
        %560 = vmatprep.subr.bf16.mxu0 0
        %561 = vmatpush1.bf16.msra.mxu0 %v475
        %562 = vmatprep.subr.bf16.mxu0 0
        %563 = vmatpush1.bf16.msra.mxu0 %v476
        %564 = vmatprep.subr.bf16.mxu0 0
        %565 = vmatpush1.bf16.msra.mxu0 %v477
        %566 = vmatprep.subr.bf16.mxu0 0
        %567 = vmatpush1.bf16.msra.mxu0 %v478
        %568 = vmatprep.subr.bf16.mxu0 0
        %569 = vmatpush1.bf16.msra.mxu0 %v479
        %570 = vmatprep.subr.bf16.mxu0 0
        %571 = vmatpush1.bf16.msra.mxu0 %v480
        %572 = vmatprep.subr.bf16.mxu0 0
        %573 = vmatpush1.bf16.msra.mxu0 %v481
        %574 = vmatprep.mubr.bf16.mxu0 %v314
        %575 = vmatmul.mubr.bf16.gmra.mrb[0].mxu0 %v313
        %v576 = vpop.f32.mrb[0].mxu0
        %v577 = vadd.f32 0.0, %v576
        %v578 = vpop.f32.mrb[0].mxu0
        %v579 = vpop.f32.mrb[0].mxu0
        %v580 = vadd.f32 0.0, %v579
        %v581 = vpop.f32.mrb[0].mxu0
        %582 = vdwg.mxu0
        %583 = vmatprep.subr.bf16.mxu0 0
        %584 = vmatpush1.bf16.msra.mxu0 %v482
        %585 = vmatprep.subr.bf16.mxu0 0
        %586 = vmatpush1.bf16.msra.mxu0 %v483
        %587 = vmatprep.subr.bf16.mxu0 0
        %588 = vmatpush1.bf16.msra.mxu0 %v484
        %589 = vmatprep.subr.bf16.mxu0 0
        %590 = vmatpush1.bf16.msra.mxu0 %v485
        %591 = vmatprep.subr.bf16.mxu0 0
        %592 = vmatpush1.bf16.msra.mxu0 %v486
        %593 = vmatprep.subr.bf16.mxu0 0
        %594 = vmatpush1.bf16.msra.mxu0 %v487
        %595 = vmatprep.subr.bf16.mxu0 0
        %596 = vmatpush1.bf16.msra.mxu0 %v488
        %597 = vmatprep.subr.bf16.mxu0 0
        %598 = vmatpush1.bf16.msra.mxu0 %v489
        %599 = vmatprep.subr.bf16.mxu0 0
        %600 = vmatpush1.bf16.msra.mxu0 %v490
        %601 = vmatprep.subr.bf16.mxu0 0
        %602 = vmatpush1.bf16.msra.mxu0 %v491
        %603 = vmatprep.subr.bf16.mxu0 0
        %604 = vmatpush1.bf16.msra.mxu0 %v492
        %605 = vmatprep.subr.bf16.mxu0 0
        %606 = vmatpush1.bf16.msra.mxu0 %v493
        %607 = vmatprep.subr.bf16.mxu0 0
        %608 = vmatpush1.bf16.msra.mxu0 %v494
        %609 = vmatprep.subr.bf16.mxu0 0
        %610 = vmatpush1.bf16.msra.mxu0 %v495
        %611 = vmatprep.subr.bf16.mxu0 0
        %612 = vmatpush1.bf16.msra.mxu0 %v496
        %613 = vmatprep.subr.bf16.mxu0 0
        %614 = vmatpush1.bf16.msra.mxu0 %v497
        %615 = vmatprep.mubr.bf16.mxu0 %v316
        %616 = vmatmul.mubr.bf16.gmra.mrb[0].mxu0 %v315
        %v617 = vpop.f32.mrb[0].mxu0
        %v618 = vadd.f32 %v577, %v617
        %v619 = vpop.f32.mrb[0].mxu0
        %v620 = vpop.f32.mrb[0].mxu0
        %v621 = vadd.f32 %v580, %v620
        %v622 = vpop.f32.mrb[0].mxu0
        %623 = vdwg.mxu0
        %624 = vmatprep.subr.bf16.mxu0 0
        %625 = vmatpush1.bf16.msra.mxu0 %v498
        %626 = vmatprep.subr.bf16.mxu0 0
        %627 = vmatpush1.bf16.msra.mxu0 %v499
        %628 = vmatprep.subr.bf16.mxu0 0
        %629 = vmatpush1.bf16.msra.mxu0 %v500
        %630 = vmatprep.subr.bf16.mxu0 0
        %631 = vmatpush1.bf16.msra.mxu0 %v501
        %632 = vmatprep.subr.bf16.mxu0 0
        %633 = vmatpush1.bf16.msra.mxu0 0
        %634 = vmatprep.subr.bf16.mxu0 0
        %635 = vmatpush1.bf16.msra.mxu0 0
        %636 = vmatprep.subr.bf16.mxu0 0
        %637 = vmatpush1.bf16.msra.mxu0 0
        %638 = vmatprep.subr.bf16.mxu0 0
        %639 = vmatpush1.bf16.msra.mxu0 0
        %640 = vmatprep.subr.bf16.mxu0 0
        %641 = vmatpush1.bf16.msra.mxu0 0
        %642 = vmatprep.subr.bf16.mxu0 0
        %643 = vmatpush1.bf16.msra.mxu0 0
        %644 = vmatprep.subr.bf16.mxu0 0
        %645 = vmatpush1.bf16.msra.mxu0 0
        %646 = vmatprep.subr.bf16.mxu0 0
        %647 = vmatpush1.bf16.msra.mxu0 0
        %648 = vmatprep.subr.bf16.mxu0 0
        %649 = vmatpush1.bf16.msra.mxu0 0
        %650 = vmatprep.subr.bf16.mxu0 0
        %651 = vmatpush1.bf16.msra.mxu0 0
        %652 = vmatprep.subr.bf16.mxu0 0
        %653 = vmatpush1.bf16.msra.mxu0 0
        %654 = vmatprep.subr.bf16.mxu0 0
        %655 = vmatpush1.bf16.msra.mxu0 0
        %656 = vmatprep.mubr.bf16.mxu0 0
        %657 = vmatmul.mubr.bf16.gmra.mrb[0].mxu0 %v540
        %v658 = vpop.f32.mrb[0].mxu0
        %v659 = vadd.f32 %v618, %v658
        %v660 = vpop.f32.mrb[0].mxu0
        %v661 = vpop.f32.mrb[0].mxu0
        %v662 = vadd.f32 %v621, %v661
        %v663 = vpop.f32.mrb[0].mxu0
        %664 = vdwg.mxu0
        %v665 = vadd.f32 %v659, %v662
        %v666 = vrot.slane %v665, 4
        %v667 = vadd.f32 %v665, %v666
        %v668 = vrot.slane %v667, 2
        %v669 = vadd.f32 %v667, %v668
        %v670 = vrot.slane %v669, 1
        %v671 = vadd.f32 %v669, %v670
        %v672 = vmul.f32 %v659, %v659
        %v673 = vmul.f32 %v662, %v662
        %v674 = vadd.f32 %v672, %v673
        %v675 = vrot.slane %v674, 4
        %v676 = vadd.f32 %v674, %v675
        %v677 = vrot.slane %v676, 2
        %v678 = vadd.f32 %v676, %v677
        %v679 = vrot.slane %v678, 1
        %v680 = vadd.f32 %v678, %v679
        %vm681 = vcmask 1040384
        %v682 = vsel %vm681, %v671, %v680
        %vm683 = vcmask 1041408
        %v684 = vsel %vm683, %v682, 0.0
        %685 = vst [vmem:[%s215] sm:$0xff] %v684
        %686 = vst [vmem:[%s208] sm:$0xff] %v659
        %687 = vst [vmem:[%s208 + $0x8] sm:$0xff] %v662
        %s688 = sand.u32 %s80, 1
        %s689 = scalar_lea.sflag [#allocation4], %s688
        %s690 = sand.u32 %s80, 1
        %s691 = smul.addr %s690, 16
        %s692 = scalar_lea.vmem [#allocation7], %s691
        %s693 = sand.u32 %s106, 1
        %s694 = scalar_lea.sflag [#allocation9], %s693
        %s695 = sand.u32 %s106, 1
        %s696 = smul.addr %s695, 8
        %s697 = scalar_lea.vmem [#allocation8], %s696
        // Predicated region
        $region37: #{dcgan_generator_forward.11} parent=27 // pred_check
          %p698 = pneg %p90
        $region38: #{dcgan_generator_forward.11} parent=27 // pred_check_branch
          %700 = sbr.rel (%p698) target = $region40
        $region39: #{dcgan_generator_forward.11} parent=27 // pred_region
          %s701 = smul.u32 2, %s25
          %s703 = ssub.s32 256, 256
          %704 = vsyncadd %s689, %s703
          %s705 = smul.addr %s701, 128
          %s706 = scalar_lea.hbm %s2, %s705
          %s707 = sshll.u32 %s692, 4
          %s708 = int_to_ptr.vmem [resolvable:$true] %s707
          %713 = dma.vmem_to_hbm [thread:$0]  %s708, 256, %s706, %s689, 128, 128, 8
        $region40: #{dcgan_generator_forward.11} parent=27 // pred_fallthru
          _
        // Predicated region
        $region41: #{dcgan_generator_forward.11} parent=27 // pred_check
          %p714 = pneg %p116
        $region42: #{dcgan_generator_forward.11} parent=27 // pred_check_branch
          %716 = sbr.rel (%p714) target = $region44
        $region43: #{dcgan_generator_forward.11} parent=27 // pred_region
          %s718 = ssub.s32 128, 128
          %719 = vsyncadd %s694, %s718
          %s720 = smul.addr %s25, 128
          %s721 = scalar_lea.hbm %s3, %s720
          %s723 = sshll.u32 %s697, 4
          %s724 = int_to_ptr.vmem [resolvable:$true] %s723
          %726 = dma.vmem_to_hbm [thread:$0]  %s724, 128, %s721, %s694
        $region44: #{dcgan_generator_forward.11} parent=27 // pred_fallthru
          _
      $region28: #{dcgan_generator_forward.11} parent=5 // pred_fallthru
        _
      %p727 = scmp.le.s32.totalorder 2, %s20
      // Predicated region
      $region45: #{dcgan_generator_forward.11} parent=5 // pred_check
        %p728 = pneg %p727
      $region46: #{dcgan_generator_forward.11} parent=5 // pred_check_branch
        %730 = sbr.rel (%p728) target = $region48
      $region47: #{dcgan_generator_forward.11} parent=5 // pred_region
        %s731 = ssub.s32 %s20, 2
        // Predicated region
        $region49: #{dcgan_generator_forward.11} parent=47 // pred_check
          %p732 = pneg %p96
        $region50: #{dcgan_generator_forward.11} parent=47 // pred_check_branch
          %734 = sbr.rel (%p732) target = $region52
        $region51: #{dcgan_generator_forward.11} parent=47 // pred_region
          %s735 = sand.u32 %s81, 1
          %s736 = scalar_lea.sflag [#allocation4], %s735
          %s737 = sand.u32 %s81, 1
          %s738 = smul.addr %s737, 16
          %s739 = scalar_lea.vmem [#allocation7], %s738
          %740 = dma.done %s736, 256
        $region52: #{dcgan_generator_forward.11} parent=47 // pred_fallthru
          _
        // Predicated region
        $region53: #{dcgan_generator_forward.11} parent=47 // pred_check
          %p741 = pneg %p122
        $region54: #{dcgan_generator_forward.11} parent=47 // pred_check_branch
          %743 = sbr.rel (%p741) target = $region56
        $region55: #{dcgan_generator_forward.11} parent=47 // pred_region
          %s744 = sand.u32 %s107, 1
          %s745 = scalar_lea.sflag [#allocation9], %s744
          %s746 = sand.u32 %s107, 1
          %s747 = smul.addr %s746, 8
          %s748 = scalar_lea.vmem [#allocation8], %s747
          %749 = dma.done %s745, 128
        $region56: #{dcgan_generator_forward.11} parent=47 // pred_fallthru
          _
      $region48: #{dcgan_generator_forward.11} parent=5 // pred_fallthru
        _
    $region6: #{dcgan_generator_forward.11} parent=1 // loop_footer
      %s24 = sadd.s32 1, %s20
    $region7: #{dcgan_generator_forward.11} parent=1 // loop_footer_branch
      %19 = sbr.rel target = $region3
    $region8: #{dcgan_generator_forward.11} parent=1 // loop_exit
      _
    %750 = vsyncpa [#allocation3], 1
    %s751 = scalar_lea.sflag [#allocation3], 1
    %752 = vsyncpa %s751, 1
    %753 = vsyncpa [#allocation6], 1
    %754 = vsyncpa [#allocation4], 1
    %s755 = scalar_lea.sflag [#allocation4], 1
    %756 = vsyncpa %s755, 1
    %757 = vsyncpa [#allocation9], 1
    %s758 = scalar_lea.sflag [#allocation9], 1
    %759 = vsyncpa %s758, 1

// kernel: dcgan_generator_forward.12
$region0: #{dcgan_generator_forward.12}
  #allocation0 [shape = 'u32[]', space=smem, size = 0x4, offset = 0x4, fixed_abs, tag = 'smem constant byte address 0x4 - core index']
  #allocation1 [shape = 'u32[144,128]{1,0:T(1,128)}', space=vmem, size = 0x12000, scoped, tag = 'internal scratch']
  %s0 = inlined_call_operand.hbm [shape: f32[32,128], index: 0, kind: input, shape index: {}]
  %s1 = inlined_call_operand.hbm [shape: f32[1,128], index: 1, kind: input, shape index: {}]
  %s2 = inlined_call_operand.hbm [shape: f32[1,128], index: 2, kind: input, shape index: {}]
  %s3 = inlined_call_operand.hbm [shape: bf16[32,128], index: 3, kind: output, shape index: {}]
  %s4 = sld [smem:[#allocation0]]
  $region57: #{dcgan_generator_forward.12} parent=0
    _
  %s6 = ssub.s32 1, %s4
  %s7 = scalar_select 0, %s6, %s4
  $region1: #{dcgan_generator_forward.12} parent=0
    #allocation2 [shape = 'u8[16384]{0}', space=vmem, size = 0x4000, scoped, tag = 'input window, operand 0']
    #allocation3 [shape = 's32[2]{0}', space=sflag, size = 0x8, scoped, tag = 'scoped memory for dcgan_generator_forward.12']
    #allocation4 [shape = 's32[2]{0}', space=sflag, size = 0x8, scoped, tag = 'scoped memory for dcgan_generator_forward.12']
    #allocation5 [shape = 'u8[512]{0}', space=vmem, size = 0x400, scoped, tag = 'input window, operand 1, single buffered']
    #allocation6 [shape = 's32[1]{0}', space=sflag, size = 0x4, scoped, tag = 'scoped memory for dcgan_generator_forward.12']
    #allocation7 [shape = 'u8[512]{0}', space=vmem, size = 0x400, scoped, tag = 'input window, operand 2, single buffered']
    #allocation8 [shape = 'u8[8192]{0}', space=vmem, size = 0x2000, scoped, tag = 'output window, operand 0']
    %8 = vsyncpa [#allocation3], 0
    %s9 = scalar_lea.sflag [#allocation3], 1
    %10 = vsyncpa %s9, 0
    %11 = vsyncpa [#allocation6], 0
    %12 = vsyncpa [#allocation4], 0
    %s13 = scalar_lea.sflag [#allocation4], 1
    %14 = vsyncpa %s13, 0
    loop: start=0, step=1, limit=4
    $region2: #{dcgan_generator_forward.12} parent=1 // loop_pre_header
      _
    $region3: #{dcgan_generator_forward.12} parent=1 // loop_header
      %s16 = sphi 0, %s20
      %p17 = scmp.ge.s32.totalorder %s16, 4
      %s26 = sphi 0, %s28
      %s29 = sphi 0, %s26
      %s30 = sphi 0, %s29
      %s46 = sphi 0, %s30
      %s50 = sphi 0, %s50
      %s52 = sphi 0, %s50
      %s53 = sphi 0, %s52
      %s67 = sphi 0, %s53
      %s71 = sphi 0, %s71
      %s73 = sphi 0, %s71
      %s74 = sphi 0, %s73
      %s88 = sphi 0, %s74
      %s94 = sphi 0, %s96
      %s97 = sphi 0, %s94
      %s98 = sphi 0, %s97
      %s114 = sphi 0, %s98
    $region4: #{dcgan_generator_forward.12} parent=1 // loop_header_branch
      %19 = sbr.rel (%p17) target = $region8
    $region5: #{dcgan_generator_forward.12} parent=1 // loop_body
      %s21 = ssub.s32 %s16, 1
      %s22 = ssub.s32 %s16, 2
      %s23 = sadd.s32 %s16, 1
      %s24 = ssub.s32 %s16, %s23
      %p25 = scmp.eq.s32.totalorder %s24, 0
      %s27 = sadd.s32 %s26, 1
      %s28 = scalar_select %p25, %s26, %s27
      %p31 = pneg %p25
      %p32 = scmp.eq.s32.totalorder %s16, 1
      %p33 = por %p31, %p32
      %p34 = scmp.ne.s32.totalorder %s26, %s29
      %p35 = scmp.eq.s32.totalorder %s16, 0
      %p36 = por %p34, %p35
      %p37 = scmp.ne.s32.totalorder %s26, %s29
      %p38 = scmp.eq.s32.totalorder %s21, 1
      %p39 = por %p37, %p38
      %p40 = scmp.ne.s32.totalorder %s29, %s30
      %p41 = scmp.eq.s32.totalorder %s21, 0
      %p42 = por %p40, %p41
      %p43 = scmp.ne.s32.totalorder %s29, %s30
      %p44 = scmp.eq.s32.totalorder %s22, 1
      %p45 = por %p43, %p44
      %p47 = scmp.ne.s32.totalorder %s30, %s46
      %p48 = scmp.eq.s32.totalorder %s22, 0
      %p49 = por %p47, %p48
      %s51 = sadd.s32 %s50, 1
      %p54 = scmp.eq.s32.totalorder %s16, 1
      %p55 = scmp.ne.s32.totalorder %s50, %s52
      %p56 = scmp.eq.s32.totalorder %s16, 0
      %p57 = por %p55, %p56
      %p58 = scmp.ne.s32.totalorder %s50, %s52
      %p59 = scmp.eq.s32.totalorder %s21, 1
      %p60 = por %p58, %p59
      %p61 = scmp.ne.s32.totalorder %s52, %s53
      %p62 = scmp.eq.s32.totalorder %s21, 0
      %p63 = por %p61, %p62
      %p64 = scmp.ne.s32.totalorder %s52, %s53
      %p65 = scmp.eq.s32.totalorder %s22, 1
      %p66 = por %p64, %p65
      %p68 = scmp.ne.s32.totalorder %s53, %s67
      %p69 = scmp.eq.s32.totalorder %s22, 0
      %p70 = por %p68, %p69
      %s72 = sadd.s32 %s71, 1
      %p75 = scmp.eq.s32.totalorder %s16, 1
      %p76 = scmp.ne.s32.totalorder %s71, %s73
      %p77 = scmp.eq.s32.totalorder %s16, 0
      %p78 = por %p76, %p77
      %p79 = scmp.ne.s32.totalorder %s71, %s73
      %p80 = scmp.eq.s32.totalorder %s21, 1
      %p81 = por %p79, %p80
      %p82 = scmp.ne.s32.totalorder %s73, %s74
      %p83 = scmp.eq.s32.totalorder %s21, 0
      %p84 = por %p82, %p83
      %p85 = scmp.ne.s32.totalorder %s73, %s74
      %p86 = scmp.eq.s32.totalorder %s22, 1
      %p87 = por %p85, %p86
      %p89 = scmp.ne.s32.totalorder %s74, %s88
      %p90 = scmp.eq.s32.totalorder %s22, 0
      %p91 = por %p89, %p90
      %s92 = ssub.s32 %s16, %s23
      %p93 = scmp.eq.s32.totalorder %s92, 0
      %s95 = sadd.s32 %s94, 1
      %s96 = scalar_select %p93, %s94, %s95
      %p99 = pneg %p93
      %p100 = scmp.eq.s32.totalorder %s16, 1
      %p101 = por %p99, %p100
      %p102 = scmp.ne.s32.totalorder %s94, %s97
      %p103 = scmp.eq.s32.totalorder %s16, 0
      %p104 = por %p102, %p103
      %p105 = scmp.ne.s32.totalorder %s94, %s97
      %p106 = scmp.eq.s32.totalorder %s21, 1
      %p107 = por %p105, %p106
      %p108 = scmp.ne.s32.totalorder %s97, %s98
      %p109 = scmp.eq.s32.totalorder %s21, 0
      %p110 = por %p108, %p109
      %p111 = scmp.ne.s32.totalorder %s97, %s98
      %p112 = scmp.eq.s32.totalorder %s22, 1
      %p113 = por %p111, %p112
      %p115 = scmp.ne.s32.totalorder %s98, %s114
      %p116 = scmp.eq.s32.totalorder %s22, 0
      %p117 = por %p115, %p116
      %p118 = scmp.le.s32.totalorder 1, %s16
      %p119 = scmp.lt.s32.totalorder %s16, 3
      %p120 = pnand %p118, %p119
      %p121 = pneg %p120
      // Predicated region
      $region9: #{dcgan_generator_forward.12} parent=5 // pred_check
        _
      $region10: #{dcgan_generator_forward.12} parent=5 // pred_check_branch
        %123 = sbr.rel (%p120) target = $region12
      $region11: #{dcgan_generator_forward.12} parent=5 // pred_region
        %s124 = ssub.s32 %s16, 1
        // Predicated region
        $region13: #{dcgan_generator_forward.12} parent=11 // pred_check
          %p125 = pneg %p63
        $region14: #{dcgan_generator_forward.12} parent=11 // pred_check_branch
          %127 = sbr.rel (%p125) target = $region16
        $region15: #{dcgan_generator_forward.12} parent=11 // pred_region
          %s129 = ssub.s32 16, 16
          %130 = vsyncadd [#allocation6], %s129
          %s132 = sshll.u32 [#allocation5], 4
          %s133 = int_to_ptr.vmem [resolvable:$true] %s132
          %135 = dma.hbm_to_vmem [thread:$0]  %s1, 16, %s133, [#allocation6]
        $region16: #{dcgan_generator_forward.12} parent=11 // pred_fallthru
          _
        // Predicated region
        $region17: #{dcgan_generator_forward.12} parent=11 // pred_check
          %p136 = pneg %p84
        $region18: #{dcgan_generator_forward.12} parent=11 // pred_check_branch
          %138 = sbr.rel (%p136) target = $region20
        $region19: #{dcgan_generator_forward.12} parent=11 // pred_region
          %s140 = ssub.s32 16, 16
          %141 = vsyncadd [#allocation6], %s140
          %s143 = sshll.u32 [#allocation7], 4
          %s144 = int_to_ptr.vmem [resolvable:$true] %s143
          %146 = dma.hbm_to_vmem [thread:$0]  %s2, 16, %s144, [#allocation6]
        $region20: #{dcgan_generator_forward.12} parent=11 // pred_fallthru
          _
      $region12: #{dcgan_generator_forward.12} parent=5 // pred_fallthru
        _
      %p147 = scmp.lt.s32.totalorder %s16, 2
      // Predicated region
      $region21: #{dcgan_generator_forward.12} parent=5 // pred_check
        %p148 = pneg %p147
      $region22: #{dcgan_generator_forward.12} parent=5 // pred_check_branch
        %150 = sbr.rel (%p148) target = $region24
      $region23: #{dcgan_generator_forward.12} parent=5 // pred_region
        // Predicated region
        $region25: #{dcgan_generator_forward.12} parent=23 // pred_check
          %p151 = pneg %p36
        $region26: #{dcgan_generator_forward.12} parent=23 // pred_check_branch
          %153 = sbr.rel (%p151) target = $region28
        $region27: #{dcgan_generator_forward.12} parent=23 // pred_region
          %s154 = sand.u32 %s26, 1
          %s155 = scalar_lea.sflag [#allocation3], %s154
          %s156 = sand.u32 %s26, 1
          %s157 = smul.addr %s156, 16
          %s158 = scalar_lea.vmem [#allocation2], %s157
          %s159 = smul.u32 2, %s16
          %s161 = ssub.s32 256, 256
          %162 = vsyncadd %s155, %s161
          %s163 = smul.addr %s159, 128
          %s164 = scalar_lea.hbm %s0, %s163
          %s165 = sshll.u32 %s158, 4
          %s166 = int_to_ptr.vmem [resolvable:$true] %s165
          %171 = dma.hbm_to_vmem [thread:$0]  %s164, 256, %s166, %s155, 128, 128, 8
        $region28: #{dcgan_generator_forward.12} parent=23 // pred_fallthru
          _
      $region24: #{dcgan_generator_forward.12} parent=5 // pred_fallthru
        _
      %p172 = scmp.le.s32.totalorder 1, %s16
      %p173 = scmp.lt.s32.totalorder %s16, 3
      %p174 = pnand %p172, %p173
      %p175 = pneg %p174
      // Predicated region
      $region29: #{dcgan_generator_forward.12} parent=5 // pred_check
        _
      $region30: #{dcgan_generator_forward.12} parent=5 // pred_check_branch
        %177 = sbr.rel (%p174) target = $region32
      $region31: #{dcgan_generator_forward.12} parent=5 // pred_region
        %s178 = ssub.s32 %s16, 1
        %s179 = sand.u32 %s29, 1
        %s180 = scalar_lea.sflag [#allocation3], %s179
        %s181 = sand.u32 %s29, 1
        %s182 = smul.addr %s181, 16
        %s183 = scalar_lea.vmem [#allocation2], %s182
        // Predicated region
        $region33: #{dcgan_generator_forward.12} parent=31 // pred_check
          %p184 = pneg %p42
        $region34: #{dcgan_generator_forward.12} parent=31 // pred_check_branch
          %186 = sbr.rel (%p184) target = $region36
        $region35: #{dcgan_generator_forward.12} parent=31 // pred_region
          %187 = dma.done %s180, 256
        $region36: #{dcgan_generator_forward.12} parent=31 // pred_fallthru
          _
        // Predicated region
        $region37: #{dcgan_generator_forward.12} parent=31 // pred_check
          %p188 = pneg %p63
        $region38: #{dcgan_generator_forward.12} parent=31 // pred_check_branch
          %190 = sbr.rel (%p188) target = $region40
        $region39: #{dcgan_generator_forward.12} parent=31 // pred_region
          %191 = dma.done [#allocation6], 16
        $region40: #{dcgan_generator_forward.12} parent=31 // pred_fallthru
          _
        // Predicated region
        $region41: #{dcgan_generator_forward.12} parent=31 // pred_check
          %p192 = pneg %p84
        $region42: #{dcgan_generator_forward.12} parent=31 // pred_check_branch
          %194 = sbr.rel (%p192) target = $region44
        $region43: #{dcgan_generator_forward.12} parent=31 // pred_region
          %195 = dma.done [#allocation6], 16
        $region44: #{dcgan_generator_forward.12} parent=31 // pred_fallthru
          _
        %s196 = sand.u32 %s29, 1
        %s197 = scalar_lea.sflag [#allocation3], %s196
        %s198 = sand.u32 %s29, 1
        %s199 = smul.addr %s198, 16
        %s200 = scalar_lea.vmem [#allocation2], %s199
        %p201 = pneg %p42
        %p202 = pneg %p39
        %p203 = pneg %p63
        %p204 = pneg %p60
        %p205 = pneg %p84
        %p206 = pneg %p81
        %p207 = pneg %p110
        %p208 = pneg %p107
        %s209 = sand.u32 %s97, 1
        %s210 = scalar_lea.sflag [#allocation4], %s209
        %s211 = sand.u32 %s97, 1
        %s212 = smul.addr %s211, 8
        %s213 = scalar_lea.vmem [#allocation8], %s212
        %s214 = smul.u32 2, %s21
        %s215 = smul.u32 2, %s21
        %v216 = vld [vmem:[%s183] sm:$0xff]
        %v217 = vld [vmem:[%s183 + $0x8] sm:$0xff]
        %v218 = vld [vmem:[#allocation5] sm:$0x1]
        %v220 = vlaneseq
        %v221 = vshrl.u32 %v220, 7
        %v222 = vsub.s32 0, %v221
        %v223 = vrot.slane %v218, %v222
        %v225 = vmul.f32 %v216, %v223
        %v226 = vmul.f32 %v217, %v223
        %v227 = vld [vmem:[#allocation7] sm:$0x1]
        %v229 = vlaneseq
        %v230 = vshrl.u32 %v229, 7
        %v231 = vsub.s32 0, %v230
        %v232 = vrot.slane %v227, %v231
        %v234 = vadd.f32 %v225, %v232
        %v235 = vadd.f32 %v226, %v232
        %v236 = vmax.f32 %v234, 0.0
        %v237 = vmax.f32 %v235, 0.0
        %v238 = vpack.c.bf16 %v237, %v236
        %v240 = vunpack.c.l.b16 %v238
        %v241 = vunpack.c.h.b16 %v238
        %v242 = vpack.c.b16 %v240, %v240
        %v243 = vpack.c.b16 %v241, %v241
        %246 = vst [vmem:[%s213] sm:$0xf] %v242
        %247 = vst [vmem:[%s213 + $0x4] sm:$0xf] %v243
        %s248 = sand.u32 %s97, 1
        %s249 = scalar_lea.sflag [#allocation4], %s248
        %s250 = sand.u32 %s97, 1
        %s251 = smul.addr %s250, 8
        %s252 = scalar_lea.vmem [#allocation8], %s251
        // Predicated region
        $region45: #{dcgan_generator_forward.12} parent=31 // pred_check
          %p253 = pneg %p107
        $region46: #{dcgan_generator_forward.12} parent=31 // pred_check_branch
          %255 = sbr.rel (%p253) target = $region48
        $region47: #{dcgan_generator_forward.12} parent=31 // pred_region
          %s256 = smul.u32 2, %s21
          %s258 = ssub.s32 128, 128
          %259 = vsyncadd %s249, %s258
          %s260 = smul.addr %s256, 64
          %s261 = scalar_lea.hbm %s3, %s260
          %s262 = sshll.u32 %s252, 4
          %s263 = int_to_ptr.vmem [resolvable:$true] %s262
          %268 = dma.vmem_to_hbm [thread:$0]  %s263, 128, %s261, %s249, 64, 64, 4
        $region48: #{dcgan_generator_forward.12} parent=31 // pred_fallthru
          _
      $region32: #{dcgan_generator_forward.12} parent=5 // pred_fallthru
        _
      %p269 = scmp.le.s32.totalorder 2, %s16
      // Predicated region
      $region49: #{dcgan_generator_forward.12} parent=5 // pred_check
        %p270 = pneg %p269
      $region50: #{dcgan_generator_forward.12} parent=5 // pred_check_branch
        %272 = sbr.rel (%p270) target = $region52
      $region51: #{dcgan_generator_forward.12} parent=5 // pred_region
        %s273 = ssub.s32 %s16, 2
        // Predicated region
        $region53: #{dcgan_generator_forward.12} parent=51 // pred_check
          %p274 = pneg %p113
        $region54: #{dcgan_generator_forward.12} parent=51 // pred_check_branch
          %276 = sbr.rel (%p274) target = $region56
        $region55: #{dcgan_generator_forward.12} parent=51 // pred_region
          %s277 = sand.u32 %s98, 1
          %s278 = scalar_lea.sflag [#allocation4], %s277
          %s279 = sand.u32 %s98, 1
          %s280 = smul.addr %s279, 8
          %s281 = scalar_lea.vmem [#allocation8], %s280
          %282 = dma.done %s278, 128
        $region56: #{dcgan_generator_forward.12} parent=51 // pred_fallthru
          _
      $region52: #{dcgan_generator_forward.12} parent=5 // pred_fallthru
        _
    $region6: #{dcgan_generator_forward.12} parent=1 // loop_footer
      %s20 = sadd.s32 1, %s16
    $region7: #{dcgan_generator_forward.12} parent=1 // loop_footer_branch
      %15 = sbr.rel target = $region3
    $region8: #{dcgan_generator_forward.12} parent=1 // loop_exit
      _
    %283 = vsyncpa [#allocation3], 1
    %s284 = scalar_lea.sflag [#allocation3], 1
    %285 = vsyncpa %s284, 1
    %286 = vsyncpa [#allocation6], 1
    %287 = vsyncpa [#allocation4], 1
    %s288 = scalar_lea.sflag [#allocation4], 1
    %289 = vsyncpa %s288, 1

// kernel: tile.63
$region0: #{tile.63}
  #allocation0 [shape = 's32[1]{0}', space=sflag, size = 0x4, scoped, tag = 'scoped memory for tile.63']
  %s0 = inlined_call_operand.vmem [shape: f32[16], index: 0, kind: input, shape index: {}]
  %s1 = inlined_call_operand.vmem [shape: f32[4,16], index: 1, kind: output, shape index: {}]
  // Predicated region
  $region2: #{tile.63} parent=0 // pred_check
    _
  $region3: #{tile.63} parent=0 // pred_check_branch
    %3 = sbr.rel (0) target = $region5
  $region4: #{tile.63} parent=0 // pred_region
    _
  $region5: #{tile.63} parent=0 // pred_fallthru
    _
  %v4 = vld [vmem:[%s0] ss:$0 sm:$0xff]
  %5 = vst [vmem:[%s1] sm:$0xf] %v4

// kernel: tile.68
$region0: #{tile.68}
  %s0 = inlined_call_operand.vmem [shape: f32[4,16], index: 0, kind: input, shape index: {}]
  %s1 = inlined_call_operand.hbm [shape: f32[1,64], index: 1, kind: output, shape index: {}]
  $region1: #{tile.68} parent=0
    #allocation0 [shape = 'u8[512]{0}', space=vmem, size = 0x400, scoped, tag = 'operand span for operand 1']
    #allocation1 [shape = 's32[1]{0}', space=sflag, size = 0x4, scoped, tag = 'scoped memory for tile.68']
    #allocation2 [shape = 'u8[4096]{0}', space=vmem, size = 0x1000, scoped, tag = 'scoped mem for output reshape']
    #allocation3 [shape = 'u8[4096]{0}', space=vmem, size = 0x1000, scoped, tag = 'scoped mem for input reshape']
    %2 = vsyncpa [#allocation1], 0
    %s4 = sshllo.u32 0, 4
    %v5 = vld [vmem:[%s0] sm:%s4]
    %6 = vst [vmem:[#allocation3] sm:%s4] %v5
    %v7 = vld [vmem:[#allocation3] sm:$0x1]
    %vm8 = vcmask 130048
    %9 = vst.msk [vmem:[#allocation2] sm:$0x1] %vm8, %v7
    %s10 = scalar_lea.vmem [#allocation3], 3
    %v11 = vld [vmem:[%s10] sm:$0x1]
    %12 = vrot.lane.b32.xlu0 %v11, 48
    %v13 = vpop.permute.xlu0 %12
    %vm14 = vcmask 523648
    %15 = vst.msk [vmem:[#allocation2] sm:$0x1] %vm14, %v13
    %s16 = scalar_lea.vmem [#allocation3], 2
    %v17 = vld [vmem:[%s16] sm:$0x1]
    %18 = vrot.lane.b32.xlu0 %v17, 32
    %v19 = vpop.permute.xlu0 %18
    %vm20 = vcmask 392448
    %21 = vst.msk [vmem:[#allocation2] sm:$0x1] %vm20, %v19
    %s22 = scalar_lea.vmem [#allocation3], 1
    %v23 = vld [vmem:[%s22] sm:$0x1]
    %24 = vrot.lane.b32.xlu0 %v23, 16
    %v25 = vpop.permute.xlu0 %24
    %vm26 = vcmask 261248
    %27 = vst.msk [vmem:[#allocation2] sm:$0x1] %vm26, %v25
    %s29 = sshllo.u32 0, 1
    %v31 = vld [vmem:[#allocation2] sm:%s29]
    %s32 = sshllo.u32 0, 1
    %33 = vst [vmem:[#allocation0] sm:%s32] %v31
    %s35 = ssub.s32 16, 16
    %36 = vsyncadd [#allocation1], %s35
    %s38 = sshll.u32 [#allocation0], 4
    %s39 = int_to_ptr.vmem [resolvable:$true] %s38
    %41 = dma.vmem_to_hbm [thread:$0]  %s39, 16, %s1, [#allocation1]
    %42 = dma.done [#allocation1], 16
    %43 = vsyncpa [#allocation1], 1

// kernel: dcgan_generator_forward.13
$region0: #{dcgan_generator_forward.13}
  #allocation0 [shape = 'u32[]', space=smem, size = 0x4, offset = 0x4, fixed_abs, tag = 'smem constant byte address 0x4 - core index']
  #allocation1 [shape = 'u32[144,128]{1,0:T(1,128)}', space=vmem, size = 0x12000, scoped, tag = 'internal scratch']
  %s0 = inlined_call_operand.hbm [shape: bf16[128,288], index: 0, kind: input, shape index: {}]
  %s1 = inlined_call_operand.hbm [shape: bf16[288,64], index: 1, kind: input, shape index: {}]
  %s2 = inlined_call_operand.hbm [shape: f32[128,64], index: 2, kind: output, shape index: {0}]
  %s3 = inlined_call_operand.hbm [shape: f32[16,64], index: 3, kind: output, shape index: {1}]
  %4 = xla_tuple %s2, %s3
  %s5 = sld [smem:[#allocation0]]
  $region57: #{dcgan_generator_forward.13} parent=0
    _
  %s7 = ssub.s32 1, %s5
  %s8 = scalar_select 0, %s7, %s5
  $region1: #{dcgan_generator_forward.13} parent=0
    #allocation2 [shape = 'u8[98304]{0}', space=vmem, size = 0x18000, scoped, tag = 'input window, operand 0']
    #allocation3 [shape = 's32[2]{0}', space=sflag, size = 0x8, scoped, tag = 'scoped memory for dcgan_generator_forward.13']
    #allocation4 [shape = 's32[2]{0}', space=sflag, size = 0x8, scoped, tag = 'scoped memory for dcgan_generator_forward.13']
    #allocation5 [shape = 'u8[73728]{0}', space=vmem, size = 0x12000, scoped, tag = 'input window, operand 1, single buffered']
    #allocation6 [shape = 's32[1]{0}', space=sflag, size = 0x4, scoped, tag = 'scoped memory for dcgan_generator_forward.13']
    #allocation7 [shape = 'u8[65536]{0}', space=vmem, size = 0x10000, scoped, tag = 'output window, operand 0']
    #allocation8 [shape = 'u8[8192]{0}', space=vmem, size = 0x2000, scoped, tag = 'output window, operand 1']
    #allocation9 [shape = 's32[2]{0}', space=sflag, size = 0x8, scoped, tag = 'scoped memory for dcgan_generator_forward.13']
    %9 = vsyncpa [#allocation3], 0
    %s10 = scalar_lea.sflag [#allocation3], 1
    %11 = vsyncpa %s10, 0
    %12 = vsyncpa [#allocation6], 0
    %13 = vsyncpa [#allocation4], 0
    %s14 = scalar_lea.sflag [#allocation4], 1
    %15 = vsyncpa %s14, 0
    %16 = vsyncpa [#allocation9], 0
    %s17 = scalar_lea.sflag [#allocation9], 1
    %18 = vsyncpa %s17, 0
    loop: start=0, step=1, limit=4
    $region2: #{dcgan_generator_forward.13} parent=1 // loop_pre_header
      _
    $region3: #{dcgan_generator_forward.13} parent=1 // loop_header
      %s20 = sphi 0, %s24
      %p21 = scmp.ge.s32.totalorder %s20, 4
      %s30 = sphi 0, %s32
      %s33 = sphi 0, %s30
      %s34 = sphi 0, %s33
      %s50 = sphi 0, %s34
      %s54 = sphi 0, %s54
      %s56 = sphi 0, %s54
      %s57 = sphi 0, %s56
      %s71 = sphi 0, %s57
      %s77 = sphi 0, %s79
      %s80 = sphi 0, %s77
      %s81 = sphi 0, %s80
      %s97 = sphi 0, %s81
      %s103 = sphi 0, %s105
      %s106 = sphi 0, %s103
      %s107 = sphi 0, %s106
      %s123 = sphi 0, %s107
    $region4: #{dcgan_generator_forward.13} parent=1 // loop_header_branch
      %23 = sbr.rel (%p21) target = $region8
    $region5: #{dcgan_generator_forward.13} parent=1 // loop_body
      %s25 = ssub.s32 %s20, 1
      %s26 = ssub.s32 %s20, 2
      %s27 = sadd.s32 %s20, 1
      %s28 = ssub.s32 %s20, %s27
      %p29 = scmp.eq.s32.totalorder %s28, 0
      %s31 = sadd.s32 %s30, 1
      %s32 = scalar_select %p29, %s30, %s31
      %p35 = pneg %p29
      %p36 = scmp.eq.s32.totalorder %s20, 1
      %p37 = por %p35, %p36
      %p38 = scmp.ne.s32.totalorder %s30, %s33
      %p39 = scmp.eq.s32.totalorder %s20, 0
      %p40 = por %p38, %p39
      %p41 = scmp.ne.s32.totalorder %s30, %s33
      %p42 = scmp.eq.s32.totalorder %s25, 1
      %p43 = por %p41, %p42
      %p44 = scmp.ne.s32.totalorder %s33, %s34
      %p45 = scmp.eq.s32.totalorder %s25, 0
      %p46 = por %p44, %p45
      %p47 = scmp.ne.s32.totalorder %s33, %s34
      %p48 = scmp.eq.s32.totalorder %s26, 1
      %p49 = por %p47, %p48
      %p51 = scmp.ne.s32.totalorder %s34, %s50
      %p52 = scmp.eq.s32.totalorder %s26, 0
      %p53 = por %p51, %p52
      %s55 = sadd.s32 %s54, 1
      %p58 = scmp.eq.s32.totalorder %s20, 1
      %p59 = scmp.ne.s32.totalorder %s54, %s56
      %p60 = scmp.eq.s32.totalorder %s20, 0
      %p61 = por %p59, %p60
      %p62 = scmp.ne.s32.totalorder %s54, %s56
      %p63 = scmp.eq.s32.totalorder %s25, 1
      %p64 = por %p62, %p63
      %p65 = scmp.ne.s32.totalorder %s56, %s57
      %p66 = scmp.eq.s32.totalorder %s25, 0
      %p67 = por %p65, %p66
      %p68 = scmp.ne.s32.totalorder %s56, %s57
      %p69 = scmp.eq.s32.totalorder %s26, 1
      %p70 = por %p68, %p69
      %p72 = scmp.ne.s32.totalorder %s57, %s71
      %p73 = scmp.eq.s32.totalorder %s26, 0
      %p74 = por %p72, %p73
      %s75 = ssub.s32 %s20, %s27
      %p76 = scmp.eq.s32.totalorder %s75, 0
      %s78 = sadd.s32 %s77, 1
      %s79 = scalar_select %p76, %s77, %s78
      %p82 = pneg %p76
      %p83 = scmp.eq.s32.totalorder %s20, 1
      %p84 = por %p82, %p83
      %p85 = scmp.ne.s32.totalorder %s77, %s80
      %p86 = scmp.eq.s32.totalorder %s20, 0
      %p87 = por %p85, %p86
      %p88 = scmp.ne.s32.totalorder %s77, %s80
      %p89 = scmp.eq.s32.totalorder %s25, 1
      %p90 = por %p88, %p89
      %p91 = scmp.ne.s32.totalorder %s80, %s81
      %p92 = scmp.eq.s32.totalorder %s25, 0
      %p93 = por %p91, %p92
      %p94 = scmp.ne.s32.totalorder %s80, %s81
      %p95 = scmp.eq.s32.totalorder %s26, 1
      %p96 = por %p94, %p95
      %p98 = scmp.ne.s32.totalorder %s81, %s97
      %p99 = scmp.eq.s32.totalorder %s26, 0
      %p100 = por %p98, %p99
      %s101 = ssub.s32 %s20, %s27
      %p102 = scmp.eq.s32.totalorder %s101, 0
      %s104 = sadd.s32 %s103, 1
      %s105 = scalar_select %p102, %s103, %s104
      %p108 = pneg %p102
      %p109 = scmp.eq.s32.totalorder %s20, 1
      %p110 = por %p108, %p109
      %p111 = scmp.ne.s32.totalorder %s103, %s106
      %p112 = scmp.eq.s32.totalorder %s20, 0
      %p113 = por %p111, %p112
      %p114 = scmp.ne.s32.totalorder %s103, %s106
      %p115 = scmp.eq.s32.totalorder %s25, 1
      %p116 = por %p114, %p115
      %p117 = scmp.ne.s32.totalorder %s106, %s107
      %p118 = scmp.eq.s32.totalorder %s25, 0
      %p119 = por %p117, %p118
      %p120 = scmp.ne.s32.totalorder %s106, %s107
      %p121 = scmp.eq.s32.totalorder %s26, 1
      %p122 = por %p120, %p121
      %p124 = scmp.ne.s32.totalorder %s107, %s123
      %p125 = scmp.eq.s32.totalorder %s26, 0
      %p126 = por %p124, %p125
      %p127 = scmp.le.s32.totalorder 1, %s20
      %p128 = scmp.lt.s32.totalorder %s20, 3
      %p129 = pnand %p127, %p128
      %p130 = pneg %p129
      // Predicated region
      $region9: #{dcgan_generator_forward.13} parent=5 // pred_check
        _
      $region10: #{dcgan_generator_forward.13} parent=5 // pred_check_branch
        %132 = sbr.rel (%p129) target = $region12
      $region11: #{dcgan_generator_forward.13} parent=5 // pred_region
        %s133 = ssub.s32 %s20, 1
        // Predicated region
        $region13: #{dcgan_generator_forward.13} parent=11 // pred_check
          %p134 = pneg %p67
        $region14: #{dcgan_generator_forward.13} parent=11 // pred_check_branch
          %136 = sbr.rel (%p134) target = $region16
        $region15: #{dcgan_generator_forward.13} parent=11 // pred_region
          %s138 = ssub.s32 2304, 2304
          %139 = vsyncadd [#allocation6], %s138
          %s140 = sshll.u32 [#allocation5], 4
          %s141 = int_to_ptr.vmem [resolvable:$true] %s140
          %146 = dma.hbm_to_vmem [thread:$0]  %s1, 2304, %s141, [#allocation6], 64, 64, 4
        $region16: #{dcgan_generator_forward.13} parent=11 // pred_fallthru
          _
      $region12: #{dcgan_generator_forward.13} parent=5 // pred_fallthru
        _
      %p147 = scmp.lt.s32.totalorder %s20, 2
      // Predicated region
      $region17: #{dcgan_generator_forward.13} parent=5 // pred_check
        %p148 = pneg %p147
      $region18: #{dcgan_generator_forward.13} parent=5 // pred_check_branch
        %150 = sbr.rel (%p148) target = $region20
      $region19: #{dcgan_generator_forward.13} parent=5 // pred_region
        // Predicated region
        $region21: #{dcgan_generator_forward.13} parent=19 // pred_check
          %p151 = pneg %p40
        $region22: #{dcgan_generator_forward.13} parent=19 // pred_check_branch
          %153 = sbr.rel (%p151) target = $region24
        $region23: #{dcgan_generator_forward.13} parent=19 // pred_region
          %s154 = sand.u32 %s30, 1
          %s155 = scalar_lea.sflag [#allocation3], %s154
          %s156 = sand.u32 %s30, 1
          %s157 = smul.addr %s156, 96
          %s158 = scalar_lea.vmem [#allocation2], %s157
          %s159 = smul.u32 8, %s20
          %s161 = ssub.s32 1536, 1536
          %162 = vsyncadd %s155, %s161
          %s163 = smul.addr %s159, 3
          %s164 = smul.addr %s163, 64
          %s165 = scalar_lea.hbm %s0, %s164
          %s166 = sshll.u32 %s158, 4
          %s167 = int_to_ptr.vmem [resolvable:$true] %s166
          %172 = dma.hbm_to_vmem [thread:$0]  %s165, 1536, %s167, %s155, 192, 192, 12
        $region24: #{dcgan_generator_forward.13} parent=19 // pred_fallthru
          _
      $region20: #{dcgan_generator_forward.13} parent=5 // pred_fallthru
        _
      %p173 = scmp.le.s32.totalorder 1, %s20
      %p174 = scmp.lt.s32.totalorder %s20, 3
      %p175 = pnand %p173, %p174
      %p176 = pneg %p175
      // Predicated region
      $region25: #{dcgan_generator_forward.13} parent=5 // pred_check
        _
      $region26: #{dcgan_generator_forward.13} parent=5 // pred_check_branch
        %178 = sbr.rel (%p175) target = $region28
      $region27: #{dcgan_generator_forward.13} parent=5 // pred_region
        %s179 = ssub.s32 %s20, 1
        %s180 = sand.u32 %s33, 1
        %s181 = scalar_lea.sflag [#allocation3], %s180
        %s182 = sand.u32 %s33, 1
        %s183 = smul.addr %s182, 96
        %s184 = scalar_lea.vmem [#allocation2], %s183
        // Predicated region
        $region29: #{dcgan_generator_forward.13} parent=27 // pred_check
          %p185 = pneg %p46
        $region30: #{dcgan_generator_forward.13} parent=27 // pred_check_branch
          %187 = sbr.rel (%p185) target = $region32
        $region31: #{dcgan_generator_forward.13} parent=27 // pred_region
          %188 = dma.done %s181, 1536
        $region32: #{dcgan_generator_forward.13} parent=27 // pred_fallthru
          _
        // Predicated region
        $region33: #{dcgan_generator_forward.13} parent=27 // pred_check
          %p189 = pneg %p67
        $region34: #{dcgan_generator_forward.13} parent=27 // pred_check_branch
          %191 = sbr.rel (%p189) target = $region36
        $region35: #{dcgan_generator_forward.13} parent=27 // pred_region
          %192 = dma.done [#allocation6], 2304
        $region36: #{dcgan_generator_forward.13} parent=27 // pred_fallthru
          _
        %s193 = sand.u32 %s33, 1
        %s194 = scalar_lea.sflag [#allocation3], %s193
        %s195 = sand.u32 %s33, 1
        %s196 = smul.addr %s195, 96
        %s197 = scalar_lea.vmem [#allocation2], %s196
        %p198 = pneg %p46
        %p199 = pneg %p43
        %p200 = pneg %p67
        %p201 = pneg %p64
        %p202 = pneg %p93
        %p203 = pneg %p90
        %s204 = sand.u32 %s80, 1
        %s205 = scalar_lea.sflag [#allocation4], %s204
        %s206 = sand.u32 %s80, 1
        %s207 = smul.addr %s206, 64
        %s208 = scalar_lea.vmem [#allocation7], %s207
        %p209 = pneg %p119
        %p210 = pneg %p116
        %s211 = sand.u32 %s106, 1
        %s212 = scalar_lea.sflag [#allocation9], %s211
        %s213 = sand.u32 %s106, 1
        %s214 = smul.addr %s213, 8
        %s215 = scalar_lea.vmem [#allocation8], %s214
        %s216 = smul.u32 8, %s25
        %s217 = smul.u32 8, %s25
        %v219 = vld [vmem:[%s184] sm:$0xff]
        %v220 = vld [vmem:[%s184 + $0x8] sm:$0xf]
        %v221 = vld [vmem:[%s184 + $0xc] sm:$0xff]
        %v222 = vld [vmem:[%s184 + $0x14] sm:$0xf]
        %v223 = vld [vmem:[%s184 + $0x18] sm:$0xff]
        %v224 = vld [vmem:[%s184 + $0x20] sm:$0xf]
        %v225 = vld [vmem:[%s184 + $0x24] sm:$0xff]
        %v226 = vld [vmem:[%s184 + $0x2c] sm:$0xf]
        %v227 = vld [vmem:[%s184 + $0x30] sm:$0xff]
        %v228 = vld [vmem:[%s184 + $0x38] sm:$0xf]
        %v229 = vld [vmem:[%s184 + $0x3c] sm:$0xff]
        %v230 = vld [vmem:[%s184 + $0x44] sm:$0xf]
        %v231 = vld [vmem:[%s184 + $0x48] sm:$0xff]
        %v232 = vld [vmem:[%s184 + $0x50] sm:$0xf]
        %v233 = vld [vmem:[%s184 + $0x54] sm:$0xff]
        %v234 = vld [vmem:[%s184 + $0x5c] sm:$0xf]
        %v235 = vld [vmem:[#allocation5] sm:$0xf]
        %v236 = vld [vmem:[#allocation5 + $0x4] sm:$0xf]
        %v237 = vld [vmem:[#allocation5 + $0x8] sm:$0xf]
        %v238 = vld [vmem:[#allocation5 + $0xc] sm:$0xf]
        %v239 = vld [vmem:[#allocation5 + $0x10] sm:$0xf]
        %v240 = vld [vmem:[#allocation5 + $0x14] sm:$0xf]
        %v241 = vld [vmem:[#allocation5 + $0x18] sm:$0xf]
        %v242 = vld [vmem:[#allocation5 + $0x1c] sm:$0xf]
        %v243 = vld [vmem:[#allocation5 + $0x20] sm:$0xf]
        %v244 = vld [vmem:[#allocation5 + $0x24] sm:$0xf]
        %v245 = vld [vmem:[#allocation5 + $0x28] sm:$0xf]
        %v246 = vld [vmem:[#allocation5 + $0x2c] sm:$0xf]
        %v247 = vld [vmem:[#allocation5 + $0x30] sm:$0xf]
        %v248 = vld [vmem:[#allocation5 + $0x34] sm:$0xf]
        %v249 = vld [vmem:[#allocation5 + $0x38] sm:$0xf]
        %v250 = vld [vmem:[#allocation5 + $0x3c] sm:$0xf]
        %v251 = vld [vmem:[#allocation5 + $0x40] sm:$0xf]
        %v252 = vld [vmem:[#allocation5 + $0x44] sm:$0xf]
        %v253 = vld [vmem:[#allocation5 + $0x48] sm:$0xf]
        %v254 = vld [vmem:[#allocation5 + $0x4c] sm:$0xf]
        %v255 = vld [vmem:[#allocation5 + $0x50] sm:$0xf]
        %v256 = vld [vmem:[#allocation5 + $0x54] sm:$0xf]
        %v257 = vld [vmem:[#allocation5 + $0x58] sm:$0xf]
        %v258 = vld [vmem:[#allocation5 + $0x5c] sm:$0xf]
        %v259 = vld [vmem:[#allocation5 + $0x60] sm:$0xf]
        %v260 = vld [vmem:[#allocation5 + $0x64] sm:$0xf]
        %v261 = vld [vmem:[#allocation5 + $0x68] sm:$0xf]
        %v262 = vld [vmem:[#allocation5 + $0x6c] sm:$0xf]
        %v263 = vld [vmem:[#allocation5 + $0x70] sm:$0xf]
        %v264 = vld [vmem:[#allocation5 + $0x74] sm:$0xf]
        %v265 = vld [vmem:[#allocation5 + $0x78] sm:$0xf]
        %v266 = vld [vmem:[#allocation5 + $0x7c] sm:$0xf]
        %v267 = vld [vmem:[#allocation5 + $0x80] sm:$0xf]
        %v268 = vld [vmem:[#allocation5 + $0x84] sm:$0xf]
        %v269 = vld [vmem:[#allocation5 + $0x88] sm:$0xf]
        %v270 = vld [vmem:[#allocation5 + $0x8c] sm:$0xf]
        %v287 = vunpack.c.l.b16 %v219
        %v288 = vunpack.c.h.b16 %v219
        %v289 = vunpack.c.l.b16 %v220
        %v290 = vunpack.c.l.b16 %v221
        %v291 = vunpack.c.h.b16 %v221
        %v292 = vunpack.c.l.b16 %v222
        %v293 = vunpack.c.l.b16 %v223
        %v294 = vunpack.c.h.b16 %v223
        %v295 = vunpack.c.l.b16 %v224
        %v296 = vunpack.c.l.b16 %v225
        %v297 = vunpack.c.h.b16 %v225
        %v298 = vunpack.c.l.b16 %v226
        %v299 = vunpack.c.l.b16 %v227
        %v300 = vunpack.c.h.b16 %v227
        %v301 = vunpack.c.l.b16 %v228
        %v302 = vunpack.c.l.b16 %v229
        %v303 = vunpack.c.h.b16 %v229
        %v304 = vunpack.c.l.b16 %v230
        %v305 = vunpack.c.l.b16 %v231
        %v306 = vunpack.c.h.b16 %v231
        %v307 = vunpack.c.l.b16 %v232
        %v308 = vunpack.c.l.b16 %v233
        %v309 = vunpack.c.h.b16 %v233
        %v310 = vunpack.c.l.b16 %v234
        %v311 = vpack.c.b16 %v290, %v287
        %v312 = vpack.c.b16 %v291, %v288
        %v313 = vpack.c.b16 %v292, %v289
        %v314 = vpack.c.b16 %v296, %v293
        %v315 = vpack.c.b16 %v297, %v294
        %v316 = vpack.c.b16 %v298, %v295
        %v317 = vpack.c.b16 %v302, %v299
        %v318 = vpack.c.b16 %v303, %v300
        %v319 = vpack.c.b16 %v304, %v301
        %v320 = vpack.c.b16 %v308, %v305
        %v321 = vpack.c.b16 %v309, %v306
        %v322 = vpack.c.b16 %v310, %v307
        %v367 = vunpack.c.l.b16 %v235
        %v368 = vunpack.c.l.b16 %v236
        %v369 = vunpack.c.l.b16 %v237
        %v370 = vunpack.c.l.b16 %v238
        %v371 = vunpack.c.l.b16 %v239
        %v372 = vunpack.c.l.b16 %v240
        %v373 = vunpack.c.l.b16 %v241
        %v374 = vunpack.c.l.b16 %v242
        %v375 = vunpack.c.l.b16 %v243
        %v376 = vunpack.c.l.b16 %v244
        %v377 = vunpack.c.l.b16 %v245
        %v378 = vunpack.c.l.b16 %v246
        %v379 = vunpack.c.l.b16 %v247
        %v380 = vunpack.c.l.b16 %v248
        %v381 = vunpack.c.l.b16 %v249
        %v382 = vunpack.c.l.b16 %v250
        %v383 = vunpack.c.l.b16 %v251
        %v384 = vunpack.c.l.b16 %v252
        %v385 = vunpack.c.l.b16 %v253
        %v386 = vunpack.c.l.b16 %v254
        %v387 = vunpack.c.l.b16 %v255
        %v388 = vunpack.c.l.b16 %v256
        %v389 = vunpack.c.l.b16 %v257
        %v390 = vunpack.c.l.b16 %v258
        %v391 = vunpack.c.l.b16 %v259
        %v392 = vunpack.c.l.b16 %v260
        %v393 = vunpack.c.l.b16 %v261
        %v394 = vunpack.c.l.b16 %v262
        %v395 = vunpack.c.l.b16 %v263
        %v396 = vunpack.c.l.b16 %v264
        %v397 = vunpack.c.l.b16 %v265
        %v398 = vunpack.c.l.b16 %v266
        %v399 = vunpack.c.l.b16 %v267
        %v400 = vunpack.c.l.b16 %v268
        %v401 = vunpack.c.l.b16 %v269
        %v402 = vunpack.c.l.b16 %v270
        %v403 = vpack.c.b16 %v368, %v367
        %v404 = vpack.c.b16 %v370, %v369
        %v405 = vpack.c.b16 %v372, %v371
        %v406 = vpack.c.b16 %v374, %v373
        %v407 = vpack.c.b16 %v376, %v375
        %v408 = vpack.c.b16 %v378, %v377
        %v409 = vpack.c.b16 %v380, %v379
        %v410 = vpack.c.b16 %v382, %v381
        %v411 = vpack.c.b16 %v384, %v383
        %v412 = vpack.c.b16 %v386, %v385
        %v413 = vpack.c.b16 %v388, %v387
        %v414 = vpack.c.b16 %v390, %v389
        %v415 = vpack.c.b16 %v392, %v391
        %v416 = vpack.c.b16 %v394, %v393
        %v417 = vpack.c.b16 %v396, %v395
        %v418 = vpack.c.b16 %v398, %v397
        %v419 = vpack.c.b16 %v400, %v399
        %v420 = vpack.c.b16 %v402, %v401
        %vm439 = vcmask 261120
        %v441 = vsel %vm439, %v313, 0
        %v444 = vsel %vm439, %v316, 0
        %v447 = vsel %vm439, %v319, 0
        %v450 = vsel %vm439, %v322, 0
        %452 = vmatprep.subr.bf16.mxu0 0
        %453 = vmatpush1.bf16.msra.mxu0 %v403
        %454 = vmatprep.subr.bf16.mxu0 0
        %455 = vmatpush1.bf16.msra.mxu0 %v404
        %456 = vmatprep.subr.bf16.mxu0 0
        %457 = vmatpush1.bf16.msra.mxu0 %v405
        %458 = vmatprep.subr.bf16.mxu0 0
        %459 = vmatpush1.bf16.msra.mxu0 %v406
        %460 = vmatprep.subr.bf16.mxu0 0
        %461 = vmatpush1.bf16.msra.mxu0 %v407
        %462 = vmatprep.subr.bf16.mxu0 0
        %463 = vmatpush1.bf16.msra.mxu0 %v408
        %464 = vmatprep.subr.bf16.mxu0 0
        %465 = vmatpush1.bf16.msra.mxu0 %v409
        %466 = vmatprep.subr.bf16.mxu0 0
        %467 = vmatpush1.bf16.msra.mxu0 %v410
        %468 = vmatprep.subr.bf16.mxu0 0
        %469 = vmatpush1.bf16.msra.mxu0 %v411
        %470 = vmatprep.subr.bf16.mxu0 0
        %471 = vmatpush1.bf16.msra.mxu0 %v412
        %472 = vmatprep.subr.bf16.mxu0 0
        %473 = vmatpush1.bf16.msra.mxu0 %v413
        %474 = vmatprep.subr.bf16.mxu0 0
        %475 = vmatpush1.bf16.msra.mxu0 %v414
        %476 = vmatprep.subr.bf16.mxu0 0
        %477 = vmatpush1.bf16.msra.mxu0 %v415
        %478 = vmatprep.subr.bf16.mxu0 0
        %479 = vmatpush1.bf16.msra.mxu0 %v416
        %480 = vmatprep.subr.bf16.mxu0 0
        %481 = vmatpush1.bf16.msra.mxu0 %v417
        %482 = vmatprep.subr.bf16.mxu0 0
        %483 = vmatpush1.bf16.msra.mxu0 %v418
        %484 = vmatprep.mubr.bf16.mxu0 %v312
        %485 = vmatmul.mubr.bf16.gmra.mrb[0].mxu0 %v311
        %v486 = vpop.f32.mrb[0].mxu0
        %v487 = vadd.f32 0.0, %v486
        %v488 = vpop.f32.mrb[0].mxu0
        %v489 = vpop.f32.mrb[0].mxu0
        %v490 = vadd.f32 0.0, %v489
        %v491 = vpop.f32.mrb[0].mxu0
        %492 = vmatprep.mubr.bf16.mxu0 %v315
        %493 = vmatmul.mubr.bf16.gmra.mrb[0].mxu0 %v314
        %v494 = vpop.f32.mrb[0].mxu0
        %v495 = vadd.f32 0.0, %v494
        %v496 = vpop.f32.mrb[0].mxu0
        %v497 = vpop.f32.mrb[0].mxu0
        %v498 = vadd.f32 0.0, %v497
        %v499 = vpop.f32.mrb[0].mxu0
        %500 = vmatprep.mubr.bf16.mxu0 %v318
        %501 = vmatmul.mubr.bf16.gmra.mrb[0].mxu0 %v317
        %v502 = vpop.f32.mrb[0].mxu0
        %v503 = vadd.f32 0.0, %v502
        %v504 = vpop.f32.mrb[0].mxu0
        %v505 = vpop.f32.mrb[0].mxu0
        %v506 = vadd.f32 0.0, %v505
        %v507 = vpop.f32.mrb[0].mxu0
        %508 = vmatprep.mubr.bf16.mxu0 %v321
        %509 = vmatmul.mubr.bf16.gmra.mrb[0].mxu0 %v320
        %v510 = vpop.f32.mrb[0].mxu0
        %v511 = vadd.f32 0.0, %v510
        %v512 = vpop.f32.mrb[0].mxu0
        %v513 = vpop.f32.mrb[0].mxu0
        %v514 = vadd.f32 0.0, %v513
        %v515 = vpop.f32.mrb[0].mxu0
        %516 = vdwg.mxu0
        %517 = vmatprep.subr.bf16.mxu0 0
        %518 = vmatpush1.bf16.msra.mxu0 %v419
        %519 = vmatprep.subr.bf16.mxu0 0
        %520 = vmatpush1.bf16.msra.mxu0 %v420
        %521 = vmatprep.subr.bf16.mxu0 0
        %522 = vmatpush1.bf16.msra.mxu0 0
        %523 = vmatprep.subr.bf16.mxu0 0
        %524 = vmatpush1.bf16.msra.mxu0 0
        %525 = vmatprep.subr.bf16.mxu0 0
        %526 = vmatpush1.bf16.msra.mxu0 0
        %527 = vmatprep.subr.bf16.mxu0 0
        %528 = vmatpush1.bf16.msra.mxu0 0
        %529 = vmatprep.subr.bf16.mxu0 0
        %530 = vmatpush1.bf16.msra.mxu0 0
        %531 = vmatprep.subr.bf16.mxu0 0
        %532 = vmatpush1.bf16.msra.mxu0 0
        %533 = vmatprep.subr.bf16.mxu0 0
        %534 = vmatpush1.bf16.msra.mxu0 0
        %535 = vmatprep.subr.bf16.mxu0 0
        %536 = vmatpush1.bf16.msra.mxu0 0
        %537 = vmatprep.subr.bf16.mxu0 0
        %538 = vmatpush1.bf16.msra.mxu0 0
        %539 = vmatprep.subr.bf16.mxu0 0
        %540 = vmatpush1.bf16.msra.mxu0 0
        %541 = vmatprep.subr.bf16.mxu0 0
        %542 = vmatpush1.bf16.msra.mxu0 0
        %543 = vmatprep.subr.bf16.mxu0 0
        %544 = vmatpush1.bf16.msra.mxu0 0
        %545 = vmatprep.subr.bf16.mxu0 0
        %546 = vmatpush1.bf16.msra.mxu0 0
        %547 = vmatprep.subr.bf16.mxu0 0
        %548 = vmatpush1.bf16.msra.mxu0 0
        %549 = vmatprep.mubr.bf16.mxu0 0
        %550 = vmatmul.mubr.bf16.gmra.mrb[0].mxu0 %v441
        %v551 = vpop.f32.mrb[0].mxu0
        %v552 = vadd.f32 %v487, %v551
        %v553 = vpop.f32.mrb[0].mxu0
        %v554 = vpop.f32.mrb[0].mxu0
        %v555 = vadd.f32 %v490, %v554
        %v556 = vpop.f32.mrb[0].mxu0
        %557 = vmatprep.mubr.bf16.mxu0 0
        %558 = vmatmul.mubr.bf16.gmra.mrb[0].mxu0 %v444
        %v559 = vpop.f32.mrb[0].mxu0
        %v560 = vadd.f32 %v495, %v559
        %v561 = vpop.f32.mrb[0].mxu0
        %v562 = vpop.f32.mrb[0].mxu0
        %v563 = vadd.f32 %v498, %v562
        %v564 = vpop.f32.mrb[0].mxu0
        %565 = vmatprep.mubr.bf16.mxu0 0
        %566 = vmatmul.mubr.bf16.gmra.mrb[0].mxu0 %v447
        %v567 = vpop.f32.mrb[0].mxu0
        %v568 = vadd.f32 %v503, %v567
        %v569 = vpop.f32.mrb[0].mxu0
        %v570 = vpop.f32.mrb[0].mxu0
        %v571 = vadd.f32 %v506, %v570
        %v572 = vpop.f32.mrb[0].mxu0
        %573 = vmatprep.mubr.bf16.mxu0 0
        %574 = vmatmul.mubr.bf16.gmra.mrb[0].mxu0 %v450
        %v575 = vpop.f32.mrb[0].mxu0
        %v576 = vadd.f32 %v511, %v575
        %v577 = vpop.f32.mrb[0].mxu0
        %v578 = vpop.f32.mrb[0].mxu0
        %v579 = vadd.f32 %v514, %v578
        %v580 = vpop.f32.mrb[0].mxu0
        %581 = vdwg.mxu0
        %vm582 = vcmask 523264
        %v583 = vsel %vm582, %v552, 0.0
        %v584 = vsel %vm582, %v555, 0.0
        %v585 = vadd.f32 %v583, %v584
        %v586 = vsel %vm582, %v560, 0.0
        %v587 = vadd.f32 %v585, %v586
        %v588 = vsel %vm582, %v563, 0.0
        %v589 = vadd.f32 %v587, %v588
        %v590 = vsel %vm582, %v568, 0.0
        %v591 = vadd.f32 %v589, %v590
        %v592 = vsel %vm582, %v571, 0.0
        %v593 = vadd.f32 %v591, %v592
        %v594 = vsel %vm582, %v576, 0.0
        %v595 = vadd.f32 %v593, %v594
        %v596 = vsel %vm582, %v579, 0.0
        %v597 = vadd.f32 %v595, %v596
        %v598 = vrot.slane %v597, 4
        %v599 = vadd.f32 %v597, %v598
        %v600 = vrot.slane %v599, 2
        %v601 = vadd.f32 %v599, %v600
        %v602 = vrot.slane %v601, 1
        %v603 = vadd.f32 %v601, %v602
        %v604 = vmul.f32 %v552, %v552
        %v605 = vmul.f32 %v555, %v555
        %v606 = vmul.f32 %v560, %v560
        %v607 = vmul.f32 %v563, %v563
        %v608 = vmul.f32 %v568, %v568
        %v609 = vmul.f32 %v571, %v571
        %v610 = vmul.f32 %v576, %v576
        %v611 = vmul.f32 %v579, %v579
        %v612 = vsel %vm582, %v604, 0.0
        %v613 = vsel %vm582, %v605, 0.0
        %v614 = vadd.f32 %v612, %v613
        %v615 = vsel %vm582, %v606, 0.0
        %v616 = vadd.f32 %v614, %v615
        %v617 = vsel %vm582, %v607, 0.0
        %v618 = vadd.f32 %v616, %v617
        %v619 = vsel %vm582, %v608, 0.0
        %v620 = vadd.f32 %v618, %v619
        %v621 = vsel %vm582, %v609, 0.0
        %v622 = vadd.f32 %v620, %v621
        %v623 = vsel %vm582, %v610, 0.0
        %v624 = vadd.f32 %v622, %v623
        %v625 = vsel %vm582, %v611, 0.0
        %v626 = vadd.f32 %v624, %v625
        %v627 = vrot.slane %v626, 4
        %v628 = vadd.f32 %v626, %v627
        %v629 = vrot.slane %v628, 2
        %v630 = vadd.f32 %v628, %v629
        %v631 = vrot.slane %v630, 1
        %v632 = vadd.f32 %v630, %v631
        %vm633 = vcmask 1040384
        %v634 = vsel %vm633, %v603, %v632
        %vm635 = vcmask 1041408
        %v636 = vsel %vm635, %v634, 0.0
        %637 = vst.msk [vmem:[%s215] sm:$0xff] %vm582, %v636
        %638 = vst.msk [vmem:[%s208] sm:$0xff] %vm582, %v552
        %639 = vst.msk [vmem:[%s208 + $0x8] sm:$0xff] %vm582, %v555
        %640 = vst.msk [vmem:[%s208 + $0x10] sm:$0xff] %vm582, %v560
        %641 = vst.msk [vmem:[%s208 + $0x18] sm:$0xff] %vm582, %v563
        %642 = vst.msk [vmem:[%s208 + $0x20] sm:$0xff] %vm582, %v568
        %643 = vst.msk [vmem:[%s208 + $0x28] sm:$0xff] %vm582, %v571
        %644 = vst.msk [vmem:[%s208 + $0x30] sm:$0xff] %vm582, %v576
        %645 = vst.msk [vmem:[%s208 + $0x38] sm:$0xff] %vm582, %v579
        %s646 = sand.u32 %s80, 1
        %s647 = scalar_lea.sflag [#allocation4], %s646
        %s648 = sand.u32 %s80, 1
        %s649 = smul.addr %s648, 64
        %s650 = scalar_lea.vmem [#allocation7], %s649
        %s651 = sand.u32 %s106, 1
        %s652 = scalar_lea.sflag [#allocation9], %s651
        %s653 = sand.u32 %s106, 1
        %s654 = smul.addr %s653, 8
        %s655 = scalar_lea.vmem [#allocation8], %s654
        // Predicated region
        $region37: #{dcgan_generator_forward.13} parent=27 // pred_check
          %p656 = pneg %p90
        $region38: #{dcgan_generator_forward.13} parent=27 // pred_check_branch
          %658 = sbr.rel (%p656) target = $region40
        $region39: #{dcgan_generator_forward.13} parent=27 // pred_region
          %s659 = smul.u32 8, %s25
          %s661 = ssub.s32 1024, 1024
          %662 = vsyncadd %s647, %s661
          %s663 = smul.addr %s659, 128
          %s664 = scalar_lea.hbm %s2, %s663
          %s665 = sshll.u32 %s650, 4
          %s666 = int_to_ptr.vmem [resolvable:$true] %s665
          %671 = dma.vmem_to_hbm [thread:$0]  %s666, 1024, %s664, %s647, 128, 128, 8
        $region40: #{dcgan_generator_forward.13} parent=27 // pred_fallthru
          _
        // Predicated region
        $region41: #{dcgan_generator_forward.13} parent=27 // pred_check
          %p672 = pneg %p116
        $region42: #{dcgan_generator_forward.13} parent=27 // pred_check_branch
          %674 = sbr.rel (%p672) target = $region44
        $region43: #{dcgan_generator_forward.13} parent=27 // pred_region
          %s676 = ssub.s32 128, 128
          %677 = vsyncadd %s652, %s676
          %s678 = smul.addr %s25, 128
          %s679 = scalar_lea.hbm %s3, %s678
          %s681 = sshll.u32 %s655, 4
          %s682 = int_to_ptr.vmem [resolvable:$true] %s681
          %684 = dma.vmem_to_hbm [thread:$0]  %s682, 128, %s679, %s652
        $region44: #{dcgan_generator_forward.13} parent=27 // pred_fallthru
          _
      $region28: #{dcgan_generator_forward.13} parent=5 // pred_fallthru
        _
      %p685 = scmp.le.s32.totalorder 2, %s20
      // Predicated region
      $region45: #{dcgan_generator_forward.13} parent=5 // pred_check
        %p686 = pneg %p685
      $region46: #{dcgan_generator_forward.13} parent=5 // pred_check_branch
        %688 = sbr.rel (%p686) target = $region48
      $region47: #{dcgan_generator_forward.13} parent=5 // pred_region
        %s689 = ssub.s32 %s20, 2
        // Predicated region
        $region49: #{dcgan_generator_forward.13} parent=47 // pred_check
          %p690 = pneg %p96
        $region50: #{dcgan_generator_forward.13} parent=47 // pred_check_branch
          %692 = sbr.rel (%p690) target = $region52
        $region51: #{dcgan_generator_forward.13} parent=47 // pred_region
          %s693 = sand.u32 %s81, 1
          %s694 = scalar_lea.sflag [#allocation4], %s693
          %s695 = sand.u32 %s81, 1
          %s696 = smul.addr %s695, 64
          %s697 = scalar_lea.vmem [#allocation7], %s696
          %698 = dma.done %s694, 1024
        $region52: #{dcgan_generator_forward.13} parent=47 // pred_fallthru
          _
        // Predicated region
        $region53: #{dcgan_generator_forward.13} parent=47 // pred_check
          %p699 = pneg %p122
        $region54: #{dcgan_generator_forward.13} parent=47 // pred_check_branch
          %701 = sbr.rel (%p699) target = $region56
        $region55: #{dcgan_generator_forward.13} parent=47 // pred_region
          %s702 = sand.u32 %s107, 1
          %s703 = scalar_lea.sflag [#allocation9], %s702
          %s704 = sand.u32 %s107, 1
          %s705 = smul.addr %s704, 8
          %s706 = scalar_lea.vmem [#allocation8], %s705
          %707 = dma.done %s703, 128
        $region56: #{dcgan_generator_forward.13} parent=47 // pred_fallthru
          _
      $region48: #{dcgan_generator_forward.13} parent=5 // pred_fallthru
        _
    $region6: #{dcgan_generator_forward.13} parent=1 // loop_footer
      %s24 = sadd.s32 1, %s20
    $region7: #{dcgan_generator_forward.13} parent=1 // loop_footer_branch
      %19 = sbr.rel target = $region3
    $region8: #{dcgan_generator_forward.13} parent=1 // loop_exit
      _
    %708 = vsyncpa [#allocation3], 1
    %s709 = scalar_lea.sflag [#allocation3], 1
    %710 = vsyncpa %s709, 1
    %711 = vsyncpa [#allocation6], 1
    %712 = vsyncpa [#allocation4], 1
    %s713 = scalar_lea.sflag [#allocation4], 1
    %714 = vsyncpa %s713, 1
    %715 = vsyncpa [#allocation9], 1
    %s716 = scalar_lea.sflag [#allocation9], 1
    %717 = vsyncpa %s716, 1

// kernel: dcgan_generator_forward.14
$region0: #{dcgan_generator_forward.14}
  #allocation0 [shape = 'u32[]', space=smem, size = 0x4, offset = 0x4, fixed_abs, tag = 'smem constant byte address 0x4 - core index']
  #allocation1 [shape = 'u32[144,128]{1,0:T(1,128)}', space=vmem, size = 0x12000, scoped, tag = 'internal scratch']
  %s0 = inlined_call_operand.hbm [shape: f32[128,64], index: 0, kind: input, shape index: {}]
  %s1 = inlined_call_operand.hbm [shape: f32[1,64], index: 1, kind: input, shape index: {}]
  %s2 = inlined_call_operand.hbm [shape: f32[1,64], index: 2, kind: input, shape index: {}]
  %s3 = inlined_call_operand.hbm [shape: bf16[128,64], index: 3, kind: output, shape index: {}]
  %s4 = sld [smem:[#allocation0]]
  $region57: #{dcgan_generator_forward.14} parent=0
    _
  %s6 = ssub.s32 1, %s4
  %s7 = scalar_select 0, %s6, %s4
  $region1: #{dcgan_generator_forward.14} parent=0
    #allocation2 [shape = 'u8[65536]{0}', space=vmem, size = 0x10000, scoped, tag = 'input window, operand 0']
    #allocation3 [shape = 's32[2]{0}', space=sflag, size = 0x8, scoped, tag = 'scoped memory for dcgan_generator_forward.14']
    #allocation4 [shape = 's32[2]{0}', space=sflag, size = 0x8, scoped, tag = 'scoped memory for dcgan_generator_forward.14']
    #allocation5 [shape = 'u8[512]{0}', space=vmem, size = 0x400, scoped, tag = 'input window, operand 1, single buffered']
    #allocation6 [shape = 's32[1]{0}', space=sflag, size = 0x4, scoped, tag = 'scoped memory for dcgan_generator_forward.14']
    #allocation7 [shape = 'u8[512]{0}', space=vmem, size = 0x400, scoped, tag = 'input window, operand 2, single buffered']
    #allocation8 [shape = 'u8[32768]{0}', space=vmem, size = 0x8000, scoped, tag = 'output window, operand 0']
    %8 = vsyncpa [#allocation3], 0
    %s9 = scalar_lea.sflag [#allocation3], 1
    %10 = vsyncpa %s9, 0
    %11 = vsyncpa [#allocation6], 0
    %12 = vsyncpa [#allocation4], 0
    %s13 = scalar_lea.sflag [#allocation4], 1
    %14 = vsyncpa %s13, 0
    loop: start=0, step=1, limit=4
    $region2: #{dcgan_generator_forward.14} parent=1 // loop_pre_header
      _
    $region3: #{dcgan_generator_forward.14} parent=1 // loop_header
      %s16 = sphi 0, %s20
      %p17 = scmp.ge.s32.totalorder %s16, 4
      %s26 = sphi 0, %s28
      %s29 = sphi 0, %s26
      %s30 = sphi 0, %s29
      %s46 = sphi 0, %s30
      %s50 = sphi 0, %s50
      %s52 = sphi 0, %s50
      %s53 = sphi 0, %s52
      %s67 = sphi 0, %s53
      %s71 = sphi 0, %s71
      %s73 = sphi 0, %s71
      %s74 = sphi 0, %s73
      %s88 = sphi 0, %s74
      %s94 = sphi 0, %s96
      %s97 = sphi 0, %s94
      %s98 = sphi 0, %s97
      %s114 = sphi 0, %s98
    $region4: #{dcgan_generator_forward.14} parent=1 // loop_header_branch
      %19 = sbr.rel (%p17) target = $region8
    $region5: #{dcgan_generator_forward.14} parent=1 // loop_body
      %s21 = ssub.s32 %s16, 1
      %s22 = ssub.s32 %s16, 2
      %s23 = sadd.s32 %s16, 1
      %s24 = ssub.s32 %s16, %s23
      %p25 = scmp.eq.s32.totalorder %s24, 0
      %s27 = sadd.s32 %s26, 1
      %s28 = scalar_select %p25, %s26, %s27
      %p31 = pneg %p25
      %p32 = scmp.eq.s32.totalorder %s16, 1
      %p33 = por %p31, %p32
      %p34 = scmp.ne.s32.totalorder %s26, %s29
      %p35 = scmp.eq.s32.totalorder %s16, 0
      %p36 = por %p34, %p35
      %p37 = scmp.ne.s32.totalorder %s26, %s29
      %p38 = scmp.eq.s32.totalorder %s21, 1
      %p39 = por %p37, %p38
      %p40 = scmp.ne.s32.totalorder %s29, %s30
      %p41 = scmp.eq.s32.totalorder %s21, 0
      %p42 = por %p40, %p41
      %p43 = scmp.ne.s32.totalorder %s29, %s30
      %p44 = scmp.eq.s32.totalorder %s22, 1
      %p45 = por %p43, %p44
      %p47 = scmp.ne.s32.totalorder %s30, %s46
      %p48 = scmp.eq.s32.totalorder %s22, 0
      %p49 = por %p47, %p48
      %s51 = sadd.s32 %s50, 1
      %p54 = scmp.eq.s32.totalorder %s16, 1
      %p55 = scmp.ne.s32.totalorder %s50, %s52
      %p56 = scmp.eq.s32.totalorder %s16, 0
      %p57 = por %p55, %p56
      %p58 = scmp.ne.s32.totalorder %s50, %s52
      %p59 = scmp.eq.s32.totalorder %s21, 1
      %p60 = por %p58, %p59
      %p61 = scmp.ne.s32.totalorder %s52, %s53
      %p62 = scmp.eq.s32.totalorder %s21, 0
      %p63 = por %p61, %p62
      %p64 = scmp.ne.s32.totalorder %s52, %s53
      %p65 = scmp.eq.s32.totalorder %s22, 1
      %p66 = por %p64, %p65
      %p68 = scmp.ne.s32.totalorder %s53, %s67
      %p69 = scmp.eq.s32.totalorder %s22, 0
      %p70 = por %p68, %p69
      %s72 = sadd.s32 %s71, 1
      %p75 = scmp.eq.s32.totalorder %s16, 1
      %p76 = scmp.ne.s32.totalorder %s71, %s73
      %p77 = scmp.eq.s32.totalorder %s16, 0
      %p78 = por %p76, %p77
      %p79 = scmp.ne.s32.totalorder %s71, %s73
      %p80 = scmp.eq.s32.totalorder %s21, 1
      %p81 = por %p79, %p80
      %p82 = scmp.ne.s32.totalorder %s73, %s74
      %p83 = scmp.eq.s32.totalorder %s21, 0
      %p84 = por %p82, %p83
      %p85 = scmp.ne.s32.totalorder %s73, %s74
      %p86 = scmp.eq.s32.totalorder %s22, 1
      %p87 = por %p85, %p86
      %p89 = scmp.ne.s32.totalorder %s74, %s88
      %p90 = scmp.eq.s32.totalorder %s22, 0
      %p91 = por %p89, %p90
      %s92 = ssub.s32 %s16, %s23
      %p93 = scmp.eq.s32.totalorder %s92, 0
      %s95 = sadd.s32 %s94, 1
      %s96 = scalar_select %p93, %s94, %s95
      %p99 = pneg %p93
      %p100 = scmp.eq.s32.totalorder %s16, 1
      %p101 = por %p99, %p100
      %p102 = scmp.ne.s32.totalorder %s94, %s97
      %p103 = scmp.eq.s32.totalorder %s16, 0
      %p104 = por %p102, %p103
      %p105 = scmp.ne.s32.totalorder %s94, %s97
      %p106 = scmp.eq.s32.totalorder %s21, 1
      %p107 = por %p105, %p106
      %p108 = scmp.ne.s32.totalorder %s97, %s98
      %p109 = scmp.eq.s32.totalorder %s21, 0
      %p110 = por %p108, %p109
      %p111 = scmp.ne.s32.totalorder %s97, %s98
      %p112 = scmp.eq.s32.totalorder %s22, 1
      %p113 = por %p111, %p112
      %p115 = scmp.ne.s32.totalorder %s98, %s114
      %p116 = scmp.eq.s32.totalorder %s22, 0
      %p117 = por %p115, %p116
      %p118 = scmp.le.s32.totalorder 1, %s16
      %p119 = scmp.lt.s32.totalorder %s16, 3
      %p120 = pnand %p118, %p119
      %p121 = pneg %p120
      // Predicated region
      $region9: #{dcgan_generator_forward.14} parent=5 // pred_check
        _
      $region10: #{dcgan_generator_forward.14} parent=5 // pred_check_branch
        %123 = sbr.rel (%p120) target = $region12
      $region11: #{dcgan_generator_forward.14} parent=5 // pred_region
        %s124 = ssub.s32 %s16, 1
        // Predicated region
        $region13: #{dcgan_generator_forward.14} parent=11 // pred_check
          %p125 = pneg %p63
        $region14: #{dcgan_generator_forward.14} parent=11 // pred_check_branch
          %127 = sbr.rel (%p125) target = $region16
        $region15: #{dcgan_generator_forward.14} parent=11 // pred_region
          %s129 = ssub.s32 16, 16
          %130 = vsyncadd [#allocation6], %s129
          %s132 = sshll.u32 [#allocation5], 4
          %s133 = int_to_ptr.vmem [resolvable:$true] %s132
          %135 = dma.hbm_to_vmem [thread:$0]  %s1, 16, %s133, [#allocation6]
        $region16: #{dcgan_generator_forward.14} parent=11 // pred_fallthru
          _
        // Predicated region
        $region17: #{dcgan_generator_forward.14} parent=11 // pred_check
          %p136 = pneg %p84
        $region18: #{dcgan_generator_forward.14} parent=11 // pred_check_branch
          %138 = sbr.rel (%p136) target = $region20
        $region19: #{dcgan_generator_forward.14} parent=11 // pred_region
          %s140 = ssub.s32 16, 16
          %141 = vsyncadd [#allocation6], %s140
          %s143 = sshll.u32 [#allocation7], 4
          %s144 = int_to_ptr.vmem [resolvable:$true] %s143
          %146 = dma.hbm_to_vmem [thread:$0]  %s2, 16, %s144, [#allocation6]
        $region20: #{dcgan_generator_forward.14} parent=11 // pred_fallthru
          _
      $region12: #{dcgan_generator_forward.14} parent=5 // pred_fallthru
        _
      %p147 = scmp.lt.s32.totalorder %s16, 2
      // Predicated region
      $region21: #{dcgan_generator_forward.14} parent=5 // pred_check
        %p148 = pneg %p147
      $region22: #{dcgan_generator_forward.14} parent=5 // pred_check_branch
        %150 = sbr.rel (%p148) target = $region24
      $region23: #{dcgan_generator_forward.14} parent=5 // pred_region
        // Predicated region
        $region25: #{dcgan_generator_forward.14} parent=23 // pred_check
          %p151 = pneg %p36
        $region26: #{dcgan_generator_forward.14} parent=23 // pred_check_branch
          %153 = sbr.rel (%p151) target = $region28
        $region27: #{dcgan_generator_forward.14} parent=23 // pred_region
          %s154 = sand.u32 %s26, 1
          %s155 = scalar_lea.sflag [#allocation3], %s154
          %s156 = sand.u32 %s26, 1
          %s157 = smul.addr %s156, 64
          %s158 = scalar_lea.vmem [#allocation2], %s157
          %s159 = smul.u32 8, %s16
          %s161 = ssub.s32 1024, 1024
          %162 = vsyncadd %s155, %s161
          %s163 = smul.addr %s159, 128
          %s164 = scalar_lea.hbm %s0, %s163
          %s165 = sshll.u32 %s158, 4
          %s166 = int_to_ptr.vmem [resolvable:$true] %s165
          %171 = dma.hbm_to_vmem [thread:$0]  %s164, 1024, %s166, %s155, 128, 128, 8
        $region28: #{dcgan_generator_forward.14} parent=23 // pred_fallthru
          _
      $region24: #{dcgan_generator_forward.14} parent=5 // pred_fallthru
        _
      %p172 = scmp.le.s32.totalorder 1, %s16
      %p173 = scmp.lt.s32.totalorder %s16, 3
      %p174 = pnand %p172, %p173
      %p175 = pneg %p174
      // Predicated region
      $region29: #{dcgan_generator_forward.14} parent=5 // pred_check
        _
      $region30: #{dcgan_generator_forward.14} parent=5 // pred_check_branch
        %177 = sbr.rel (%p174) target = $region32
      $region31: #{dcgan_generator_forward.14} parent=5 // pred_region
        %s178 = ssub.s32 %s16, 1
        %s179 = sand.u32 %s29, 1
        %s180 = scalar_lea.sflag [#allocation3], %s179
        %s181 = sand.u32 %s29, 1
        %s182 = smul.addr %s181, 64
        %s183 = scalar_lea.vmem [#allocation2], %s182
        // Predicated region
        $region33: #{dcgan_generator_forward.14} parent=31 // pred_check
          %p184 = pneg %p42
        $region34: #{dcgan_generator_forward.14} parent=31 // pred_check_branch
          %186 = sbr.rel (%p184) target = $region36
        $region35: #{dcgan_generator_forward.14} parent=31 // pred_region
          %187 = dma.done %s180, 1024
        $region36: #{dcgan_generator_forward.14} parent=31 // pred_fallthru
          _
        // Predicated region
        $region37: #{dcgan_generator_forward.14} parent=31 // pred_check
          %p188 = pneg %p63
        $region38: #{dcgan_generator_forward.14} parent=31 // pred_check_branch
          %190 = sbr.rel (%p188) target = $region40
        $region39: #{dcgan_generator_forward.14} parent=31 // pred_region
          %191 = dma.done [#allocation6], 16
        $region40: #{dcgan_generator_forward.14} parent=31 // pred_fallthru
          _
        // Predicated region
        $region41: #{dcgan_generator_forward.14} parent=31 // pred_check
          %p192 = pneg %p84
        $region42: #{dcgan_generator_forward.14} parent=31 // pred_check_branch
          %194 = sbr.rel (%p192) target = $region44
        $region43: #{dcgan_generator_forward.14} parent=31 // pred_region
          %195 = dma.done [#allocation6], 16
        $region44: #{dcgan_generator_forward.14} parent=31 // pred_fallthru
          _
        %s196 = sand.u32 %s29, 1
        %s197 = scalar_lea.sflag [#allocation3], %s196
        %s198 = sand.u32 %s29, 1
        %s199 = smul.addr %s198, 64
        %s200 = scalar_lea.vmem [#allocation2], %s199
        %p201 = pneg %p42
        %p202 = pneg %p39
        %p203 = pneg %p63
        %p204 = pneg %p60
        %p205 = pneg %p84
        %p206 = pneg %p81
        %p207 = pneg %p110
        %p208 = pneg %p107
        %s209 = sand.u32 %s97, 1
        %s210 = scalar_lea.sflag [#allocation4], %s209
        %s211 = sand.u32 %s97, 1
        %s212 = smul.addr %s211, 32
        %s213 = scalar_lea.vmem [#allocation8], %s212
        %s214 = smul.u32 8, %s21
        %s215 = smul.u32 8, %s21
        %v216 = vld [vmem:[%s183] sm:$0xff]
        %v217 = vld [vmem:[%s183 + $0x8] sm:$0xff]
        %v218 = vld [vmem:[%s183 + $0x10] sm:$0xff]
        %v219 = vld [vmem:[%s183 + $0x18] sm:$0xff]
        %v220 = vld [vmem:[%s183 + $0x20] sm:$0xff]
        %v221 = vld [vmem:[%s183 + $0x28] sm:$0xff]
        %v222 = vld [vmem:[%s183 + $0x30] sm:$0xff]
        %v223 = vld [vmem:[%s183 + $0x38] sm:$0xff]
        %v224 = vld [vmem:[#allocation5] sm:$0x1]
        %v226 = vlaneseq
        %v227 = vshrl.u32 %v226, 7
        %v228 = vsub.s32 0, %v227
        %v229 = vrot.slane %v224, %v228
        %v231 = vmul.f32 %v216, %v229
        %v232 = vmul.f32 %v217, %v229
        %v233 = vmul.f32 %v218, %v229
        %v234 = vmul.f32 %v219, %v229
        %v235 = vmul.f32 %v220, %v229
        %v236 = vmul.f32 %v221, %v229
        %v237 = vmul.f32 %v222, %v229
        %v238 = vmul.f32 %v223, %v229
        %v239 = vld [vmem:[#allocation7] sm:$0x1]
        %v241 = vlaneseq
        %v242 = vshrl.u32 %v241, 7
        %v243 = vsub.s32 0, %v242
        %v244 = vrot.slane %v239, %v243
        %v246 = vadd.f32 %v231, %v244
        %v247 = vadd.f32 %v232, %v244
        %v248 = vadd.f32 %v233, %v244
        %v249 = vadd.f32 %v234, %v244
        %v250 = vadd.f32 %v235, %v244
        %v251 = vadd.f32 %v236, %v244
        %v252 = vadd.f32 %v237, %v244
        %v253 = vadd.f32 %v238, %v244
        %v254 = vmax.f32 %v246, 0.0
        %v255 = vmax.f32 %v247, 0.0
        %v256 = vmax.f32 %v248, 0.0
        %v257 = vmax.f32 %v249, 0.0
        %v258 = vmax.f32 %v250, 0.0
        %v259 = vmax.f32 %v251, 0.0
        %v260 = vmax.f32 %v252, 0.0
        %v261 = vmax.f32 %v253, 0.0
        %v262 = vpack.c.bf16 %v255, %v254
        %v263 = vpack.c.bf16 %v257, %v256
        %v264 = vpack.c.bf16 %v259, %v258
        %v265 = vpack.c.bf16 %v261, %v260
        %v270 = vunpack.c.l.b16 %v262
        %v271 = vunpack.c.h.b16 %v262
        %v272 = vunpack.c.l.b16 %v263
        %v273 = vunpack.c.h.b16 %v263
        %v274 = vunpack.c.l.b16 %v264
        %v275 = vunpack.c.h.b16 %v264
        %v276 = vunpack.c.l.b16 %v265
        %v277 = vunpack.c.h.b16 %v265
        %v278 = vpack.c.b16 %v270, %v270
        %v279 = vpack.c.b16 %v271, %v271
        %v280 = vpack.c.b16 %v272, %v272
        %v281 = vpack.c.b16 %v273, %v273
        %v282 = vpack.c.b16 %v274, %v274
        %v283 = vpack.c.b16 %v275, %v275
        %v284 = vpack.c.b16 %v276, %v276
        %v285 = vpack.c.b16 %v277, %v277
        %vm294 = vcmask 519168
        %295 = vst.msk [vmem:[%s213] sm:$0xf] %vm294, %v278
        %296 = vst.msk [vmem:[%s213 + $0x4] sm:$0xf] %vm294, %v279
        %297 = vst.msk [vmem:[%s213 + $0x8] sm:$0xf] %vm294, %v280
        %298 = vst.msk [vmem:[%s213 + $0xc] sm:$0xf] %vm294, %v281
        %299 = vst.msk [vmem:[%s213 + $0x10] sm:$0xf] %vm294, %v282
        %300 = vst.msk [vmem:[%s213 + $0x14] sm:$0xf] %vm294, %v283
        %301 = vst.msk [vmem:[%s213 + $0x18] sm:$0xf] %vm294, %v284
        %302 = vst.msk [vmem:[%s213 + $0x1c] sm:$0xf] %vm294, %v285
        %s303 = sand.u32 %s97, 1
        %s304 = scalar_lea.sflag [#allocation4], %s303
        %s305 = sand.u32 %s97, 1
        %s306 = smul.addr %s305, 32
        %s307 = scalar_lea.vmem [#allocation8], %s306
        // Predicated region
        $region45: #{dcgan_generator_forward.14} parent=31 // pred_check
          %p308 = pneg %p107
        $region46: #{dcgan_generator_forward.14} parent=31 // pred_check_branch
          %310 = sbr.rel (%p308) target = $region48
        $region47: #{dcgan_generator_forward.14} parent=31 // pred_region
          %s311 = smul.u32 8, %s21
          %s313 = ssub.s32 512, 512
          %314 = vsyncadd %s304, %s313
          %s315 = smul.addr %s311, 64
          %s316 = scalar_lea.hbm %s3, %s315
          %s317 = sshll.u32 %s307, 4
          %s318 = int_to_ptr.vmem [resolvable:$true] %s317
          %323 = dma.vmem_to_hbm [thread:$0]  %s318, 512, %s316, %s304, 64, 64, 4
        $region48: #{dcgan_generator_forward.14} parent=31 // pred_fallthru
          _
      $region32: #{dcgan_generator_forward.14} parent=5 // pred_fallthru
        _
      %p324 = scmp.le.s32.totalorder 2, %s16
      // Predicated region
      $region49: #{dcgan_generator_forward.14} parent=5 // pred_check
        %p325 = pneg %p324
      $region50: #{dcgan_generator_forward.14} parent=5 // pred_check_branch
        %327 = sbr.rel (%p325) target = $region52
      $region51: #{dcgan_generator_forward.14} parent=5 // pred_region
        %s328 = ssub.s32 %s16, 2
        // Predicated region
        $region53: #{dcgan_generator_forward.14} parent=51 // pred_check
          %p329 = pneg %p113
        $region54: #{dcgan_generator_forward.14} parent=51 // pred_check_branch
          %331 = sbr.rel (%p329) target = $region56
        $region55: #{dcgan_generator_forward.14} parent=51 // pred_region
          %s332 = sand.u32 %s98, 1
          %s333 = scalar_lea.sflag [#allocation4], %s332
          %s334 = sand.u32 %s98, 1
          %s335 = smul.addr %s334, 32
          %s336 = scalar_lea.vmem [#allocation8], %s335
          %337 = dma.done %s333, 512
        $region56: #{dcgan_generator_forward.14} parent=51 // pred_fallthru
          _
      $region52: #{dcgan_generator_forward.14} parent=5 // pred_fallthru
        _
    $region6: #{dcgan_generator_forward.14} parent=1 // loop_footer
      %s20 = sadd.s32 1, %s16
    $region7: #{dcgan_generator_forward.14} parent=1 // loop_footer_branch
      %15 = sbr.rel target = $region3
    $region8: #{dcgan_generator_forward.14} parent=1 // loop_exit
      _
    %338 = vsyncpa [#allocation3], 1
    %s339 = scalar_lea.sflag [#allocation3], 1
    %340 = vsyncpa %s339, 1
    %341 = vsyncpa [#allocation6], 1
    %342 = vsyncpa [#allocation4], 1
    %s343 = scalar_lea.sflag [#allocation4], 1
    %344 = vsyncpa %s343, 1

// kernel: tile.73
$region0: #{tile.73}
  #allocation0 [shape = 's32[1]{0}', space=sflag, size = 0x4, scoped, tag = 'scoped memory for tile.73']
  %s0 = inlined_call_operand.vmem [shape: f32[8], index: 0, kind: input, shape index: {}]
  %s1 = inlined_call_operand.vmem [shape: f32[4,8], index: 1, kind: output, shape index: {}]
  // Predicated region
  $region2: #{tile.73} parent=0 // pred_check
    _
  $region3: #{tile.73} parent=0 // pred_check_branch
    %3 = sbr.rel (0) target = $region5
  $region4: #{tile.73} parent=0 // pred_region
    _
  $region5: #{tile.73} parent=0 // pred_fallthru
    _
  %v4 = vld [vmem:[%s0] ss:$0 sm:$0xff]
  %5 = vst [vmem:[%s1] sm:$0xf] %v4

// kernel: tile.78
$region0: #{tile.78}
  %s0 = inlined_call_operand.vmem [shape: f32[4,8], index: 0, kind: input, shape index: {}]
  %s1 = inlined_call_operand.hbm [shape: f32[1,32], index: 1, kind: output, shape index: {}]
  $region1: #{tile.78} parent=0
    #allocation0 [shape = 'u8[512]{0}', space=vmem, size = 0x400, scoped, tag = 'operand span for operand 1']
    #allocation1 [shape = 's32[1]{0}', space=sflag, size = 0x4, scoped, tag = 'scoped memory for tile.78']
    #allocation2 [shape = 'u8[4096]{0}', space=vmem, size = 0x1000, scoped, tag = 'scoped mem for output reshape']
    #allocation3 [shape = 'u8[4096]{0}', space=vmem, size = 0x1000, scoped, tag = 'scoped mem for input reshape']
    %2 = vsyncpa [#allocation1], 0
    %s4 = sshllo.u32 0, 4
    %v5 = vld [vmem:[%s0] sm:%s4]
    %6 = vst [vmem:[#allocation3] sm:%s4] %v5
    %v7 = vld [vmem:[#allocation3] sm:$0x1]
    %vm8 = vcmask 64512
    %9 = vst.msk [vmem:[#allocation2] sm:$0x1] %vm8, %v7
    %s10 = scalar_lea.vmem [#allocation3], 3
    %v11 = vld [vmem:[%s10] sm:$0x1]
    %12 = vrot.lane.b32.xlu0 %v11, 24
    %v13 = vpop.permute.xlu0 %12
    %vm14 = vcmask 261312
    %15 = vst.msk [vmem:[#allocation2] sm:$0x1] %vm14, %v13
    %s16 = scalar_lea.vmem [#allocation3], 2
    %v17 = vld [vmem:[%s16] sm:$0x1]
    %18 = vrot.lane.b32.xlu0 %v17, 16
    %v19 = vpop.permute.xlu0 %18
    %vm20 = vcmask 195712
    %21 = vst.msk [vmem:[#allocation2] sm:$0x1] %vm20, %v19
    %s22 = scalar_lea.vmem [#allocation3], 1
    %v23 = vld [vmem:[%s22] sm:$0x1]
    %24 = vrot.lane.b32.xlu0 %v23, 8
    %v25 = vpop.permute.xlu0 %24
    %vm26 = vcmask 130112
    %27 = vst.msk [vmem:[#allocation2] sm:$0x1] %vm26, %v25
    %s29 = sshllo.u32 0, 1
    %v31 = vld [vmem:[#allocation2] sm:%s29]
    %s32 = sshllo.u32 0, 1
    %33 = vst [vmem:[#allocation0] sm:%s32] %v31
    %s35 = ssub.s32 16, 16
    %36 = vsyncadd [#allocation1], %s35
    %s38 = sshll.u32 [#allocation0], 4
    %s39 = int_to_ptr.vmem [resolvable:$true] %s38
    %41 = dma.vmem_to_hbm [thread:$0]  %s39, 16, %s1, [#allocation1]
    %42 = dma.done [#allocation1], 16
    %43 = vsyncpa [#allocation1], 1

// kernel: dcgan_generator_forward.15
$region0: #{dcgan_generator_forward.15}
  #allocation0 [shape = 'u32[]', space=smem, size = 0x4, offset = 0x4, fixed_abs, tag = 'smem constant byte address 0x4 - core index']
  #allocation1 [shape = 'u32[144,128]{1,0:T(1,128)}', space=vmem, size = 0x12000, scoped, tag = 'internal scratch']
  %s0 = inlined_call_operand.hbm [shape: bf16[512,144], index: 0, kind: input, shape index: {}]
  %s1 = inlined_call_operand.hbm [shape: bf16[144,32], index: 1, kind: input, shape index: {}]
  %s2 = inlined_call_operand.hbm [shape: f32[512,32], index: 2, kind: output, shape index: {0}]
  %s3 = inlined_call_operand.hbm [shape: f32[16,32], index: 3, kind: output, shape index: {1}]
  %4 = xla_tuple %s2, %s3
  %s5 = sld [smem:[#allocation0]]
  $region57: #{dcgan_generator_forward.15} parent=0
    _
  %s7 = ssub.s32 1, %s5
  %s8 = scalar_select 0, %s7, %s5
  $region1: #{dcgan_generator_forward.15} parent=0
    #allocation2 [shape = 'u8[262144]{0}', space=vmem, size = 0x40000, scoped, tag = 'input window, operand 0']
    #allocation3 [shape = 's32[2]{0}', space=sflag, size = 0x8, scoped, tag = 'scoped memory for dcgan_generator_forward.15']
    #allocation4 [shape = 's32[2]{0}', space=sflag, size = 0x8, scoped, tag = 'scoped memory for dcgan_generator_forward.15']
    #allocation5 [shape = 'u8[36864]{0}', space=vmem, size = 0x9000, scoped, tag = 'input window, operand 1, single buffered']
    #allocation6 [shape = 's32[1]{0}', space=sflag, size = 0x4, scoped, tag = 'scoped memory for dcgan_generator_forward.15']
    #allocation7 [shape = 'u8[262144]{0}', space=vmem, size = 0x40000, scoped, tag = 'output window, operand 0']
    #allocation8 [shape = 'u8[8192]{0}', space=vmem, size = 0x2000, scoped, tag = 'output window, operand 1']
    #allocation9 [shape = 's32[2]{0}', space=sflag, size = 0x8, scoped, tag = 'scoped memory for dcgan_generator_forward.15']
    %9 = vsyncpa [#allocation3], 0
    %s10 = scalar_lea.sflag [#allocation3], 1
    %11 = vsyncpa %s10, 0
    %12 = vsyncpa [#allocation6], 0
    %13 = vsyncpa [#allocation4], 0
    %s14 = scalar_lea.sflag [#allocation4], 1
    %15 = vsyncpa %s14, 0
    %16 = vsyncpa [#allocation9], 0
    %s17 = scalar_lea.sflag [#allocation9], 1
    %18 = vsyncpa %s17, 0
    loop: start=0, step=1, limit=4
    $region2: #{dcgan_generator_forward.15} parent=1 // loop_pre_header
      _
    $region3: #{dcgan_generator_forward.15} parent=1 // loop_header
      %s20 = sphi 0, %s24
      %p21 = scmp.ge.s32.totalorder %s20, 4
      %s30 = sphi 0, %s32
      %s33 = sphi 0, %s30
      %s34 = sphi 0, %s33
      %s50 = sphi 0, %s34
      %s54 = sphi 0, %s54
      %s56 = sphi 0, %s54
      %s57 = sphi 0, %s56
      %s71 = sphi 0, %s57
      %s77 = sphi 0, %s79
      %s80 = sphi 0, %s77
      %s81 = sphi 0, %s80
      %s97 = sphi 0, %s81
      %s103 = sphi 0, %s105
      %s106 = sphi 0, %s103
      %s107 = sphi 0, %s106
      %s123 = sphi 0, %s107
    $region4: #{dcgan_generator_forward.15} parent=1 // loop_header_branch
      %23 = sbr.rel (%p21) target = $region8
    $region5: #{dcgan_generator_forward.15} parent=1 // loop_body
      %s25 = ssub.s32 %s20, 1
      %s26 = ssub.s32 %s20, 2
      %s27 = sadd.s32 %s20, 1
      %s28 = ssub.s32 %s20, %s27
      %p29 = scmp.eq.s32.totalorder %s28, 0
      %s31 = sadd.s32 %s30, 1
      %s32 = scalar_select %p29, %s30, %s31
      %p35 = pneg %p29
      %p36 = scmp.eq.s32.totalorder %s20, 1
      %p37 = por %p35, %p36
      %p38 = scmp.ne.s32.totalorder %s30, %s33
      %p39 = scmp.eq.s32.totalorder %s20, 0
      %p40 = por %p38, %p39
      %p41 = scmp.ne.s32.totalorder %s30, %s33
      %p42 = scmp.eq.s32.totalorder %s25, 1
      %p43 = por %p41, %p42
      %p44 = scmp.ne.s32.totalorder %s33, %s34
      %p45 = scmp.eq.s32.totalorder %s25, 0
      %p46 = por %p44, %p45
      %p47 = scmp.ne.s32.totalorder %s33, %s34
      %p48 = scmp.eq.s32.totalorder %s26, 1
      %p49 = por %p47, %p48
      %p51 = scmp.ne.s32.totalorder %s34, %s50
      %p52 = scmp.eq.s32.totalorder %s26, 0
      %p53 = por %p51, %p52
      %s55 = sadd.s32 %s54, 1
      %p58 = scmp.eq.s32.totalorder %s20, 1
      %p59 = scmp.ne.s32.totalorder %s54, %s56
      %p60 = scmp.eq.s32.totalorder %s20, 0
      %p61 = por %p59, %p60
      %p62 = scmp.ne.s32.totalorder %s54, %s56
      %p63 = scmp.eq.s32.totalorder %s25, 1
      %p64 = por %p62, %p63
      %p65 = scmp.ne.s32.totalorder %s56, %s57
      %p66 = scmp.eq.s32.totalorder %s25, 0
      %p67 = por %p65, %p66
      %p68 = scmp.ne.s32.totalorder %s56, %s57
      %p69 = scmp.eq.s32.totalorder %s26, 1
      %p70 = por %p68, %p69
      %p72 = scmp.ne.s32.totalorder %s57, %s71
      %p73 = scmp.eq.s32.totalorder %s26, 0
      %p74 = por %p72, %p73
      %s75 = ssub.s32 %s20, %s27
      %p76 = scmp.eq.s32.totalorder %s75, 0
      %s78 = sadd.s32 %s77, 1
      %s79 = scalar_select %p76, %s77, %s78
      %p82 = pneg %p76
      %p83 = scmp.eq.s32.totalorder %s20, 1
      %p84 = por %p82, %p83
      %p85 = scmp.ne.s32.totalorder %s77, %s80
      %p86 = scmp.eq.s32.totalorder %s20, 0
      %p87 = por %p85, %p86
      %p88 = scmp.ne.s32.totalorder %s77, %s80
      %p89 = scmp.eq.s32.totalorder %s25, 1
      %p90 = por %p88, %p89
      %p91 = scmp.ne.s32.totalorder %s80, %s81
      %p92 = scmp.eq.s32.totalorder %s25, 0
      %p93 = por %p91, %p92
      %p94 = scmp.ne.s32.totalorder %s80, %s81
      %p95 = scmp.eq.s32.totalorder %s26, 1
      %p96 = por %p94, %p95
      %p98 = scmp.ne.s32.totalorder %s81, %s97
      %p99 = scmp.eq.s32.totalorder %s26, 0
      %p100 = por %p98, %p99
      %s101 = ssub.s32 %s20, %s27
      %p102 = scmp.eq.s32.totalorder %s101, 0
      %s104 = sadd.s32 %s103, 1
      %s105 = scalar_select %p102, %s103, %s104
      %p108 = pneg %p102
      %p109 = scmp.eq.s32.totalorder %s20, 1
      %p110 = por %p108, %p109
      %p111 = scmp.ne.s32.totalorder %s103, %s106
      %p112 = scmp.eq.s32.totalorder %s20, 0
      %p113 = por %p111, %p112
      %p114 = scmp.ne.s32.totalorder %s103, %s106
      %p115 = scmp.eq.s32.totalorder %s25, 1
      %p116 = por %p114, %p115
      %p117 = scmp.ne.s32.totalorder %s106, %s107
      %p118 = scmp.eq.s32.totalorder %s25, 0
      %p119 = por %p117, %p118
      %p120 = scmp.ne.s32.totalorder %s106, %s107
      %p121 = scmp.eq.s32.totalorder %s26, 1
      %p122 = por %p120, %p121
      %p124 = scmp.ne.s32.totalorder %s107, %s123
      %p125 = scmp.eq.s32.totalorder %s26, 0
      %p126 = por %p124, %p125
      %p127 = scmp.le.s32.totalorder 1, %s20
      %p128 = scmp.lt.s32.totalorder %s20, 3
      %p129 = pnand %p127, %p128
      %p130 = pneg %p129
      // Predicated region
      $region9: #{dcgan_generator_forward.15} parent=5 // pred_check
        _
      $region10: #{dcgan_generator_forward.15} parent=5 // pred_check_branch
        %132 = sbr.rel (%p129) target = $region12
      $region11: #{dcgan_generator_forward.15} parent=5 // pred_region
        %s133 = ssub.s32 %s20, 1
        // Predicated region
        $region13: #{dcgan_generator_forward.15} parent=11 // pred_check
          %p134 = pneg %p67
        $region14: #{dcgan_generator_forward.15} parent=11 // pred_check_branch
          %136 = sbr.rel (%p134) target = $region16
        $region15: #{dcgan_generator_forward.15} parent=11 // pred_region
          %s138 = ssub.s32 1152, 1152
          %139 = vsyncadd [#allocation6], %s138
          %s140 = sshll.u32 [#allocation5], 4
          %s141 = int_to_ptr.vmem [resolvable:$true] %s140
          %146 = dma.hbm_to_vmem [thread:$0]  %s1, 1152, %s141, [#allocation6], 64, 64, 4
        $region16: #{dcgan_generator_forward.15} parent=11 // pred_fallthru
          _
      $region12: #{dcgan_generator_forward.15} parent=5 // pred_fallthru
        _
      %p147 = scmp.lt.s32.totalorder %s20, 2
      // Predicated region
      $region17: #{dcgan_generator_forward.15} parent=5 // pred_check
        %p148 = pneg %p147
      $region18: #{dcgan_generator_forward.15} parent=5 // pred_check_branch
        %150 = sbr.rel (%p148) target = $region20
      $region19: #{dcgan_generator_forward.15} parent=5 // pred_region
        // Predicated region
        $region21: #{dcgan_generator_forward.15} parent=19 // pred_check
          %p151 = pneg %p40
        $region22: #{dcgan_generator_forward.15} parent=19 // pred_check_branch
          %153 = sbr.rel (%p151) target = $region24
        $region23: #{dcgan_generator_forward.15} parent=19 // pred_region
          %s154 = sand.u32 %s30, 1
          %s155 = scalar_lea.sflag [#allocation3], %s154
          %s156 = sand.u32 %s30, 1
          %s157 = smul.addr %s156, 256
          %s158 = scalar_lea.vmem [#allocation2], %s157
          %s159 = smul.u32 32, %s20
          %s161 = ssub.s32 4096, 4096
          %162 = vsyncadd %s155, %s161
          %s163 = smul.addr %s159, 2
          %s164 = smul.addr %s163, 64
          %s165 = scalar_lea.hbm %s0, %s164
          %s166 = sshll.u32 %s158, 4
          %s167 = int_to_ptr.vmem [resolvable:$true] %s166
          %172 = dma.hbm_to_vmem [thread:$0]  %s165, 4096, %s167, %s155, 128, 128, 8
        $region24: #{dcgan_generator_forward.15} parent=19 // pred_fallthru
          _
      $region20: #{dcgan_generator_forward.15} parent=5 // pred_fallthru
        _
      %p173 = scmp.le.s32.totalorder 1, %s20
      %p174 = scmp.lt.s32.totalorder %s20, 3
      %p175 = pnand %p173, %p174
      %p176 = pneg %p175
      // Predicated region
      $region25: #{dcgan_generator_forward.15} parent=5 // pred_check
        _
      $region26: #{dcgan_generator_forward.15} parent=5 // pred_check_branch
        %178 = sbr.rel (%p175) target = $region28
      $region27: #{dcgan_generator_forward.15} parent=5 // pred_region
        %s179 = ssub.s32 %s20, 1
        %s180 = sand.u32 %s33, 1
        %s181 = scalar_lea.sflag [#allocation3], %s180
        %s182 = sand.u32 %s33, 1
        %s183 = smul.addr %s182, 256
        %s184 = scalar_lea.vmem [#allocation2], %s183
        // Predicated region
        $region29: #{dcgan_generator_forward.15} parent=27 // pred_check
          %p185 = pneg %p46
        $region30: #{dcgan_generator_forward.15} parent=27 // pred_check_branch
          %187 = sbr.rel (%p185) target = $region32
        $region31: #{dcgan_generator_forward.15} parent=27 // pred_region
          %188 = dma.done %s181, 4096
        $region32: #{dcgan_generator_forward.15} parent=27 // pred_fallthru
          _
        // Predicated region
        $region33: #{dcgan_generator_forward.15} parent=27 // pred_check
          %p189 = pneg %p67
        $region34: #{dcgan_generator_forward.15} parent=27 // pred_check_branch
          %191 = sbr.rel (%p189) target = $region36
        $region35: #{dcgan_generator_forward.15} parent=27 // pred_region
          %192 = dma.done [#allocation6], 1152
        $region36: #{dcgan_generator_forward.15} parent=27 // pred_fallthru
          _
        %s193 = sand.u32 %s33, 1
        %s194 = scalar_lea.sflag [#allocation3], %s193
        %s195 = sand.u32 %s33, 1
        %s196 = smul.addr %s195, 256
        %s197 = scalar_lea.vmem [#allocation2], %s196
        %p198 = pneg %p46
        %p199 = pneg %p43
        %p200 = pneg %p67
        %p201 = pneg %p64
        %p202 = pneg %p93
        %p203 = pneg %p90
        %s204 = sand.u32 %s80, 1
        %s205 = scalar_lea.sflag [#allocation4], %s204
        %s206 = sand.u32 %s80, 1
        %s207 = smul.addr %s206, 256
        %s208 = scalar_lea.vmem [#allocation7], %s207
        %p209 = pneg %p119
        %p210 = pneg %p116
        %s211 = sand.u32 %s106, 1
        %s212 = scalar_lea.sflag [#allocation9], %s211
        %s213 = sand.u32 %s106, 1
        %s214 = smul.addr %s213, 8
        %s215 = scalar_lea.vmem [#allocation8], %s214
        %s216 = smul.u32 32, %s25
        %s217 = smul.u32 32, %s25
        %v219 = vld [vmem:[%s184] sm:$0xff]
        %v220 = vld [vmem:[%s184 + $0x8] sm:$0xff]
        %v221 = vld [vmem:[%s184 + $0x10] sm:$0xff]
        %v222 = vld [vmem:[%s184 + $0x18] sm:$0xff]
        %v223 = vld [vmem:[%s184 + $0x20] sm:$0xff]
        %v224 = vld [vmem:[%s184 + $0x28] sm:$0xff]
        %v225 = vld [vmem:[%s184 + $0x30] sm:$0xff]
        %v226 = vld [vmem:[%s184 + $0x38] sm:$0xff]
        %v227 = vld [vmem:[%s184 + $0x40] sm:$0xff]
        %v228 = vld [vmem:[%s184 + $0x48] sm:$0xff]
        %v229 = vld [vmem:[%s184 + $0x50] sm:$0xff]
        %v230 = vld [vmem:[%s184 + $0x58] sm:$0xff]
        %v231 = vld [vmem:[%s184 + $0x60] sm:$0xff]
        %v232 = vld [vmem:[%s184 + $0x68] sm:$0xff]
        %v233 = vld [vmem:[%s184 + $0x70] sm:$0xff]
        %v234 = vld [vmem:[%s184 + $0x78] sm:$0xff]
        %v235 = vld [vmem:[%s184 + $0x80] sm:$0xff]
        %v236 = vld [vmem:[%s184 + $0x88] sm:$0xff]
        %v237 = vld [vmem:[%s184 + $0x90] sm:$0xff]
        %v238 = vld [vmem:[%s184 + $0x98] sm:$0xff]
        %v239 = vld [vmem:[%s184 + $0xa0] sm:$0xff]
        %v240 = vld [vmem:[%s184 + $0xa8] sm:$0xff]
        %v241 = vld [vmem:[%s184 + $0xb0] sm:$0xff]
        %v242 = vld [vmem:[%s184 + $0xb8] sm:$0xff]
        %v243 = vld [vmem:[%s184 + $0xc0] sm:$0xff]
        %v244 = vld [vmem:[%s184 + $0xc8] sm:$0xff]
        %v245 = vld [vmem:[%s184 + $0xd0] sm:$0xff]
        %v246 = vld [vmem:[%s184 + $0xd8] sm:$0xff]
        %v247 = vld [vmem:[%s184 + $0xe0] sm:$0xff]
        %v248 = vld [vmem:[%s184 + $0xe8] sm:$0xff]
        %v249 = vld [vmem:[%s184 + $0xf0] sm:$0xff]
        %v250 = vld [vmem:[%s184 + $0xf8] sm:$0xff]
        %v251 = vld [vmem:[#allocation5] sm:$0xf]
        %v252 = vld [vmem:[#allocation5 + $0x4] sm:$0xf]
        %v253 = vld [vmem:[#allocation5 + $0x8] sm:$0xf]
        %v254 = vld [vmem:[#allocation5 + $0xc] sm:$0xf]
        %v255 = vld [vmem:[#allocation5 + $0x10] sm:$0xf]
        %v256 = vld [vmem:[#allocation5 + $0x14] sm:$0xf]
        %v257 = vld [vmem:[#allocation5 + $0x18] sm:$0xf]
        %v258 = vld [vmem:[#allocation5 + $0x1c] sm:$0xf]
        %v259 = vld [vmem:[#allocation5 + $0x20] sm:$0xf]
        %v260 = vld [vmem:[#allocation5 + $0x24] sm:$0xf]
        %v261 = vld [vmem:[#allocation5 + $0x28] sm:$0xf]
        %v262 = vld [vmem:[#allocation5 + $0x2c] sm:$0xf]
        %v263 = vld [vmem:[#allocation5 + $0x30] sm:$0xf]
        %v264 = vld [vmem:[#allocation5 + $0x34] sm:$0xf]
        %v265 = vld [vmem:[#allocation5 + $0x38] sm:$0xf]
        %v266 = vld [vmem:[#allocation5 + $0x3c] sm:$0xf]
        %v267 = vld [vmem:[#allocation5 + $0x40] sm:$0xf]
        %v268 = vld [vmem:[#allocation5 + $0x44] sm:$0xf]
        %v301 = vunpack.c.l.b16 %v219
        %v302 = vunpack.c.h.b16 %v219
        %v303 = vunpack.c.l.b16 %v220
        %v304 = vunpack.c.h.b16 %v220
        %v305 = vunpack.c.l.b16 %v221
        %v306 = vunpack.c.h.b16 %v221
        %v307 = vunpack.c.l.b16 %v222
        %v308 = vunpack.c.h.b16 %v222
        %v309 = vunpack.c.l.b16 %v223
        %v310 = vunpack.c.h.b16 %v223
        %v311 = vunpack.c.l.b16 %v224
        %v312 = vunpack.c.h.b16 %v224
        %v313 = vunpack.c.l.b16 %v225
        %v314 = vunpack.c.h.b16 %v225
        %v315 = vunpack.c.l.b16 %v226
        %v316 = vunpack.c.h.b16 %v226
        %v317 = vunpack.c.l.b16 %v227
        %v318 = vunpack.c.h.b16 %v227
        %v319 = vunpack.c.l.b16 %v228
        %v320 = vunpack.c.h.b16 %v228
        %v321 = vunpack.c.l.b16 %v229
        %v322 = vunpack.c.h.b16 %v229
        %v323 = vunpack.c.l.b16 %v230
        %v324 = vunpack.c.h.b16 %v230
        %v325 = vunpack.c.l.b16 %v231
        %v326 = vunpack.c.h.b16 %v231
        %v327 = vunpack.c.l.b16 %v232
        %v328 = vunpack.c.h.b16 %v232
        %v329 = vunpack.c.l.b16 %v233
        %v330 = vunpack.c.h.b16 %v233
        %v331 = vunpack.c.l.b16 %v234
        %v332 = vunpack.c.h.b16 %v234
        %v333 = vunpack.c.l.b16 %v235
        %v334 = vunpack.c.h.b16 %v235
        %v335 = vunpack.c.l.b16 %v236
        %v336 = vunpack.c.h.b16 %v236
        %v337 = vunpack.c.l.b16 %v237
        %v338 = vunpack.c.h.b16 %v237
        %v339 = vunpack.c.l.b16 %v238
        %v340 = vunpack.c.h.b16 %v238
        %v341 = vunpack.c.l.b16 %v239
        %v342 = vunpack.c.h.b16 %v239
        %v343 = vunpack.c.l.b16 %v240
        %v344 = vunpack.c.h.b16 %v240
        %v345 = vunpack.c.l.b16 %v241
        %v346 = vunpack.c.h.b16 %v241
        %v347 = vunpack.c.l.b16 %v242
        %v348 = vunpack.c.h.b16 %v242
        %v349 = vunpack.c.l.b16 %v243
        %v350 = vunpack.c.h.b16 %v243
        %v351 = vunpack.c.l.b16 %v244
        %v352 = vunpack.c.h.b16 %v244
        %v353 = vunpack.c.l.b16 %v245
        %v354 = vunpack.c.h.b16 %v245
        %v355 = vunpack.c.l.b16 %v246
        %v356 = vunpack.c.h.b16 %v246
        %v357 = vunpack.c.l.b16 %v247
        %v358 = vunpack.c.h.b16 %v247
        %v359 = vunpack.c.l.b16 %v248
        %v360 = vunpack.c.h.b16 %v248
        %v361 = vunpack.c.l.b16 %v249
        %v362 = vunpack.c.h.b16 %v249
        %v363 = vunpack.c.l.b16 %v250
        %v364 = vunpack.c.h.b16 %v250
        %v365 = vpack.c.b16 %v303, %v301
        %v366 = vpack.c.b16 %v304, %v302
        %v367 = vpack.c.b16 %v307, %v305
        %v368 = vpack.c.b16 %v308, %v306
        %v369 = vpack.c.b16 %v311, %v309
        %v370 = vpack.c.b16 %v312, %v310
        %v371 = vpack.c.b16 %v315, %v313
        %v372 = vpack.c.b16 %v316, %v314
        %v373 = vpack.c.b16 %v319, %v317
        %v374 = vpack.c.b16 %v320, %v318
        %v375 = vpack.c.b16 %v323, %v321
        %v376 = vpack.c.b16 %v324, %v322
        %v377 = vpack.c.b16 %v327, %v325
        %v378 = vpack.c.b16 %v328, %v326
        %v379 = vpack.c.b16 %v331, %v329
        %v380 = vpack.c.b16 %v332, %v330
        %v381 = vpack.c.b16 %v335, %v333
        %v382 = vpack.c.b16 %v336, %v334
        %v383 = vpack.c.b16 %v339, %v337
        %v384 = vpack.c.b16 %v340, %v338
        %v385 = vpack.c.b16 %v343, %v341
        %v386 = vpack.c.b16 %v344, %v342
        %v387 = vpack.c.b16 %v347, %v345
        %v388 = vpack.c.b16 %v348, %v346
        %v389 = vpack.c.b16 %v351, %v349
        %v390 = vpack.c.b16 %v352, %v350
        %v391 = vpack.c.b16 %v355, %v353
        %v392 = vpack.c.b16 %v356, %v354
        %v393 = vpack.c.b16 %v359, %v357
        %v394 = vpack.c.b16 %v360, %v358
        %v395 = vpack.c.b16 %v363, %v361
        %v396 = vpack.c.b16 %v364, %v362
        %v431 = vunpack.c.l.b16 %v251
        %v432 = vunpack.c.l.b16 %v252
        %v433 = vunpack.c.l.b16 %v253
        %v434 = vunpack.c.l.b16 %v254
        %v435 = vunpack.c.l.b16 %v255
        %v436 = vunpack.c.l.b16 %v256
        %v437 = vunpack.c.l.b16 %v257
        %v438 = vunpack.c.l.b16 %v258
        %v439 = vunpack.c.l.b16 %v259
        %v440 = vunpack.c.l.b16 %v260
        %v441 = vunpack.c.l.b16 %v261
        %v442 = vunpack.c.l.b16 %v262
        %v443 = vunpack.c.l.b16 %v263
        %v444 = vunpack.c.l.b16 %v264
        %v445 = vunpack.c.l.b16 %v265
        %v446 = vunpack.c.l.b16 %v266
        %v447 = vunpack.c.l.b16 %v267
        %v448 = vunpack.c.l.b16 %v268
        %v449 = vpack.c.b16 %v432, %v431
        %v450 = vpack.c.b16 %v434, %v433
        %v451 = vpack.c.b16 %v436, %v435
        %v452 = vpack.c.b16 %v438, %v437
        %v453 = vpack.c.b16 %v440, %v439
        %v454 = vpack.c.b16 %v442, %v441
        %v455 = vpack.c.b16 %v444, %v443
        %v456 = vpack.c.b16 %v446, %v445
        %v457 = vpack.c.b16 %v448, %v447
        %vm467 = vcmask 130048
        %v469 = vsel %vm467, %v366, 0
        %v472 = vsel %vm467, %v368, 0
        %v475 = vsel %vm467, %v370, 0
        %v478 = vsel %vm467, %v372, 0
        %v481 = vsel %vm467, %v374, 0
        %v484 = vsel %vm467, %v376, 0
        %v487 = vsel %vm467, %v378, 0
        %v490 = vsel %vm467, %v380, 0
        %v493 = vsel %vm467, %v382, 0
        %v496 = vsel %vm467, %v384, 0
        %v499 = vsel %vm467, %v386, 0
        %v502 = vsel %vm467, %v388, 0
        %v505 = vsel %vm467, %v390, 0
        %v508 = vsel %vm467, %v392, 0
        %v511 = vsel %vm467, %v394, 0
        %v514 = vsel %vm467, %v396, 0
        %516 = vmatprep.subr.bf16.mxu0 0
        %517 = vmatpush1.bf16.msra.mxu0 %v449
        %518 = vmatprep.subr.bf16.mxu0 0
        %519 = vmatpush1.bf16.msra.mxu0 %v450
        %520 = vmatprep.subr.bf16.mxu0 0
        %521 = vmatpush1.bf16.msra.mxu0 %v451
        %522 = vmatprep.subr.bf16.mxu0 0
        %523 = vmatpush1.bf16.msra.mxu0 %v452
        %524 = vmatprep.subr.bf16.mxu0 0
        %525 = vmatpush1.bf16.msra.mxu0 %v453
        %526 = vmatprep.subr.bf16.mxu0 0
        %527 = vmatpush1.bf16.msra.mxu0 %v454
        %528 = vmatprep.subr.bf16.mxu0 0
        %529 = vmatpush1.bf16.msra.mxu0 %v455
        %530 = vmatprep.subr.bf16.mxu0 0
        %531 = vmatpush1.bf16.msra.mxu0 %v456
        %532 = vmatprep.subr.bf16.mxu0 0
        %533 = vmatpush1.bf16.msra.mxu0 %v457
        %534 = vmatprep.subr.bf16.mxu0 0
        %535 = vmatpush1.bf16.msra.mxu0 0
        %536 = vmatprep.subr.bf16.mxu0 0
        %537 = vmatpush1.bf16.msra.mxu0 0
        %538 = vmatprep.subr.bf16.mxu0 0
        %539 = vmatpush1.bf16.msra.mxu0 0
        %540 = vmatprep.subr.bf16.mxu0 0
        %541 = vmatpush1.bf16.msra.mxu0 0
        %542 = vmatprep.subr.bf16.mxu0 0
        %543 = vmatpush1.bf16.msra.mxu0 0
        %544 = vmatprep.subr.bf16.mxu0 0
        %545 = vmatpush1.bf16.msra.mxu0 0
        %546 = vmatprep.subr.bf16.mxu0 0
        %547 = vmatpush1.bf16.msra.mxu0 0
        %548 = vmatprep.mubr.bf16.mxu0 %v469
        %549 = vmatmul.mubr.bf16.gmra.mrb[0].mxu0 %v365
        %v550 = vpop.f32.mrb[0].mxu0
        %v551 = vadd.f32 0.0, %v550
        %v552 = vpop.f32.mrb[0].mxu0
        %v553 = vpop.f32.mrb[0].mxu0
        %v554 = vadd.f32 0.0, %v553
        %v555 = vpop.f32.mrb[0].mxu0
        %556 = vmatprep.mubr.bf16.mxu0 %v472
        %557 = vmatmul.mubr.bf16.gmra.mrb[0].mxu0 %v367
        %v558 = vpop.f32.mrb[0].mxu0
        %v559 = vadd.f32 0.0, %v558
        %v560 = vpop.f32.mrb[0].mxu0
        %v561 = vpop.f32.mrb[0].mxu0
        %v562 = vadd.f32 0.0, %v561
        %v563 = vpop.f32.mrb[0].mxu0
        %564 = vmatprep.mubr.bf16.mxu0 %v475
        %565 = vmatmul.mubr.bf16.gmra.mrb[0].mxu0 %v369
        %v566 = vpop.f32.mrb[0].mxu0
        %v567 = vadd.f32 0.0, %v566
        %v568 = vpop.f32.mrb[0].mxu0
        %v569 = vpop.f32.mrb[0].mxu0
        %v570 = vadd.f32 0.0, %v569
        %v571 = vpop.f32.mrb[0].mxu0
        %572 = vmatprep.mubr.bf16.mxu0 %v478
        %573 = vmatmul.mubr.bf16.gmra.mrb[0].mxu0 %v371
        %v574 = vpop.f32.mrb[0].mxu0
        %v575 = vadd.f32 0.0, %v574
        %v576 = vpop.f32.mrb[0].mxu0
        %v577 = vpop.f32.mrb[0].mxu0
        %v578 = vadd.f32 0.0, %v577
        %v579 = vpop.f32.mrb[0].mxu0
        %580 = vmatprep.mubr.bf16.mxu0 %v481
        %581 = vmatmul.mubr.bf16.gmra.mrb[0].mxu0 %v373
        %v582 = vpop.f32.mrb[0].mxu0
        %v583 = vadd.f32 0.0, %v582
        %v584 = vpop.f32.mrb[0].mxu0
        %v585 = vpop.f32.mrb[0].mxu0
        %v586 = vadd.f32 0.0, %v585
        %v587 = vpop.f32.mrb[0].mxu0
        %588 = vmatprep.mubr.bf16.mxu0 %v484
        %589 = vmatmul.mubr.bf16.gmra.mrb[0].mxu0 %v375
        %v590 = vpop.f32.mrb[0].mxu0
        %v591 = vadd.f32 0.0, %v590
        %v592 = vpop.f32.mrb[0].mxu0
        %v593 = vpop.f32.mrb[0].mxu0
        %v594 = vadd.f32 0.0, %v593
        %v595 = vpop.f32.mrb[0].mxu0
        %596 = vmatprep.mubr.bf16.mxu0 %v487
        %597 = vmatmul.mubr.bf16.gmra.mrb[0].mxu0 %v377
        %v598 = vpop.f32.mrb[0].mxu0
        %v599 = vadd.f32 0.0, %v598
        %v600 = vpop.f32.mrb[0].mxu0
        %v601 = vpop.f32.mrb[0].mxu0
        %v602 = vadd.f32 0.0, %v601
        %v603 = vpop.f32.mrb[0].mxu0
        %604 = vmatprep.mubr.bf16.mxu0 %v490
        %605 = vmatmul.mubr.bf16.gmra.mrb[0].mxu0 %v379
        %v606 = vpop.f32.mrb[0].mxu0
        %v607 = vadd.f32 0.0, %v606
        %v608 = vpop.f32.mrb[0].mxu0
        %v609 = vpop.f32.mrb[0].mxu0
        %v610 = vadd.f32 0.0, %v609
        %v611 = vpop.f32.mrb[0].mxu0
        %612 = vmatprep.mubr.bf16.mxu0 %v493
        %613 = vmatmul.mubr.bf16.gmra.mrb[0].mxu0 %v381
        %v614 = vpop.f32.mrb[0].mxu0
        %v615 = vadd.f32 0.0, %v614
        %v616 = vpop.f32.mrb[0].mxu0
        %v617 = vpop.f32.mrb[0].mxu0
        %v618 = vadd.f32 0.0, %v617
        %v619 = vpop.f32.mrb[0].mxu0
        %620 = vmatprep.mubr.bf16.mxu0 %v496
        %621 = vmatmul.mubr.bf16.gmra.mrb[0].mxu0 %v383
        %v622 = vpop.f32.mrb[0].mxu0
        %v623 = vadd.f32 0.0, %v622
        %v624 = vpop.f32.mrb[0].mxu0
        %v625 = vpop.f32.mrb[0].mxu0
        %v626 = vadd.f32 0.0, %v625
        %v627 = vpop.f32.mrb[0].mxu0
        %628 = vmatprep.mubr.bf16.mxu0 %v499
        %629 = vmatmul.mubr.bf16.gmra.mrb[0].mxu0 %v385
        %v630 = vpop.f32.mrb[0].mxu0
        %v631 = vadd.f32 0.0, %v630
        %v632 = vpop.f32.mrb[0].mxu0
        %v633 = vpop.f32.mrb[0].mxu0
        %v634 = vadd.f32 0.0, %v633
        %v635 = vpop.f32.mrb[0].mxu0
        %636 = vmatprep.mubr.bf16.mxu0 %v502
        %637 = vmatmul.mubr.bf16.gmra.mrb[0].mxu0 %v387
        %v638 = vpop.f32.mrb[0].mxu0
        %v639 = vadd.f32 0.0, %v638
        %v640 = vpop.f32.mrb[0].mxu0
        %v641 = vpop.f32.mrb[0].mxu0
        %v642 = vadd.f32 0.0, %v641
        %v643 = vpop.f32.mrb[0].mxu0
        %644 = vmatprep.mubr.bf16.mxu0 %v505
        %645 = vmatmul.mubr.bf16.gmra.mrb[0].mxu0 %v389
        %v646 = vpop.f32.mrb[0].mxu0
        %v647 = vadd.f32 0.0, %v646
        %v648 = vpop.f32.mrb[0].mxu0
        %v649 = vpop.f32.mrb[0].mxu0
        %v650 = vadd.f32 0.0, %v649
        %v651 = vpop.f32.mrb[0].mxu0
        %652 = vmatprep.mubr.bf16.mxu0 %v508
        %653 = vmatmul.mubr.bf16.gmra.mrb[0].mxu0 %v391
        %v654 = vpop.f32.mrb[0].mxu0
        %v655 = vadd.f32 0.0, %v654
        %v656 = vpop.f32.mrb[0].mxu0
        %v657 = vpop.f32.mrb[0].mxu0
        %v658 = vadd.f32 0.0, %v657
        %v659 = vpop.f32.mrb[0].mxu0
        %660 = vmatprep.mubr.bf16.mxu0 %v511
        %661 = vmatmul.mubr.bf16.gmra.mrb[0].mxu0 %v393
        %v662 = vpop.f32.mrb[0].mxu0
        %v663 = vadd.f32 0.0, %v662
        %v664 = vpop.f32.mrb[0].mxu0
        %v665 = vpop.f32.mrb[0].mxu0
        %v666 = vadd.f32 0.0, %v665
        %v667 = vpop.f32.mrb[0].mxu0
        %668 = vmatprep.mubr.bf16.mxu0 %v514
        %669 = vmatmul.mubr.bf16.gmra.mrb[0].mxu0 %v395
        %v670 = vpop.f32.mrb[0].mxu0
        %v671 = vadd.f32 0.0, %v670
        %v672 = vpop.f32.mrb[0].mxu0
        %v673 = vpop.f32.mrb[0].mxu0
        %v674 = vadd.f32 0.0, %v673
        %v675 = vpop.f32.mrb[0].mxu0
        %676 = vdwg.mxu0
        %vm677 = vcmask 261120
        %v678 = vsel %vm677, %v551, 0.0
        %v679 = vsel %vm677, %v554, 0.0
        %v680 = vadd.f32 %v678, %v679
        %v681 = vsel %vm677, %v559, 0.0
        %v682 = vadd.f32 %v680, %v681
        %v683 = vsel %vm677, %v562, 0.0
        %v684 = vadd.f32 %v682, %v683
        %v685 = vsel %vm677, %v567, 0.0
        %v686 = vadd.f32 %v684, %v685
        %v687 = vsel %vm677, %v570, 0.0
        %v688 = vadd.f32 %v686, %v687
        %v689 = vsel %vm677, %v575, 0.0
        %v690 = vadd.f32 %v688, %v689
        %v691 = vsel %vm677, %v578, 0.0
        %v692 = vadd.f32 %v690, %v691
        %v693 = vsel %vm677, %v583, 0.0
        %v694 = vadd.f32 %v692, %v693
        %v695 = vsel %vm677, %v586, 0.0
        %v696 = vadd.f32 %v694, %v695
        %v697 = vsel %vm677, %v591, 0.0
        %v698 = vadd.f32 %v696, %v697
        %v699 = vsel %vm677, %v594, 0.0
        %v700 = vadd.f32 %v698, %v699
        %v701 = vsel %vm677, %v599, 0.0
        %v702 = vadd.f32 %v700, %v701
        %v703 = vsel %vm677, %v602, 0.0
        %v704 = vadd.f32 %v702, %v703
        %v705 = vsel %vm677, %v607, 0.0
        %v706 = vadd.f32 %v704, %v705
        %v707 = vsel %vm677, %v610, 0.0
        %v708 = vadd.f32 %v706, %v707
        %v709 = vsel %vm677, %v615, 0.0
        %v710 = vadd.f32 %v708, %v709
        %v711 = vsel %vm677, %v618, 0.0
        %v712 = vadd.f32 %v710, %v711
        %v713 = vsel %vm677, %v623, 0.0
        %v714 = vadd.f32 %v712, %v713
        %v715 = vsel %vm677, %v626, 0.0
        %v716 = vadd.f32 %v714, %v715
        %v717 = vsel %vm677, %v631, 0.0
        %v718 = vadd.f32 %v716, %v717
        %v719 = vsel %vm677, %v634, 0.0
        %v720 = vadd.f32 %v718, %v719
        %v721 = vsel %vm677, %v639, 0.0
        %v722 = vadd.f32 %v720, %v721
        %v723 = vsel %vm677, %v642, 0.0
        %v724 = vadd.f32 %v722, %v723
        %v725 = vsel %vm677, %v647, 0.0
        %v726 = vadd.f32 %v724, %v725
        %v727 = vsel %vm677, %v650, 0.0
        %v728 = vadd.f32 %v726, %v727
        %v729 = vsel %vm677, %v655, 0.0
        %v730 = vadd.f32 %v728, %v729
        %v731 = vsel %vm677, %v658, 0.0
        %v732 = vadd.f32 %v730, %v731
        %v733 = vsel %vm677, %v663, 0.0
        %v734 = vadd.f32 %v732, %v733
        %v735 = vsel %vm677, %v666, 0.0
        %v736 = vadd.f32 %v734, %v735
        %v737 = vsel %vm677, %v671, 0.0
        %v738 = vadd.f32 %v736, %v737
        %v739 = vsel %vm677, %v674, 0.0
        %v740 = vadd.f32 %v738, %v739
        %v741 = vrot.slane %v740, 4
        %v742 = vadd.f32 %v740, %v741
        %v743 = vrot.slane %v742, 2
        %v744 = vadd.f32 %v742, %v743
        %v745 = vrot.slane %v744, 1
        %v746 = vadd.f32 %v744, %v745
        %v747 = vmul.f32 %v551, %v551
        %v748 = vmul.f32 %v554, %v554
        %v749 = vmul.f32 %v559, %v559
        %v750 = vmul.f32 %v562, %v562
        %v751 = vmul.f32 %v567, %v567
        %v752 = vmul.f32 %v570, %v570
        %v753 = vmul.f32 %v575, %v575
        %v754 = vmul.f32 %v578, %v578
        %v755 = vmul.f32 %v583, %v583
        %v756 = vmul.f32 %v586, %v586
        %v757 = vmul.f32 %v591, %v591
        %v758 = vmul.f32 %v594, %v594
        %v759 = vmul.f32 %v599, %v599
        %v760 = vmul.f32 %v602, %v602
        %v761 = vmul.f32 %v607, %v607
        %v762 = vmul.f32 %v610, %v610
        %v763 = vmul.f32 %v615, %v615
        %v764 = vmul.f32 %v618, %v618
        %v765 = vmul.f32 %v623, %v623
        %v766 = vmul.f32 %v626, %v626
        %v767 = vmul.f32 %v631, %v631
        %v768 = vmul.f32 %v634, %v634
        %v769 = vmul.f32 %v639, %v639
        %v770 = vmul.f32 %v642, %v642
        %v771 = vmul.f32 %v647, %v647
        %v772 = vmul.f32 %v650, %v650
        %v773 = vmul.f32 %v655, %v655
        %v774 = vmul.f32 %v658, %v658
        %v775 = vmul.f32 %v663, %v663
        %v776 = vmul.f32 %v666, %v666
        %v777 = vmul.f32 %v671, %v671
        %v778 = vmul.f32 %v674, %v674
        %v779 = vsel %vm677, %v747, 0.0
        %v780 = vsel %vm677, %v748, 0.0
        %v781 = vadd.f32 %v779, %v780
        %v782 = vsel %vm677, %v749, 0.0
        %v783 = vadd.f32 %v781, %v782
        %v784 = vsel %vm677, %v750, 0.0
        %v785 = vadd.f32 %v783, %v784
        %v786 = vsel %vm677, %v751, 0.0
        %v787 = vadd.f32 %v785, %v786
        %v788 = vsel %vm677, %v752, 0.0
        %v789 = vadd.f32 %v787, %v788
        %v790 = vsel %vm677, %v753, 0.0
        %v791 = vadd.f32 %v789, %v790
        %v792 = vsel %vm677, %v754, 0.0
        %v793 = vadd.f32 %v791, %v792
        %v794 = vsel %vm677, %v755, 0.0
        %v795 = vadd.f32 %v793, %v794
        %v796 = vsel %vm677, %v756, 0.0
        %v797 = vadd.f32 %v795, %v796
        %v798 = vsel %vm677, %v757, 0.0
        %v799 = vadd.f32 %v797, %v798
        %v800 = vsel %vm677, %v758, 0.0
        %v801 = vadd.f32 %v799, %v800
        %v802 = vsel %vm677, %v759, 0.0
        %v803 = vadd.f32 %v801, %v802
        %v804 = vsel %vm677, %v760, 0.0
        %v805 = vadd.f32 %v803, %v804
        %v806 = vsel %vm677, %v761, 0.0
        %v807 = vadd.f32 %v805, %v806
        %v808 = vsel %vm677, %v762, 0.0
        %v809 = vadd.f32 %v807, %v808
        %v810 = vsel %vm677, %v763, 0.0
        %v811 = vadd.f32 %v809, %v810
        %v812 = vsel %vm677, %v764, 0.0
        %v813 = vadd.f32 %v811, %v812
        %v814 = vsel %vm677, %v765, 0.0
        %v815 = vadd.f32 %v813, %v814
        %v816 = vsel %vm677, %v766, 0.0
        %v817 = vadd.f32 %v815, %v816
        %v818 = vsel %vm677, %v767, 0.0
        %v819 = vadd.f32 %v817, %v818
        %v820 = vsel %vm677, %v768, 0.0
        %v821 = vadd.f32 %v819, %v820
        %v822 = vsel %vm677, %v769, 0.0
        %v823 = vadd.f32 %v821, %v822
        %v824 = vsel %vm677, %v770, 0.0
        %v825 = vadd.f32 %v823, %v824
        %v826 = vsel %vm677, %v771, 0.0
        %v827 = vadd.f32 %v825, %v826
        %v828 = vsel %vm677, %v772, 0.0
        %v829 = vadd.f32 %v827, %v828
        %v830 = vsel %vm677, %v773, 0.0
        %v831 = vadd.f32 %v829, %v830
        %v832 = vsel %vm677, %v774, 0.0
        %v833 = vadd.f32 %v831, %v832
        %v834 = vsel %vm677, %v775, 0.0
        %v835 = vadd.f32 %v833, %v834
        %v836 = vsel %vm677, %v776, 0.0
        %v837 = vadd.f32 %v835, %v836
        %v838 = vsel %vm677, %v777, 0.0
        %v839 = vadd.f32 %v837, %v838
        %v840 = vsel %vm677, %v778, 0.0
        %v841 = vadd.f32 %v839, %v840
        %v842 = vrot.slane %v841, 4
        %v843 = vadd.f32 %v841, %v842
        %v844 = vrot.slane %v843, 2
        %v845 = vadd.f32 %v843, %v844
        %v846 = vrot.slane %v845, 1
        %v847 = vadd.f32 %v845, %v846
        %vm848 = vcmask 1040384
        %v849 = vsel %vm848, %v746, %v847
        %vm850 = vcmask 1041408
        %v851 = vsel %vm850, %v849, 0.0
        %852 = vst.msk [vmem:[%s215] sm:$0xff] %vm677, %v851
        %853 = vst.msk [vmem:[%s208] sm:$0xff] %vm677, %v551
        %854 = vst.msk [vmem:[%s208 + $0x8] sm:$0xff] %vm677, %v554
        %855 = vst.msk [vmem:[%s208 + $0x10] sm:$0xff] %vm677, %v559
        %856 = vst.msk [vmem:[%s208 + $0x18] sm:$0xff] %vm677, %v562
        %857 = vst.msk [vmem:[%s208 + $0x20] sm:$0xff] %vm677, %v567
        %858 = vst.msk [vmem:[%s208 + $0x28] sm:$0xff] %vm677, %v570
        %859 = vst.msk [vmem:[%s208 + $0x30] sm:$0xff] %vm677, %v575
        %860 = vst.msk [vmem:[%s208 + $0x38] sm:$0xff] %vm677, %v578
        %861 = vst.msk [vmem:[%s208 + $0x40] sm:$0xff] %vm677, %v583
        %862 = vst.msk [vmem:[%s208 + $0x48] sm:$0xff] %vm677, %v586
        %863 = vst.msk [vmem:[%s208 + $0x50] sm:$0xff] %vm677, %v591
        %864 = vst.msk [vmem:[%s208 + $0x58] sm:$0xff] %vm677, %v594
        %865 = vst.msk [vmem:[%s208 + $0x60] sm:$0xff] %vm677, %v599
        %866 = vst.msk [vmem:[%s208 + $0x68] sm:$0xff] %vm677, %v602
        %867 = vst.msk [vmem:[%s208 + $0x70] sm:$0xff] %vm677, %v607
        %868 = vst.msk [vmem:[%s208 + $0x78] sm:$0xff] %vm677, %v610
        %869 = vst.msk [vmem:[%s208 + $0x80] sm:$0xff] %vm677, %v615
        %870 = vst.msk [vmem:[%s208 + $0x88] sm:$0xff] %vm677, %v618
        %871 = vst.msk [vmem:[%s208 + $0x90] sm:$0xff] %vm677, %v623
        %872 = vst.msk [vmem:[%s208 + $0x98] sm:$0xff] %vm677, %v626
        %873 = vst.msk [vmem:[%s208 + $0xa0] sm:$0xff] %vm677, %v631
        %874 = vst.msk [vmem:[%s208 + $0xa8] sm:$0xff] %vm677, %v634
        %875 = vst.msk [vmem:[%s208 + $0xb0] sm:$0xff] %vm677, %v639
        %876 = vst.msk [vmem:[%s208 + $0xb8] sm:$0xff] %vm677, %v642
        %877 = vst.msk [vmem:[%s208 + $0xc0] sm:$0xff] %vm677, %v647
        %878 = vst.msk [vmem:[%s208 + $0xc8] sm:$0xff] %vm677, %v650
        %879 = vst.msk [vmem:[%s208 + $0xd0] sm:$0xff] %vm677, %v655
        %880 = vst.msk [vmem:[%s208 + $0xd8] sm:$0xff] %vm677, %v658
        %881 = vst.msk [vmem:[%s208 + $0xe0] sm:$0xff] %vm677, %v663
        %882 = vst.msk [vmem:[%s208 + $0xe8] sm:$0xff] %vm677, %v666
        %883 = vst.msk [vmem:[%s208 + $0xf0] sm:$0xff] %vm677, %v671
        %884 = vst.msk [vmem:[%s208 + $0xf8] sm:$0xff] %vm677, %v674
        %s885 = sand.u32 %s80, 1
        %s886 = scalar_lea.sflag [#allocation4], %s885
        %s887 = sand.u32 %s80, 1
        %s888 = smul.addr %s887, 256
        %s889 = scalar_lea.vmem [#allocation7], %s888
        %s890 = sand.u32 %s106, 1
        %s891 = scalar_lea.sflag [#allocation9], %s890
        %s892 = sand.u32 %s106, 1
        %s893 = smul.addr %s892, 8
        %s894 = scalar_lea.vmem [#allocation8], %s893
        // Predicated region
        $region37: #{dcgan_generator_forward.15} parent=27 // pred_check
          %p895 = pneg %p90
        $region38: #{dcgan_generator_forward.15} parent=27 // pred_check_branch
          %897 = sbr.rel (%p895) target = $region40
        $region39: #{dcgan_generator_forward.15} parent=27 // pred_region
          %s898 = smul.u32 32, %s25
          %s900 = ssub.s32 4096, 4096
          %901 = vsyncadd %s886, %s900
          %s902 = smul.addr %s898, 128
          %s903 = scalar_lea.hbm %s2, %s902
          %s904 = sshll.u32 %s889, 4
          %s905 = int_to_ptr.vmem [resolvable:$true] %s904
          %910 = dma.vmem_to_hbm [thread:$0]  %s905, 4096, %s903, %s886, 128, 128, 8
        $region40: #{dcgan_generator_forward.15} parent=27 // pred_fallthru
          _
        // Predicated region
        $region41: #{dcgan_generator_forward.15} parent=27 // pred_check
          %p911 = pneg %p116
        $region42: #{dcgan_generator_forward.15} parent=27 // pred_check_branch
          %913 = sbr.rel (%p911) target = $region44
        $region43: #{dcgan_generator_forward.15} parent=27 // pred_region
          %s915 = ssub.s32 128, 128
          %916 = vsyncadd %s891, %s915
          %s917 = smul.addr %s25, 128
          %s918 = scalar_lea.hbm %s3, %s917
          %s920 = sshll.u32 %s894, 4
          %s921 = int_to_ptr.vmem [resolvable:$true] %s920
          %923 = dma.vmem_to_hbm [thread:$0]  %s921, 128, %s918, %s891
        $region44: #{dcgan_generator_forward.15} parent=27 // pred_fallthru
          _
      $region28: #{dcgan_generator_forward.15} parent=5 // pred_fallthru
        _
      %p924 = scmp.le.s32.totalorder 2, %s20
      // Predicated region
      $region45: #{dcgan_generator_forward.15} parent=5 // pred_check
        %p925 = pneg %p924
      $region46: #{dcgan_generator_forward.15} parent=5 // pred_check_branch
        %927 = sbr.rel (%p925) target = $region48
      $region47: #{dcgan_generator_forward.15} parent=5 // pred_region
        %s928 = ssub.s32 %s20, 2
        // Predicated region
        $region49: #{dcgan_generator_forward.15} parent=47 // pred_check
          %p929 = pneg %p96
        $region50: #{dcgan_generator_forward.15} parent=47 // pred_check_branch
          %931 = sbr.rel (%p929) target = $region52
        $region51: #{dcgan_generator_forward.15} parent=47 // pred_region
          %s932 = sand.u32 %s81, 1
          %s933 = scalar_lea.sflag [#allocation4], %s932
          %s934 = sand.u32 %s81, 1
          %s935 = smul.addr %s934, 256
          %s936 = scalar_lea.vmem [#allocation7], %s935
          %937 = dma.done %s933, 4096
        $region52: #{dcgan_generator_forward.15} parent=47 // pred_fallthru
          _
        // Predicated region
        $region53: #{dcgan_generator_forward.15} parent=47 // pred_check
          %p938 = pneg %p122
        $region54: #{dcgan_generator_forward.15} parent=47 // pred_check_branch
          %940 = sbr.rel (%p938) target = $region56
        $region55: #{dcgan_generator_forward.15} parent=47 // pred_region
          %s941 = sand.u32 %s107, 1
          %s942 = scalar_lea.sflag [#allocation9], %s941
          %s943 = sand.u32 %s107, 1
          %s944 = smul.addr %s943, 8
          %s945 = scalar_lea.vmem [#allocation8], %s944
          %946 = dma.done %s942, 128
        $region56: #{dcgan_generator_forward.15} parent=47 // pred_fallthru
          _
      $region48: #{dcgan_generator_forward.15} parent=5 // pred_fallthru
        _
    $region6: #{dcgan_generator_forward.15} parent=1 // loop_footer
      %s24 = sadd.s32 1, %s20
    $region7: #{dcgan_generator_forward.15} parent=1 // loop_footer_branch
      %19 = sbr.rel target = $region3
    $region8: #{dcgan_generator_forward.15} parent=1 // loop_exit
      _
    %947 = vsyncpa [#allocation3], 1
    %s948 = scalar_lea.sflag [#allocation3], 1
    %949 = vsyncpa %s948, 1
    %950 = vsyncpa [#allocation6], 1
    %951 = vsyncpa [#allocation4], 1
    %s952 = scalar_lea.sflag [#allocation4], 1
    %953 = vsyncpa %s952, 1
    %954 = vsyncpa [#allocation9], 1
    %s955 = scalar_lea.sflag [#allocation9], 1
    %956 = vsyncpa %s955, 1

// kernel: dcgan_generator_forward.16
$region0: #{dcgan_generator_forward.16}
  #allocation0 [shape = 'u32[]', space=smem, size = 0x4, offset = 0x4, fixed_abs, tag = 'smem constant byte address 0x4 - core index']
  #allocation1 [shape = 'u32[144,128]{1,0:T(1,128)}', space=vmem, size = 0x12000, scoped, tag = 'internal scratch']
  %s0 = inlined_call_operand.hbm [shape: f32[512,32], index: 0, kind: input, shape index: {}]
  %s1 = inlined_call_operand.hbm [shape: f32[1,32], index: 1, kind: input, shape index: {}]
  %s2 = inlined_call_operand.hbm [shape: f32[1,32], index: 2, kind: input, shape index: {}]
  %s3 = inlined_call_operand.hbm [shape: bf16[512,32], index: 3, kind: output, shape index: {}]
  %s4 = sld [smem:[#allocation0]]
  $region57: #{dcgan_generator_forward.16} parent=0
    _
  %s6 = ssub.s32 1, %s4
  %s7 = scalar_select 0, %s6, %s4
  $region1: #{dcgan_generator_forward.16} parent=0
    #allocation2 [shape = 'u8[262144]{0}', space=vmem, size = 0x40000, scoped, tag = 'input window, operand 0']
    #allocation3 [shape = 's32[2]{0}', space=sflag, size = 0x8, scoped, tag = 'scoped memory for dcgan_generator_forward.16']
    #allocation4 [shape = 's32[2]{0}', space=sflag, size = 0x8, scoped, tag = 'scoped memory for dcgan_generator_forward.16']
    #allocation5 [shape = 'u8[512]{0}', space=vmem, size = 0x400, scoped, tag = 'input window, operand 1, single buffered']
    #allocation6 [shape = 's32[1]{0}', space=sflag, size = 0x4, scoped, tag = 'scoped memory for dcgan_generator_forward.16']
    #allocation7 [shape = 'u8[512]{0}', space=vmem, size = 0x400, scoped, tag = 'input window, operand 2, single buffered']
    #allocation8 [shape = 'u8[131072]{0}', space=vmem, size = 0x20000, scoped, tag = 'output window, operand 0']
    %8 = vsyncpa [#allocation3], 0
    %s9 = scalar_lea.sflag [#allocation3], 1
    %10 = vsyncpa %s9, 0
    %11 = vsyncpa [#allocation6], 0
    %12 = vsyncpa [#allocation4], 0
    %s13 = scalar_lea.sflag [#allocation4], 1
    %14 = vsyncpa %s13, 0
    loop: start=0, step=1, limit=4
    $region2: #{dcgan_generator_forward.16} parent=1 // loop_pre_header
      _
    $region3: #{dcgan_generator_forward.16} parent=1 // loop_header
      %s16 = sphi 0, %s20
      %p17 = scmp.ge.s32.totalorder %s16, 4
      %s26 = sphi 0, %s28
      %s29 = sphi 0, %s26
      %s30 = sphi 0, %s29
      %s46 = sphi 0, %s30
      %s50 = sphi 0, %s50
      %s52 = sphi 0, %s50
      %s53 = sphi 0, %s52
      %s67 = sphi 0, %s53
      %s71 = sphi 0, %s71
      %s73 = sphi 0, %s71
      %s74 = sphi 0, %s73
      %s88 = sphi 0, %s74
      %s94 = sphi 0, %s96
      %s97 = sphi 0, %s94
      %s98 = sphi 0, %s97
      %s114 = sphi 0, %s98
    $region4: #{dcgan_generator_forward.16} parent=1 // loop_header_branch
      %19 = sbr.rel (%p17) target = $region8
    $region5: #{dcgan_generator_forward.16} parent=1 // loop_body
      %s21 = ssub.s32 %s16, 1
      %s22 = ssub.s32 %s16, 2
      %s23 = sadd.s32 %s16, 1
      %s24 = ssub.s32 %s16, %s23
      %p25 = scmp.eq.s32.totalorder %s24, 0
      %s27 = sadd.s32 %s26, 1
      %s28 = scalar_select %p25, %s26, %s27
      %p31 = pneg %p25
      %p32 = scmp.eq.s32.totalorder %s16, 1
      %p33 = por %p31, %p32
      %p34 = scmp.ne.s32.totalorder %s26, %s29
      %p35 = scmp.eq.s32.totalorder %s16, 0
      %p36 = por %p34, %p35
      %p37 = scmp.ne.s32.totalorder %s26, %s29
      %p38 = scmp.eq.s32.totalorder %s21, 1
      %p39 = por %p37, %p38
      %p40 = scmp.ne.s32.totalorder %s29, %s30
      %p41 = scmp.eq.s32.totalorder %s21, 0
      %p42 = por %p40, %p41
      %p43 = scmp.ne.s32.totalorder %s29, %s30
      %p44 = scmp.eq.s32.totalorder %s22, 1
      %p45 = por %p43, %p44
      %p47 = scmp.ne.s32.totalorder %s30, %s46
      %p48 = scmp.eq.s32.totalorder %s22, 0
      %p49 = por %p47, %p48
      %s51 = sadd.s32 %s50, 1
      %p54 = scmp.eq.s32.totalorder %s16, 1
      %p55 = scmp.ne.s32.totalorder %s50, %s52
      %p56 = scmp.eq.s32.totalorder %s16, 0
      %p57 = por %p55, %p56
      %p58 = scmp.ne.s32.totalorder %s50, %s52
      %p59 = scmp.eq.s32.totalorder %s21, 1
      %p60 = por %p58, %p59
      %p61 = scmp.ne.s32.totalorder %s52, %s53
      %p62 = scmp.eq.s32.totalorder %s21, 0
      %p63 = por %p61, %p62
      %p64 = scmp.ne.s32.totalorder %s52, %s53
      %p65 = scmp.eq.s32.totalorder %s22, 1
      %p66 = por %p64, %p65
      %p68 = scmp.ne.s32.totalorder %s53, %s67
      %p69 = scmp.eq.s32.totalorder %s22, 0
      %p70 = por %p68, %p69
      %s72 = sadd.s32 %s71, 1
      %p75 = scmp.eq.s32.totalorder %s16, 1
      %p76 = scmp.ne.s32.totalorder %s71, %s73
      %p77 = scmp.eq.s32.totalorder %s16, 0
      %p78 = por %p76, %p77
      %p79 = scmp.ne.s32.totalorder %s71, %s73
      %p80 = scmp.eq.s32.totalorder %s21, 1
      %p81 = por %p79, %p80
      %p82 = scmp.ne.s32.totalorder %s73, %s74
      %p83 = scmp.eq.s32.totalorder %s21, 0
      %p84 = por %p82, %p83
      %p85 = scmp.ne.s32.totalorder %s73, %s74
      %p86 = scmp.eq.s32.totalorder %s22, 1
      %p87 = por %p85, %p86
      %p89 = scmp.ne.s32.totalorder %s74, %s88
      %p90 = scmp.eq.s32.totalorder %s22, 0
      %p91 = por %p89, %p90
      %s92 = ssub.s32 %s16, %s23
      %p93 = scmp.eq.s32.totalorder %s92, 0
      %s95 = sadd.s32 %s94, 1
      %s96 = scalar_select %p93, %s94, %s95
      %p99 = pneg %p93
      %p100 = scmp.eq.s32.totalorder %s16, 1
      %p101 = por %p99, %p100
      %p102 = scmp.ne.s32.totalorder %s94, %s97
      %p103 = scmp.eq.s32.totalorder %s16, 0
      %p104 = por %p102, %p103
      %p105 = scmp.ne.s32.totalorder %s94, %s97
      %p106 = scmp.eq.s32.totalorder %s21, 1
      %p107 = por %p105, %p106
      %p108 = scmp.ne.s32.totalorder %s97, %s98
      %p109 = scmp.eq.s32.totalorder %s21, 0
      %p110 = por %p108, %p109
      %p111 = scmp.ne.s32.totalorder %s97, %s98
      %p112 = scmp.eq.s32.totalorder %s22, 1
      %p113 = por %p111, %p112
      %p115 = scmp.ne.s32.totalorder %s98, %s114
      %p116 = scmp.eq.s32.totalorder %s22, 0
      %p117 = por %p115, %p116
      %p118 = scmp.le.s32.totalorder 1, %s16
      %p119 = scmp.lt.s32.totalorder %s16, 3
      %p120 = pnand %p118, %p119
      %p121 = pneg %p120
      // Predicated region
      $region9: #{dcgan_generator_forward.16} parent=5 // pred_check
        _
      $region10: #{dcgan_generator_forward.16} parent=5 // pred_check_branch
        %123 = sbr.rel (%p120) target = $region12
      $region11: #{dcgan_generator_forward.16} parent=5 // pred_region
        %s124 = ssub.s32 %s16, 1
        // Predicated region
        $region13: #{dcgan_generator_forward.16} parent=11 // pred_check
          %p125 = pneg %p63
        $region14: #{dcgan_generator_forward.16} parent=11 // pred_check_branch
          %127 = sbr.rel (%p125) target = $region16
        $region15: #{dcgan_generator_forward.16} parent=11 // pred_region
          %s129 = ssub.s32 16, 16
          %130 = vsyncadd [#allocation6], %s129
          %s132 = sshll.u32 [#allocation5], 4
          %s133 = int_to_ptr.vmem [resolvable:$true] %s132
          %135 = dma.hbm_to_vmem [thread:$0]  %s1, 16, %s133, [#allocation6]
        $region16: #{dcgan_generator_forward.16} parent=11 // pred_fallthru
          _
        // Predicated region
        $region17: #{dcgan_generator_forward.16} parent=11 // pred_check
          %p136 = pneg %p84
        $region18: #{dcgan_generator_forward.16} parent=11 // pred_check_branch
          %138 = sbr.rel (%p136) target = $region20
        $region19: #{dcgan_generator_forward.16} parent=11 // pred_region
          %s140 = ssub.s32 16, 16
          %141 = vsyncadd [#allocation6], %s140
          %s143 = sshll.u32 [#allocation7], 4
          %s144 = int_to_ptr.vmem [resolvable:$true] %s143
          %146 = dma.hbm_to_vmem [thread:$0]  %s2, 16, %s144, [#allocation6]
        $region20: #{dcgan_generator_forward.16} parent=11 // pred_fallthru
          _
      $region12: #{dcgan_generator_forward.16} parent=5 // pred_fallthru
        _
      %p147 = scmp.lt.s32.totalorder %s16, 2
      // Predicated region
      $region21: #{dcgan_generator_forward.16} parent=5 // pred_check
        %p148 = pneg %p147
      $region22: #{dcgan_generator_forward.16} parent=5 // pred_check_branch
        %150 = sbr.rel (%p148) target = $region24
      $region23: #{dcgan_generator_forward.16} parent=5 // pred_region
        // Predicated region
        $region25: #{dcgan_generator_forward.16} parent=23 // pred_check
          %p151 = pneg %p36
        $region26: #{dcgan_generator_forward.16} parent=23 // pred_check_branch
          %153 = sbr.rel (%p151) target = $region28
        $region27: #{dcgan_generator_forward.16} parent=23 // pred_region
          %s154 = sand.u32 %s26, 1
          %s155 = scalar_lea.sflag [#allocation3], %s154
          %s156 = sand.u32 %s26, 1
          %s157 = smul.addr %s156, 256
          %s158 = scalar_lea.vmem [#allocation2], %s157
          %s159 = smul.u32 32, %s16
          %s161 = ssub.s32 4096, 4096
          %162 = vsyncadd %s155, %s161
          %s163 = smul.addr %s159, 128
          %s164 = scalar_lea.hbm %s0, %s163
          %s165 = sshll.u32 %s158, 4
          %s166 = int_to_ptr.vmem [resolvable:$true] %s165
          %171 = dma.hbm_to_vmem [thread:$0]  %s164, 4096, %s166, %s155, 128, 128, 8
        $region28: #{dcgan_generator_forward.16} parent=23 // pred_fallthru
          _
      $region24: #{dcgan_generator_forward.16} parent=5 // pred_fallthru
        _
      %p172 = scmp.le.s32.totalorder 1, %s16
      %p173 = scmp.lt.s32.totalorder %s16, 3
      %p174 = pnand %p172, %p173
      %p175 = pneg %p174
      // Predicated region
      $region29: #{dcgan_generator_forward.16} parent=5 // pred_check
        _
      $region30: #{dcgan_generator_forward.16} parent=5 // pred_check_branch
        %177 = sbr.rel (%p174) target = $region32
      $region31: #{dcgan_generator_forward.16} parent=5 // pred_region
        %s178 = ssub.s32 %s16, 1
        %s179 = sand.u32 %s29, 1
        %s180 = scalar_lea.sflag [#allocation3], %s179
        %s181 = sand.u32 %s29, 1
        %s182 = smul.addr %s181, 256
        %s183 = scalar_lea.vmem [#allocation2], %s182
        // Predicated region
        $region33: #{dcgan_generator_forward.16} parent=31 // pred_check
          %p184 = pneg %p42
        $region34: #{dcgan_generator_forward.16} parent=31 // pred_check_branch
          %186 = sbr.rel (%p184) target = $region36
        $region35: #{dcgan_generator_forward.16} parent=31 // pred_region
          %187 = dma.done %s180, 4096
        $region36: #{dcgan_generator_forward.16} parent=31 // pred_fallthru
          _
        // Predicated region
        $region37: #{dcgan_generator_forward.16} parent=31 // pred_check
          %p188 = pneg %p63
        $region38: #{dcgan_generator_forward.16} parent=31 // pred_check_branch
          %190 = sbr.rel (%p188) target = $region40
        $region39: #{dcgan_generator_forward.16} parent=31 // pred_region
          %191 = dma.done [#allocation6], 16
        $region40: #{dcgan_generator_forward.16} parent=31 // pred_fallthru
          _
        // Predicated region
        $region41: #{dcgan_generator_forward.16} parent=31 // pred_check
          %p192 = pneg %p84
        $region42: #{dcgan_generator_forward.16} parent=31 // pred_check_branch
          %194 = sbr.rel (%p192) target = $region44
        $region43: #{dcgan_generator_forward.16} parent=31 // pred_region
          %195 = dma.done [#allocation6], 16
        $region44: #{dcgan_generator_forward.16} parent=31 // pred_fallthru
          _
        %s196 = sand.u32 %s29, 1
        %s197 = scalar_lea.sflag [#allocation3], %s196
        %s198 = sand.u32 %s29, 1
        %s199 = smul.addr %s198, 256
        %s200 = scalar_lea.vmem [#allocation2], %s199
        %p201 = pneg %p42
        %p202 = pneg %p39
        %p203 = pneg %p63
        %p204 = pneg %p60
        %p205 = pneg %p84
        %p206 = pneg %p81
        %p207 = pneg %p110
        %p208 = pneg %p107
        %s209 = sand.u32 %s97, 1
        %s210 = scalar_lea.sflag [#allocation4], %s209
        %s211 = sand.u32 %s97, 1
        %s212 = smul.addr %s211, 128
        %s213 = scalar_lea.vmem [#allocation8], %s212
        %s214 = smul.u32 32, %s21
        %s215 = smul.u32 32, %s21
        %v216 = vld [vmem:[%s183] sm:$0xff]
        %v217 = vld [vmem:[%s183 + $0x8] sm:$0xff]
        %v218 = vld [vmem:[%s183 + $0x10] sm:$0xff]
        %v219 = vld [vmem:[%s183 + $0x18] sm:$0xff]
        %v220 = vld [vmem:[%s183 + $0x20] sm:$0xff]
        %v221 = vld [vmem:[%s183 + $0x28] sm:$0xff]
        %v222 = vld [vmem:[%s183 + $0x30] sm:$0xff]
        %v223 = vld [vmem:[%s183 + $0x38] sm:$0xff]
        %v224 = vld [vmem:[%s183 + $0x40] sm:$0xff]
        %v225 = vld [vmem:[%s183 + $0x48] sm:$0xff]
        %v226 = vld [vmem:[%s183 + $0x50] sm:$0xff]
        %v227 = vld [vmem:[%s183 + $0x58] sm:$0xff]
        %v228 = vld [vmem:[%s183 + $0x60] sm:$0xff]
        %v229 = vld [vmem:[%s183 + $0x68] sm:$0xff]
        %v230 = vld [vmem:[%s183 + $0x70] sm:$0xff]
        %v231 = vld [vmem:[%s183 + $0x78] sm:$0xff]
        %v232 = vld [vmem:[%s183 + $0x80] sm:$0xff]
        %v233 = vld [vmem:[%s183 + $0x88] sm:$0xff]
        %v234 = vld [vmem:[%s183 + $0x90] sm:$0xff]
        %v235 = vld [vmem:[%s183 + $0x98] sm:$0xff]
        %v236 = vld [vmem:[%s183 + $0xa0] sm:$0xff]
        %v237 = vld [vmem:[%s183 + $0xa8] sm:$0xff]
        %v238 = vld [vmem:[%s183 + $0xb0] sm:$0xff]
        %v239 = vld [vmem:[%s183 + $0xb8] sm:$0xff]
        %v240 = vld [vmem:[%s183 + $0xc0] sm:$0xff]
        %v241 = vld [vmem:[%s183 + $0xc8] sm:$0xff]
        %v242 = vld [vmem:[%s183 + $0xd0] sm:$0xff]
        %v243 = vld [vmem:[%s183 + $0xd8] sm:$0xff]
        %v244 = vld [vmem:[%s183 + $0xe0] sm:$0xff]
        %v245 = vld [vmem:[%s183 + $0xe8] sm:$0xff]
        %v246 = vld [vmem:[%s183 + $0xf0] sm:$0xff]
        %v247 = vld [vmem:[%s183 + $0xf8] sm:$0xff]
        %v248 = vld [vmem:[#allocation5] sm:$0x1]
        %v250 = vlaneseq
        %v251 = vshrl.u32 %v250, 7
        %v252 = vsub.s32 0, %v251
        %v253 = vrot.slane %v248, %v252
        %v255 = vmul.f32 %v216, %v253
        %v256 = vmul.f32 %v217, %v253
        %v257 = vmul.f32 %v218, %v253
        %v258 = vmul.f32 %v219, %v253
        %v259 = vmul.f32 %v220, %v253
        %v260 = vmul.f32 %v221, %v253
        %v261 = vmul.f32 %v222, %v253
        %v262 = vmul.f32 %v223, %v253
        %v263 = vmul.f32 %v224, %v253
        %v264 = vmul.f32 %v225, %v253
        %v265 = vmul.f32 %v226, %v253
        %v266 = vmul.f32 %v227, %v253
        %v267 = vmul.f32 %v228, %v253
        %v268 = vmul.f32 %v229, %v253
        %v269 = vmul.f32 %v230, %v253
        %v270 = vmul.f32 %v231, %v253
        %v271 = vmul.f32 %v232, %v253
        %v272 = vmul.f32 %v233, %v253
        %v273 = vmul.f32 %v234, %v253
        %v274 = vmul.f32 %v235, %v253
        %v275 = vmul.f32 %v236, %v253
        %v276 = vmul.f32 %v237, %v253
        %v277 = vmul.f32 %v238, %v253
        %v278 = vmul.f32 %v239, %v253
        %v279 = vmul.f32 %v240, %v253
        %v280 = vmul.f32 %v241, %v253
        %v281 = vmul.f32 %v242, %v253
        %v282 = vmul.f32 %v243, %v253
        %v283 = vmul.f32 %v244, %v253
        %v284 = vmul.f32 %v245, %v253
        %v285 = vmul.f32 %v246, %v253
        %v286 = vmul.f32 %v247, %v253
        %v287 = vld [vmem:[#allocation7] sm:$0x1]
        %v289 = vlaneseq
        %v290 = vshrl.u32 %v289, 7
        %v291 = vsub.s32 0, %v290
        %v292 = vrot.slane %v287, %v291
        %v294 = vadd.f32 %v255, %v292
        %v295 = vadd.f32 %v256, %v292
        %v296 = vadd.f32 %v257, %v292
        %v297 = vadd.f32 %v258, %v292
        %v298 = vadd.f32 %v259, %v292
        %v299 = vadd.f32 %v260, %v292
        %v300 = vadd.f32 %v261, %v292
        %v301 = vadd.f32 %v262, %v292
        %v302 = vadd.f32 %v263, %v292
        %v303 = vadd.f32 %v264, %v292
        %v304 = vadd.f32 %v265, %v292
        %v305 = vadd.f32 %v266, %v292
        %v306 = vadd.f32 %v267, %v292
        %v307 = vadd.f32 %v268, %v292
        %v308 = vadd.f32 %v269, %v292
        %v309 = vadd.f32 %v270, %v292
        %v310 = vadd.f32 %v271, %v292
        %v311 = vadd.f32 %v272, %v292
        %v312 = vadd.f32 %v273, %v292
        %v313 = vadd.f32 %v274, %v292
        %v314 = vadd.f32 %v275, %v292
        %v315 = vadd.f32 %v276, %v292
        %v316 = vadd.f32 %v277, %v292
        %v317 = vadd.f32 %v278, %v292
        %v318 = vadd.f32 %v279, %v292
        %v319 = vadd.f32 %v280, %v292
        %v320 = vadd.f32 %v281, %v292
        %v321 = vadd.f32 %v282, %v292
        %v322 = vadd.f32 %v283, %v292
        %v323 = vadd.f32 %v284, %v292
        %v324 = vadd.f32 %v285, %v292
        %v325 = vadd.f32 %v286, %v292
        %v326 = vmax.f32 %v294, 0.0
        %v327 = vmax.f32 %v295, 0.0
        %v328 = vmax.f32 %v296, 0.0
        %v329 = vmax.f32 %v297, 0.0
        %v330 = vmax.f32 %v298, 0.0
        %v331 = vmax.f32 %v299, 0.0
        %v332 = vmax.f32 %v300, 0.0
        %v333 = vmax.f32 %v301, 0.0
        %v334 = vmax.f32 %v302, 0.0
        %v335 = vmax.f32 %v303, 0.0
        %v336 = vmax.f32 %v304, 0.0
        %v337 = vmax.f32 %v305, 0.0
        %v338 = vmax.f32 %v306, 0.0
        %v339 = vmax.f32 %v307, 0.0
        %v340 = vmax.f32 %v308, 0.0
        %v341 = vmax.f32 %v309, 0.0
        %v342 = vmax.f32 %v310, 0.0
        %v343 = vmax.f32 %v311, 0.0
        %v344 = vmax.f32 %v312, 0.0
        %v345 = vmax.f32 %v313, 0.0
        %v346 = vmax.f32 %v314, 0.0
        %v347 = vmax.f32 %v315, 0.0
        %v348 = vmax.f32 %v316, 0.0
        %v349 = vmax.f32 %v317, 0.0
        %v350 = vmax.f32 %v318, 0.0
        %v351 = vmax.f32 %v319, 0.0
        %v352 = vmax.f32 %v320, 0.0
        %v353 = vmax.f32 %v321, 0.0
        %v354 = vmax.f32 %v322, 0.0
        %v355 = vmax.f32 %v323, 0.0
        %v356 = vmax.f32 %v324, 0.0
        %v357 = vmax.f32 %v325, 0.0
        %v358 = vpack.c.bf16 %v327, %v326
        %v359 = vpack.c.bf16 %v329, %v328
        %v360 = vpack.c.bf16 %v331, %v330
        %v361 = vpack.c.bf16 %v333, %v332
        %v362 = vpack.c.bf16 %v335, %v334
        %v363 = vpack.c.bf16 %v337, %v336
        %v364 = vpack.c.bf16 %v339, %v338
        %v365 = vpack.c.bf16 %v341, %v340
        %v366 = vpack.c.bf16 %v343, %v342
        %v367 = vpack.c.bf16 %v345, %v344
        %v368 = vpack.c.bf16 %v347, %v346
        %v369 = vpack.c.bf16 %v349, %v348
        %v370 = vpack.c.bf16 %v351, %v350
        %v371 = vpack.c.bf16 %v353, %v352
        %v372 = vpack.c.bf16 %v355, %v354
        %v373 = vpack.c.bf16 %v357, %v356
        %v390 = vunpack.c.l.b16 %v358
        %v391 = vunpack.c.h.b16 %v358
        %v392 = vunpack.c.l.b16 %v359
        %v393 = vunpack.c.h.b16 %v359
        %v394 = vunpack.c.l.b16 %v360
        %v395 = vunpack.c.h.b16 %v360
        %v396 = vunpack.c.l.b16 %v361
        %v397 = vunpack.c.h.b16 %v361
        %v398 = vunpack.c.l.b16 %v362
        %v399 = vunpack.c.h.b16 %v362
        %v400 = vunpack.c.l.b16 %v363
        %v401 = vunpack.c.h.b16 %v363
        %v402 = vunpack.c.l.b16 %v364
        %v403 = vunpack.c.h.b16 %v364
        %v404 = vunpack.c.l.b16 %v365
        %v405 = vunpack.c.h.b16 %v365
        %v406 = vunpack.c.l.b16 %v366
        %v407 = vunpack.c.h.b16 %v366
        %v408 = vunpack.c.l.b16 %v367
        %v409 = vunpack.c.h.b16 %v367
        %v410 = vunpack.c.l.b16 %v368
        %v411 = vunpack.c.h.b16 %v368
        %v412 = vunpack.c.l.b16 %v369
        %v413 = vunpack.c.h.b16 %v369
        %v414 = vunpack.c.l.b16 %v370
        %v415 = vunpack.c.h.b16 %v370
        %v416 = vunpack.c.l.b16 %v371
        %v417 = vunpack.c.h.b16 %v371
        %v418 = vunpack.c.l.b16 %v372
        %v419 = vunpack.c.h.b16 %v372
        %v420 = vunpack.c.l.b16 %v373
        %v421 = vunpack.c.h.b16 %v373
        %v422 = vpack.c.b16 %v390, %v390
        %v423 = vpack.c.b16 %v391, %v391
        %v424 = vpack.c.b16 %v392, %v392
        %v425 = vpack.c.b16 %v393, %v393
        %v426 = vpack.c.b16 %v394, %v394
        %v427 = vpack.c.b16 %v395, %v395
        %v428 = vpack.c.b16 %v396, %v396
        %v429 = vpack.c.b16 %v397, %v397
        %v430 = vpack.c.b16 %v398, %v398
        %v431 = vpack.c.b16 %v399, %v399
        %v432 = vpack.c.b16 %v400, %v400
        %v433 = vpack.c.b16 %v401, %v401
        %v434 = vpack.c.b16 %v402, %v402
        %v435 = vpack.c.b16 %v403, %v403
        %v436 = vpack.c.b16 %v404, %v404
        %v437 = vpack.c.b16 %v405, %v405
        %v438 = vpack.c.b16 %v406, %v406
        %v439 = vpack.c.b16 %v407, %v407
        %v440 = vpack.c.b16 %v408, %v408
        %v441 = vpack.c.b16 %v409, %v409
        %v442 = vpack.c.b16 %v410, %v410
        %v443 = vpack.c.b16 %v411, %v411
        %v444 = vpack.c.b16 %v412, %v412
        %v445 = vpack.c.b16 %v413, %v413
        %v446 = vpack.c.b16 %v414, %v414
        %v447 = vpack.c.b16 %v415, %v415
        %v448 = vpack.c.b16 %v416, %v416
        %v449 = vpack.c.b16 %v417, %v417
        %v450 = vpack.c.b16 %v418, %v418
        %v451 = vpack.c.b16 %v419, %v419
        %v452 = vpack.c.b16 %v420, %v420
        %v453 = vpack.c.b16 %v421, %v421
        %vm486 = vcmask 257024
        %487 = vst.msk [vmem:[%s213] sm:$0xf] %vm486, %v422
        %488 = vst.msk [vmem:[%s213 + $0x4] sm:$0xf] %vm486, %v423
        %489 = vst.msk [vmem:[%s213 + $0x8] sm:$0xf] %vm486, %v424
        %490 = vst.msk [vmem:[%s213 + $0xc] sm:$0xf] %vm486, %v425
        %491 = vst.msk [vmem:[%s213 + $0x10] sm:$0xf] %vm486, %v426
        %492 = vst.msk [vmem:[%s213 + $0x14] sm:$0xf] %vm486, %v427
        %493 = vst.msk [vmem:[%s213 + $0x18] sm:$0xf] %vm486, %v428
        %494 = vst.msk [vmem:[%s213 + $0x1c] sm:$0xf] %vm486, %v429
        %495 = vst.msk [vmem:[%s213 + $0x20] sm:$0xf] %vm486, %v430
        %496 = vst.msk [vmem:[%s213 + $0x24] sm:$0xf] %vm486, %v431
        %497 = vst.msk [vmem:[%s213 + $0x28] sm:$0xf] %vm486, %v432
        %498 = vst.msk [vmem:[%s213 + $0x2c] sm:$0xf] %vm486, %v433
        %499 = vst.msk [vmem:[%s213 + $0x30] sm:$0xf] %vm486, %v434
        %500 = vst.msk [vmem:[%s213 + $0x34] sm:$0xf] %vm486, %v435
        %501 = vst.msk [vmem:[%s213 + $0x38] sm:$0xf] %vm486, %v436
        %502 = vst.msk [vmem:[%s213 + $0x3c] sm:$0xf] %vm486, %v437
        %503 = vst.msk [vmem:[%s213 + $0x40] sm:$0xf] %vm486, %v438
        %504 = vst.msk [vmem:[%s213 + $0x44] sm:$0xf] %vm486, %v439
        %505 = vst.msk [vmem:[%s213 + $0x48] sm:$0xf] %vm486, %v440
        %506 = vst.msk [vmem:[%s213 + $0x4c] sm:$0xf] %vm486, %v441
        %507 = vst.msk [vmem:[%s213 + $0x50] sm:$0xf] %vm486, %v442
        %508 = vst.msk [vmem:[%s213 + $0x54] sm:$0xf] %vm486, %v443
        %509 = vst.msk [vmem:[%s213 + $0x58] sm:$0xf] %vm486, %v444
        %510 = vst.msk [vmem:[%s213 + $0x5c] sm:$0xf] %vm486, %v445
        %511 = vst.msk [vmem:[%s213 + $0x60] sm:$0xf] %vm486, %v446
        %512 = vst.msk [vmem:[%s213 + $0x64] sm:$0xf] %vm486, %v447
        %513 = vst.msk [vmem:[%s213 + $0x68] sm:$0xf] %vm486, %v448
        %514 = vst.msk [vmem:[%s213 + $0x6c] sm:$0xf] %vm486, %v449
        %515 = vst.msk [vmem:[%s213 + $0x70] sm:$0xf] %vm486, %v450
        %516 = vst.msk [vmem:[%s213 + $0x74] sm:$0xf] %vm486, %v451
        %517 = vst.msk [vmem:[%s213 + $0x78] sm:$0xf] %vm486, %v452
        %518 = vst.msk [vmem:[%s213 + $0x7c] sm:$0xf] %vm486, %v453
        %s519 = sand.u32 %s97, 1
        %s520 = scalar_lea.sflag [#allocation4], %s519
        %s521 = sand.u32 %s97, 1
        %s522 = smul.addr %s521, 128
        %s523 = scalar_lea.vmem [#allocation8], %s522
        // Predicated region
        $region45: #{dcgan_generator_forward.16} parent=31 // pred_check
          %p524 = pneg %p107
        $region46: #{dcgan_generator_forward.16} parent=31 // pred_check_branch
          %526 = sbr.rel (%p524) target = $region48
        $region47: #{dcgan_generator_forward.16} parent=31 // pred_region
          %s527 = smul.u32 32, %s21
          %s529 = ssub.s32 2048, 2048
          %530 = vsyncadd %s520, %s529
          %s531 = smul.addr %s527, 64
          %s532 = scalar_lea.hbm %s3, %s531
          %s533 = sshll.u32 %s523, 4
          %s534 = int_to_ptr.vmem [resolvable:$true] %s533
          %539 = dma.vmem_to_hbm [thread:$0]  %s534, 2048, %s532, %s520, 64, 64, 4
        $region48: #{dcgan_generator_forward.16} parent=31 // pred_fallthru
          _
      $region32: #{dcgan_generator_forward.16} parent=5 // pred_fallthru
        _
      %p540 = scmp.le.s32.totalorder 2, %s16
      // Predicated region
      $region49: #{dcgan_generator_forward.16} parent=5 // pred_check
        %p541 = pneg %p540
      $region50: #{dcgan_generator_forward.16} parent=5 // pred_check_branch
        %543 = sbr.rel (%p541) target = $region52
      $region51: #{dcgan_generator_forward.16} parent=5 // pred_region
        %s544 = ssub.s32 %s16, 2
        // Predicated region
        $region53: #{dcgan_generator_forward.16} parent=51 // pred_check
          %p545 = pneg %p113
        $region54: #{dcgan_generator_forward.16} parent=51 // pred_check_branch
          %547 = sbr.rel (%p545) target = $region56
        $region55: #{dcgan_generator_forward.16} parent=51 // pred_region
          %s548 = sand.u32 %s98, 1
          %s549 = scalar_lea.sflag [#allocation4], %s548
          %s550 = sand.u32 %s98, 1
          %s551 = smul.addr %s550, 128
          %s552 = scalar_lea.vmem [#allocation8], %s551
          %553 = dma.done %s549, 2048
        $region56: #{dcgan_generator_forward.16} parent=51 // pred_fallthru
          _
      $region52: #{dcgan_generator_forward.16} parent=5 // pred_fallthru
        _
    $region6: #{dcgan_generator_forward.16} parent=1 // loop_footer
      %s20 = sadd.s32 1, %s16
    $region7: #{dcgan_generator_forward.16} parent=1 // loop_footer_branch
      %15 = sbr.rel target = $region3
    $region8: #{dcgan_generator_forward.16} parent=1 // loop_exit
      _
    %554 = vsyncpa [#allocation3], 1
    %s555 = scalar_lea.sflag [#allocation3], 1
    %556 = vsyncpa %s555, 1
    %557 = vsyncpa [#allocation6], 1
    %558 = vsyncpa [#allocation4], 1
    %s559 = scalar_lea.sflag [#allocation4], 1
    %560 = vsyncpa %s559, 1

// kernel: dcgan_generator_forward.17
$region0: #{dcgan_generator_forward.17}
  #allocation0 [shape = 'u32[]', space=smem, size = 0x4, offset = 0x4, fixed_abs, tag = 'smem constant byte address 0x4 - core index']
  #allocation1 [shape = 'u32[144,128]{1,0:T(1,128)}', space=vmem, size = 0x12000, scoped, tag = 'internal scratch']
  %s0 = inlined_call_operand.hbm [shape: bf16[2048,72], index: 0, kind: input, shape index: {}]
  %s1 = inlined_call_operand.hbm [shape: bf16[72,3], index: 1, kind: input, shape index: {}]
  %s2 = inlined_call_operand.hbm [shape: f32[1,3], index: 2, kind: input, shape index: {}]
  %s3 = inlined_call_operand.hbm [shape: f32[2048,3], index: 3, kind: output, shape index: {}]
  %s4 = sld [smem:[#allocation0]]
  $region57: #{dcgan_generator_forward.17} parent=0
    _
  %s6 = ssub.s32 1, %s4
  %s7 = scalar_select 0, %s6, %s4
  $region1: #{dcgan_generator_forward.17} parent=0
    #allocation2 [shape = 'u8[262144]{0}', space=vmem, size = 0x40000, scoped, tag = 'input window, operand 0']
    #allocation3 [shape = 's32[2]{0}', space=sflag, size = 0x8, scoped, tag = 'scoped memory for dcgan_generator_forward.17']
    #allocation4 [shape = 's32[2]{0}', space=sflag, size = 0x8, scoped, tag = 'scoped memory for dcgan_generator_forward.17']
    #allocation5 [shape = 'u8[18432]{0}', space=vmem, size = 0x4800, scoped, tag = 'input window, operand 1, single buffered']
    #allocation6 [shape = 's32[1]{0}', space=sflag, size = 0x4, scoped, tag = 'scoped memory for dcgan_generator_forward.17']
    #allocation7 [shape = 'u8[512]{0}', space=vmem, size = 0x400, scoped, tag = 'input window, operand 2, single buffered']
    #allocation8 [shape = 'u8[524288]{0}', space=vmem, size = 0x80000, scoped, tag = 'output window, operand 0']
    %8 = vsyncpa [#allocation3], 0
    %s9 = scalar_lea.sflag [#allocation3], 1
    %10 = vsyncpa %s9, 0
    %11 = vsyncpa [#allocation6], 0
    %12 = vsyncpa [#allocation4], 0
    %s13 = scalar_lea.sflag [#allocation4], 1
    %14 = vsyncpa %s13, 0
    loop: start=0, step=1, limit=6
    $region2: #{dcgan_generator_forward.17} parent=1 // loop_pre_header
      _
    $region3: #{dcgan_generator_forward.17} parent=1 // loop_header
      %s16 = sphi 0, %s20
      %p17 = scmp.ge.s32.totalorder %s16, 6
      %s26 = sphi 0, %s28
      %s29 = sphi 0, %s26
      %s30 = sphi 0, %s29
      %s46 = sphi 0, %s30
      %s50 = sphi 0, %s50
      %s52 = sphi 0, %s50
      %s53 = sphi 0, %s52
      %s67 = sphi 0, %s53
      %s71 = sphi 0, %s71
      %s73 = sphi 0, %s71
      %s74 = sphi 0, %s73
      %s88 = sphi 0, %s74
      %s94 = sphi 0, %s96
      %s97 = sphi 0, %s94
      %s98 = sphi 0, %s97
      %s114 = sphi 0, %s98
    $region4: #{dcgan_generator_forward.17} parent=1 // loop_header_branch
      %19 = sbr.rel (%p17) target = $region8
    $region5: #{dcgan_generator_forward.17} parent=1 // loop_body
      %s21 = ssub.s32 %s16, 1
      %s22 = ssub.s32 %s16, 2
      %s23 = sadd.s32 %s16, 1
      %s24 = ssub.s32 %s16, %s23
      %p25 = scmp.eq.s32.totalorder %s24, 0
      %s27 = sadd.s32 %s26, 1
      %s28 = scalar_select %p25, %s26, %s27
      %p31 = pneg %p25
      %p32 = scmp.eq.s32.totalorder %s16, 3
      %p33 = por %p31, %p32
      %p34 = scmp.ne.s32.totalorder %s26, %s29
      %p35 = scmp.eq.s32.totalorder %s16, 0
      %p36 = por %p34, %p35
      %p37 = scmp.ne.s32.totalorder %s26, %s29
      %p38 = scmp.eq.s32.totalorder %s21, 3
      %p39 = por %p37, %p38
      %p40 = scmp.ne.s32.totalorder %s29, %s30
      %p41 = scmp.eq.s32.totalorder %s21, 0
      %p42 = por %p40, %p41
      %p43 = scmp.ne.s32.totalorder %s29, %s30
      %p44 = scmp.eq.s32.totalorder %s22, 3
      %p45 = por %p43, %p44
      %p47 = scmp.ne.s32.totalorder %s30, %s46
      %p48 = scmp.eq.s32.totalorder %s22, 0
      %p49 = por %p47, %p48
      %s51 = sadd.s32 %s50, 1
      %p54 = scmp.eq.s32.totalorder %s16, 3
      %p55 = scmp.ne.s32.totalorder %s50, %s52
      %p56 = scmp.eq.s32.totalorder %s16, 0
      %p57 = por %p55, %p56
      %p58 = scmp.ne.s32.totalorder %s50, %s52
      %p59 = scmp.eq.s32.totalorder %s21, 3
      %p60 = por %p58, %p59
      %p61 = scmp.ne.s32.totalorder %s52, %s53
      %p62 = scmp.eq.s32.totalorder %s21, 0
      %p63 = por %p61, %p62
      %p64 = scmp.ne.s32.totalorder %s52, %s53
      %p65 = scmp.eq.s32.totalorder %s22, 3
      %p66 = por %p64, %p65
      %p68 = scmp.ne.s32.totalorder %s53, %s67
      %p69 = scmp.eq.s32.totalorder %s22, 0
      %p70 = por %p68, %p69
      %s72 = sadd.s32 %s71, 1
      %p75 = scmp.eq.s32.totalorder %s16, 3
      %p76 = scmp.ne.s32.totalorder %s71, %s73
      %p77 = scmp.eq.s32.totalorder %s16, 0
      %p78 = por %p76, %p77
      %p79 = scmp.ne.s32.totalorder %s71, %s73
      %p80 = scmp.eq.s32.totalorder %s21, 3
      %p81 = por %p79, %p80
      %p82 = scmp.ne.s32.totalorder %s73, %s74
      %p83 = scmp.eq.s32.totalorder %s21, 0
      %p84 = por %p82, %p83
      %p85 = scmp.ne.s32.totalorder %s73, %s74
      %p86 = scmp.eq.s32.totalorder %s22, 3
      %p87 = por %p85, %p86
      %p89 = scmp.ne.s32.totalorder %s74, %s88
      %p90 = scmp.eq.s32.totalorder %s22, 0
      %p91 = por %p89, %p90
      %s92 = ssub.s32 %s16, %s23
      %p93 = scmp.eq.s32.totalorder %s92, 0
      %s95 = sadd.s32 %s94, 1
      %s96 = scalar_select %p93, %s94, %s95
      %p99 = pneg %p93
      %p100 = scmp.eq.s32.totalorder %s16, 3
      %p101 = por %p99, %p100
      %p102 = scmp.ne.s32.totalorder %s94, %s97
      %p103 = scmp.eq.s32.totalorder %s16, 0
      %p104 = por %p102, %p103
      %p105 = scmp.ne.s32.totalorder %s94, %s97
      %p106 = scmp.eq.s32.totalorder %s21, 3
      %p107 = por %p105, %p106
      %p108 = scmp.ne.s32.totalorder %s97, %s98
      %p109 = scmp.eq.s32.totalorder %s21, 0
      %p110 = por %p108, %p109
      %p111 = scmp.ne.s32.totalorder %s97, %s98
      %p112 = scmp.eq.s32.totalorder %s22, 3
      %p113 = por %p111, %p112
      %p115 = scmp.ne.s32.totalorder %s98, %s114
      %p116 = scmp.eq.s32.totalorder %s22, 0
      %p117 = por %p115, %p116
      %p118 = scmp.le.s32.totalorder 1, %s16
      %p119 = scmp.lt.s32.totalorder %s16, 5
      %p120 = pnand %p118, %p119
      %p121 = pneg %p120
      // Predicated region
      $region9: #{dcgan_generator_forward.17} parent=5 // pred_check
        _
      $region10: #{dcgan_generator_forward.17} parent=5 // pred_check_branch
        %123 = sbr.rel (%p120) target = $region12
      $region11: #{dcgan_generator_forward.17} parent=5 // pred_region
        %s124 = ssub.s32 %s16, 1
        // Predicated region
        $region13: #{dcgan_generator_forward.17} parent=11 // pred_check
          %p125 = pneg %p63
        $region14: #{dcgan_generator_forward.17} parent=11 // pred_check_branch
          %127 = sbr.rel (%p125) target = $region16
        $region15: #{dcgan_generator_forward.17} parent=11 // pred_region
          %s129 = ssub.s32 576, 576
          %130 = vsyncadd [#allocation6], %s129
          %s131 = sshll.u32 [#allocation5], 4
          %s132 = int_to_ptr.vmem [resolvable:$true] %s131
          %137 = dma.hbm_to_vmem [thread:$0]  %s1, 576, %s132, [#allocation6], 64, 64, 4
        $region16: #{dcgan_generator_forward.17} parent=11 // pred_fallthru
          _
        // Predicated region
        $region17: #{dcgan_generator_forward.17} parent=11 // pred_check
          %p138 = pneg %p84
        $region18: #{dcgan_generator_forward.17} parent=11 // pred_check_branch
          %140 = sbr.rel (%p138) target = $region20
        $region19: #{dcgan_generator_forward.17} parent=11 // pred_region
          %s142 = ssub.s32 16, 16
          %143 = vsyncadd [#allocation6], %s142
          %s145 = sshll.u32 [#allocation7], 4
          %s146 = int_to_ptr.vmem [resolvable:$true] %s145
          %148 = dma.hbm_to_vmem [thread:$0]  %s2, 16, %s146, [#allocation6]
        $region20: #{dcgan_generator_forward.17} parent=11 // pred_fallthru
          _
      $region12: #{dcgan_generator_forward.17} parent=5 // pred_fallthru
        _
      %p149 = scmp.lt.s32.totalorder %s16, 4
      // Predicated region
      $region21: #{dcgan_generator_forward.17} parent=5 // pred_check
        %p150 = pneg %p149
      $region22: #{dcgan_generator_forward.17} parent=5 // pred_check_branch
        %152 = sbr.rel (%p150) target = $region24
      $region23: #{dcgan_generator_forward.17} parent=5 // pred_region
        // Predicated region
        $region25: #{dcgan_generator_forward.17} parent=23 // pred_check
          %p153 = pneg %p36
        $region26: #{dcgan_generator_forward.17} parent=23 // pred_check_branch
          %155 = sbr.rel (%p153) target = $region28
        $region27: #{dcgan_generator_forward.17} parent=23 // pred_region
          %s156 = sand.u32 %s26, 1
          %s157 = scalar_lea.sflag [#allocation3], %s156
          %s158 = sand.u32 %s26, 1
          %s159 = smul.addr %s158, 256
          %s160 = scalar_lea.vmem [#allocation2], %s159
          %s161 = smul.u32 64, %s16
          %s163 = ssub.s32 4096, 4096
          %164 = vsyncadd %s157, %s163
          %s165 = smul.addr %s161, 64
          %s166 = scalar_lea.hbm %s0, %s165
          %s167 = sshll.u32 %s160, 4
          %s168 = int_to_ptr.vmem [resolvable:$true] %s167
          %173 = dma.hbm_to_vmem [thread:$0]  %s166, 4096, %s168, %s157, 64, 64, 4
        $region28: #{dcgan_generator_forward.17} parent=23 // pred_fallthru
          _
      $region24: #{dcgan_generator_forward.17} parent=5 // pred_fallthru
        _
      %p174 = scmp.le.s32.totalorder 1, %s16
      %p175 = scmp.lt.s32.totalorder %s16, 5
      %p176 = pnand %p174, %p175
      %p177 = pneg %p176
      // Predicated region
      $region29: #{dcgan_generator_forward.17} parent=5 // pred_check
        _
      $region30: #{dcgan_generator_forward.17} parent=5 // pred_check_branch
        %179 = sbr.rel (%p176) target = $region32
      $region31: #{dcgan_generator_forward.17} parent=5 // pred_region
        %s180 = ssub.s32 %s16, 1
        %s181 = sand.u32 %s29, 1
        %s182 = scalar_lea.sflag [#allocation3], %s181
        %s183 = sand.u32 %s29, 1
        %s184 = smul.addr %s183, 256
        %s185 = scalar_lea.vmem [#allocation2], %s184
        // Predicated region
        $region33: #{dcgan_generator_forward.17} parent=31 // pred_check
          %p186 = pneg %p42
        $region34: #{dcgan_generator_forward.17} parent=31 // pred_check_branch
          %188 = sbr.rel (%p186) target = $region36
        $region35: #{dcgan_generator_forward.17} parent=31 // pred_region
          %189 = dma.done %s182, 4096
        $region36: #{dcgan_generator_forward.17} parent=31 // pred_fallthru
          _
        // Predicated region
        $region37: #{dcgan_generator_forward.17} parent=31 // pred_check
          %p190 = pneg %p63
        $region38: #{dcgan_generator_forward.17} parent=31 // pred_check_branch
          %192 = sbr.rel (%p190) target = $region40
        $region39: #{dcgan_generator_forward.17} parent=31 // pred_region
          %193 = dma.done [#allocation6], 576
        $region40: #{dcgan_generator_forward.17} parent=31 // pred_fallthru
          _
        // Predicated region
        $region41: #{dcgan_generator_forward.17} parent=31 // pred_check
          %p194 = pneg %p84
        $region42: #{dcgan_generator_forward.17} parent=31 // pred_check_branch
          %196 = sbr.rel (%p194) target = $region44
        $region43: #{dcgan_generator_forward.17} parent=31 // pred_region
          %197 = dma.done [#allocation6], 16
        $region44: #{dcgan_generator_forward.17} parent=31 // pred_fallthru
          _
        %s198 = sand.u32 %s29, 1
        %s199 = scalar_lea.sflag [#allocation3], %s198
        %s200 = sand.u32 %s29, 1
        %s201 = smul.addr %s200, 256
        %s202 = scalar_lea.vmem [#allocation2], %s201
        %p203 = pneg %p42
        %p204 = pneg %p39
        %p205 = pneg %p63
        %p206 = pneg %p60
        %p207 = pneg %p84
        %p208 = pneg %p81
        %p209 = pneg %p110
        %p210 = pneg %p107
        %s211 = sand.u32 %s97, 1
        %s212 = scalar_lea.sflag [#allocation4], %s211
        %s213 = sand.u32 %s97, 1
        %s214 = smul.addr %s213, 512
        %s215 = scalar_lea.vmem [#allocation8], %s214
        %s216 = smul.u32 64, %s21
        %s217 = smul.u32 64, %s21
        %v219 = vld [vmem:[%s185] sm:$0xf]
        %v220 = vld [vmem:[%s185 + $0x4] sm:$0xf]
        %v221 = vld [vmem:[%s185 + $0x8] sm:$0xf]
        %v222 = vld [vmem:[%s185 + $0xc] sm:$0xf]
        %v223 = vld [vmem:[%s185 + $0x10] sm:$0xf]
        %v224 = vld [vmem:[%s185 + $0x14] sm:$0xf]
        %v225 = vld [vmem:[%s185 + $0x18] sm:$0xf]
        %v226 = vld [vmem:[%s185 + $0x1c] sm:$0xf]
        %v227 = vld [vmem:[%s185 + $0x20] sm:$0xf]
        %v228 = vld [vmem:[%s185 + $0x24] sm:$0xf]
        %v229 = vld [vmem:[%s185 + $0x28] sm:$0xf]
        %v230 = vld [vmem:[%s185 + $0x2c] sm:$0xf]
        %v231 = vld [vmem:[%s185 + $0x30] sm:$0xf]
        %v232 = vld [vmem:[%s185 + $0x34] sm:$0xf]
        %v233 = vld [vmem:[%s185 + $0x38] sm:$0xf]
        %v234 = vld [vmem:[%s185 + $0x3c] sm:$0xf]
        %v235 = vld [vmem:[%s185 + $0x40] sm:$0xf]
        %v236 = vld [vmem:[%s185 + $0x44] sm:$0xf]
        %v237 = vld [vmem:[%s185 + $0x48] sm:$0xf]
        %v238 = vld [vmem:[%s185 + $0x4c] sm:$0xf]
        %v239 = vld [vmem:[%s185 + $0x50] sm:$0xf]
        %v240 = vld [vmem:[%s185 + $0x54] sm:$0xf]
        %v241 = vld [vmem:[%s185 + $0x58] sm:$0xf]
        %v242 = vld [vmem:[%s185 + $0x5c] sm:$0xf]
        %v243 = vld [vmem:[%s185 + $0x60] sm:$0xf]
        %v244 = vld [vmem:[%s185 + $0x64] sm:$0xf]
        %v245 = vld [vmem:[%s185 + $0x68] sm:$0xf]
        %v246 = vld [vmem:[%s185 + $0x6c] sm:$0xf]
        %v247 = vld [vmem:[%s185 + $0x70] sm:$0xf]
        %v248 = vld [vmem:[%s185 + $0x74] sm:$0xf]
        %v249 = vld [vmem:[%s185 + $0x78] sm:$0xf]
        %v250 = vld [vmem:[%s185 + $0x7c] sm:$0xf]
        %v251 = vld [vmem:[%s185 + $0x80] sm:$0xf]
        %v252 = vld [vmem:[%s185 + $0x84] sm:$0xf]
        %v253 = vld [vmem:[%s185 + $0x88] sm:$0xf]
        %v254 = vld [vmem:[%s185 + $0x8c] sm:$0xf]
        %v255 = vld [vmem:[%s185 + $0x90] sm:$0xf]
        %v256 = vld [vmem:[%s185 + $0x94] sm:$0xf]
        %v257 = vld [vmem:[%s185 + $0x98] sm:$0xf]
        %v258 = vld [vmem:[%s185 + $0x9c] sm:$0xf]
        %v259 = vld [vmem:[%s185 + $0xa0] sm:$0xf]
        %v260 = vld [vmem:[%s185 + $0xa4] sm:$0xf]
        %v261 = vld [vmem:[%s185 + $0xa8] sm:$0xf]
        %v262 = vld [vmem:[%s185 + $0xac] sm:$0xf]
        %v263 = vld [vmem:[%s185 + $0xb0] sm:$0xf]
        %v264 = vld [vmem:[%s185 + $0xb4] sm:$0xf]
        %v265 = vld [vmem:[%s185 + $0xb8] sm:$0xf]
        %v266 = vld [vmem:[%s185 + $0xbc] sm:$0xf]
        %v267 = vld [vmem:[%s185 + $0xc0] sm:$0xf]
        %v268 = vld [vmem:[%s185 + $0xc4] sm:$0xf]
        %v269 = vld [vmem:[%s185 + $0xc8] sm:$0xf]
        %v270 = vld [vmem:[%s185 + $0xcc] sm:$0xf]
        %v271 = vld [vmem:[%s185 + $0xd0] sm:$0xf]
        %v272 = vld [vmem:[%s185 + $0xd4] sm:$0xf]
        %v273 = vld [vmem:[%s185 + $0xd8] sm:$0xf]
        %v274 = vld [vmem:[%s185 + $0xdc] sm:$0xf]
        %v275 = vld [vmem:[%s185 + $0xe0] sm:$0xf]
        %v276 = vld [vmem:[%s185 + $0xe4] sm:$0xf]
        %v277 = vld [vmem:[%s185 + $0xe8] sm:$0xf]
        %v278 = vld [vmem:[%s185 + $0xec] sm:$0xf]
        %v279 = vld [vmem:[%s185 + $0xf0] sm:$0xf]
        %v280 = vld [vmem:[%s185 + $0xf4] sm:$0xf]
        %v281 = vld [vmem:[%s185 + $0xf8] sm:$0xf]
        %v282 = vld [vmem:[%s185 + $0xfc] sm:$0xf]
        %v283 = vld [vmem:[#allocation5] sm:$0xf]
        %v284 = vld [vmem:[#allocation5 + $0x4] sm:$0xf]
        %v285 = vld [vmem:[#allocation5 + $0x8] sm:$0xf]
        %v286 = vld [vmem:[#allocation5 + $0xc] sm:$0xf]
        %v287 = vld [vmem:[#allocation5 + $0x10] sm:$0xf]
        %v288 = vld [vmem:[#allocation5 + $0x14] sm:$0xf]
        %v289 = vld [vmem:[#allocation5 + $0x18] sm:$0xf]
        %v290 = vld [vmem:[#allocation5 + $0x1c] sm:$0xf]
        %v291 = vld [vmem:[#allocation5 + $0x20] sm:$0xf]
        %v292 = vld [vmem:[#allocation7] sm:$0x1]
        %v294 = vlaneseq
        %v295 = vshrl.u32 %v294, 7
        %v296 = vsub.s32 0, %v295
        %v297 = vrot.slane %v292, %v296
        %v363 = vunpack.c.l.b16 %v219
        %v364 = vunpack.c.l.b16 %v220
        %v365 = vunpack.c.l.b16 %v221
        %v366 = vunpack.c.l.b16 %v222
        %v367 = vunpack.c.l.b16 %v223
        %v368 = vunpack.c.l.b16 %v224
        %v369 = vunpack.c.l.b16 %v225
        %v370 = vunpack.c.l.b16 %v226
        %v371 = vunpack.c.l.b16 %v227
        %v372 = vunpack.c.l.b16 %v228
        %v373 = vunpack.c.l.b16 %v229
        %v374 = vunpack.c.l.b16 %v230
        %v375 = vunpack.c.l.b16 %v231
        %v376 = vunpack.c.l.b16 %v232
        %v377 = vunpack.c.l.b16 %v233
        %v378 = vunpack.c.l.b16 %v234
        %v379 = vunpack.c.l.b16 %v235
        %v380 = vunpack.c.l.b16 %v236
        %v381 = vunpack.c.l.b16 %v237
        %v382 = vunpack.c.l.b16 %v238
        %v383 = vunpack.c.l.b16 %v239
        %v384 = vunpack.c.l.b16 %v240
        %v385 = vunpack.c.l.b16 %v241
        %v386 = vunpack.c.l.b16 %v242
        %v387 = vunpack.c.l.b16 %v243
        %v388 = vunpack.c.l.b16 %v244
        %v389 = vunpack.c.l.b16 %v245
        %v390 = vunpack.c.l.b16 %v246
        %v391 = vunpack.c.l.b16 %v247
        %v392 = vunpack.c.l.b16 %v248
        %v393 = vunpack.c.l.b16 %v249
        %v394 = vunpack.c.l.b16 %v250
        %v395 = vunpack.c.l.b16 %v251
        %v396 = vunpack.c.l.b16 %v252
        %v397 = vunpack.c.l.b16 %v253
        %v398 = vunpack.c.l.b16 %v254
        %v399 = vunpack.c.l.b16 %v255
        %v400 = vunpack.c.l.b16 %v256
        %v401 = vunpack.c.l.b16 %v257
        %v402 = vunpack.c.l.b16 %v258
        %v403 = vunpack.c.l.b16 %v259
        %v404 = vunpack.c.l.b16 %v260
        %v405 = vunpack.c.l.b16 %v261
        %v406 = vunpack.c.l.b16 %v262
        %v407 = vunpack.c.l.b16 %v263
        %v408 = vunpack.c.l.b16 %v264
        %v409 = vunpack.c.l.b16 %v265
        %v410 = vunpack.c.l.b16 %v266
        %v411 = vunpack.c.l.b16 %v267
        %v412 = vunpack.c.l.b16 %v268
        %v413 = vunpack.c.l.b16 %v269
        %v414 = vunpack.c.l.b16 %v270
        %v415 = vunpack.c.l.b16 %v271
        %v416 = vunpack.c.l.b16 %v272
        %v417 = vunpack.c.l.b16 %v273
        %v418 = vunpack.c.l.b16 %v274
        %v419 = vunpack.c.l.b16 %v275
        %v420 = vunpack.c.l.b16 %v276
        %v421 = vunpack.c.l.b16 %v277
        %v422 = vunpack.c.l.b16 %v278
        %v423 = vunpack.c.l.b16 %v279
        %v424 = vunpack.c.l.b16 %v280
        %v425 = vunpack.c.l.b16 %v281
        %v426 = vunpack.c.l.b16 %v282
        %v427 = vpack.c.b16 %v364, %v363
        %v428 = vpack.c.b16 %v366, %v365
        %v429 = vpack.c.b16 %v368, %v367
        %v430 = vpack.c.b16 %v370, %v369
        %v431 = vpack.c.b16 %v372, %v371
        %v432 = vpack.c.b16 %v374, %v373
        %v433 = vpack.c.b16 %v376, %v375
        %v434 = vpack.c.b16 %v378, %v377
        %v435 = vpack.c.b16 %v380, %v379
        %v436 = vpack.c.b16 %v382, %v381
        %v437 = vpack.c.b16 %v384, %v383
        %v438 = vpack.c.b16 %v386, %v385
        %v439 = vpack.c.b16 %v388, %v387
        %v440 = vpack.c.b16 %v390, %v389
        %v441 = vpack.c.b16 %v392, %v391
        %v442 = vpack.c.b16 %v394, %v393
        %v443 = vpack.c.b16 %v396, %v395
        %v444 = vpack.c.b16 %v398, %v397
        %v445 = vpack.c.b16 %v400, %v399
        %v446 = vpack.c.b16 %v402, %v401
        %v447 = vpack.c.b16 %v404, %v403
        %v448 = vpack.c.b16 %v406, %v405
        %v449 = vpack.c.b16 %v408, %v407
        %v450 = vpack.c.b16 %v410, %v409
        %v451 = vpack.c.b16 %v412, %v411
        %v452 = vpack.c.b16 %v414, %v413
        %v453 = vpack.c.b16 %v416, %v415
        %v454 = vpack.c.b16 %v418, %v417
        %v455 = vpack.c.b16 %v420, %v419
        %v456 = vpack.c.b16 %v422, %v421
        %v457 = vpack.c.b16 %v424, %v423
        %v458 = vpack.c.b16 %v426, %v425
        %v468 = vunpack.c.l.b16 %v283
        %v469 = vunpack.c.l.b16 %v284
        %v470 = vunpack.c.l.b16 %v285
        %v471 = vunpack.c.l.b16 %v286
        %v472 = vunpack.c.l.b16 %v287
        %v473 = vunpack.c.l.b16 %v288
        %v474 = vunpack.c.l.b16 %v289
        %v475 = vunpack.c.l.b16 %v290
        %v476 = vunpack.c.l.b16 %v291
        %v477 = vpack.c.b16 %v469, %v468
        %v478 = vpack.c.b16 %v471, %v470
        %v479 = vpack.c.b16 %v473, %v472
        %v480 = vpack.c.b16 %v475, %v474
        %v481 = vpack.c.b16 %v476, %v476
        %vm486 = vcmask 588800
        %v488 = vsel %vm486, %v427, 0
        %v491 = vsel %vm486, %v428, 0
        %v494 = vsel %vm486, %v429, 0
        %v497 = vsel %vm486, %v430, 0
        %v500 = vsel %vm486, %v431, 0
        %v503 = vsel %vm486, %v432, 0
        %v506 = vsel %vm486, %v433, 0
        %v509 = vsel %vm486, %v434, 0
        %v512 = vsel %vm486, %v435, 0
        %v515 = vsel %vm486, %v436, 0
        %v518 = vsel %vm486, %v437, 0
        %v521 = vsel %vm486, %v438, 0
        %v524 = vsel %vm486, %v439, 0
        %v527 = vsel %vm486, %v440, 0
        %v530 = vsel %vm486, %v441, 0
        %v533 = vsel %vm486, %v442, 0
        %v536 = vsel %vm486, %v443, 0
        %v539 = vsel %vm486, %v444, 0
        %v542 = vsel %vm486, %v445, 0
        %v545 = vsel %vm486, %v446, 0
        %v548 = vsel %vm486, %v447, 0
        %v551 = vsel %vm486, %v448, 0
        %v554 = vsel %vm486, %v449, 0
        %v557 = vsel %vm486, %v450, 0
        %v560 = vsel %vm486, %v451, 0
        %v563 = vsel %vm486, %v452, 0
        %v566 = vsel %vm486, %v453, 0
        %v569 = vsel %vm486, %v454, 0
        %v572 = vsel %vm486, %v455, 0
        %v575 = vsel %vm486, %v456, 0
        %v578 = vsel %vm486, %v457, 0
        %v581 = vsel %vm486, %v458, 0
        %vm583 = vcmask 1043456
        %v585 = vsel %vm583, %v481, 0
        %587 = vmatprep.subr.bf16.mxu0 0
        %588 = vmatpush1.bf16.msra.mxu0 %v477
        %589 = vmatprep.subr.bf16.mxu0 0
        %590 = vmatpush1.bf16.msra.mxu0 %v478
        %591 = vmatprep.subr.bf16.mxu0 0
        %592 = vmatpush1.bf16.msra.mxu0 %v479
        %593 = vmatprep.subr.bf16.mxu0 0
        %594 = vmatpush1.bf16.msra.mxu0 %v480
        %595 = vmatprep.subr.bf16.mxu0 0
        %596 = vmatpush1.bf16.msra.mxu0 %v585
        %597 = vmatprep.subr.bf16.mxu0 0
        %598 = vmatpush1.bf16.msra.mxu0 0
        %599 = vmatprep.subr.bf16.mxu0 0
        %600 = vmatpush1.bf16.msra.mxu0 0
        %601 = vmatprep.subr.bf16.mxu0 0
        %602 = vmatpush1.bf16.msra.mxu0 0
        %603 = vmatprep.subr.bf16.mxu0 0
        %604 = vmatpush1.bf16.msra.mxu0 0
        %605 = vmatprep.subr.bf16.mxu0 0
        %606 = vmatpush1.bf16.msra.mxu0 0
        %607 = vmatprep.subr.bf16.mxu0 0
        %608 = vmatpush1.bf16.msra.mxu0 0
        %609 = vmatprep.subr.bf16.mxu0 0
        %610 = vmatpush1.bf16.msra.mxu0 0
        %611 = vmatprep.subr.bf16.mxu0 0
        %612 = vmatpush1.bf16.msra.mxu0 0
        %613 = vmatprep.subr.bf16.mxu0 0
        %614 = vmatpush1.bf16.msra.mxu0 0
        %615 = vmatprep.subr.bf16.mxu0 0
        %616 = vmatpush1.bf16.msra.mxu0 0
        %617 = vmatprep.subr.bf16.mxu0 0
        %618 = vmatpush1.bf16.msra.mxu0 0
        %619 = vmatprep.mubr.bf16.mxu0 0
        %620 = vmatmul.mubr.bf16.gmra.mrb[0].mxu0 %v488
        %v621 = vpop.f32.mrb[0].mxu0
        %v622 = vadd.f32 %v297, %v621
        %v623 = vpop.f32.mrb[0].mxu0
        %v624 = vpop.f32.mrb[0].mxu0
        %v625 = vadd.f32 %v297, %v624
        %v626 = vpop.f32.mrb[0].mxu0
        %627 = vmatprep.mubr.bf16.mxu0 0
        %628 = vmatmul.mubr.bf16.gmra.mrb[0].mxu0 %v491
        %v629 = vpop.f32.mrb[0].mxu0
        %v630 = vadd.f32 %v297, %v629
        %v631 = vpop.f32.mrb[0].mxu0
        %v632 = vpop.f32.mrb[0].mxu0
        %v633 = vadd.f32 %v297, %v632
        %v634 = vpop.f32.mrb[0].mxu0
        %635 = vmatprep.mubr.bf16.mxu0 0
        %636 = vmatmul.mubr.bf16.gmra.mrb[0].mxu0 %v494
        %v637 = vpop.f32.mrb[0].mxu0
        %v638 = vadd.f32 %v297, %v637
        %v639 = vpop.f32.mrb[0].mxu0
        %v640 = vpop.f32.mrb[0].mxu0
        %v641 = vadd.f32 %v297, %v640
        %v642 = vpop.f32.mrb[0].mxu0
        %643 = vmatprep.mubr.bf16.mxu0 0
        %644 = vmatmul.mubr.bf16.gmra.mrb[0].mxu0 %v497
        %v645 = vpop.f32.mrb[0].mxu0
        %v646 = vadd.f32 %v297, %v645
        %v647 = vpop.f32.mrb[0].mxu0
        %v648 = vpop.f32.mrb[0].mxu0
        %v649 = vadd.f32 %v297, %v648
        %v650 = vpop.f32.mrb[0].mxu0
        %651 = vmatprep.mubr.bf16.mxu0 0
        %652 = vmatmul.mubr.bf16.gmra.mrb[0].mxu0 %v500
        %v653 = vpop.f32.mrb[0].mxu0
        %v654 = vadd.f32 %v297, %v653
        %v655 = vpop.f32.mrb[0].mxu0
        %v656 = vpop.f32.mrb[0].mxu0
        %v657 = vadd.f32 %v297, %v656
        %v658 = vpop.f32.mrb[0].mxu0
        %659 = vmatprep.mubr.bf16.mxu0 0
        %660 = vmatmul.mubr.bf16.gmra.mrb[0].mxu0 %v503
        %v661 = vpop.f32.mrb[0].mxu0
        %v662 = vadd.f32 %v297, %v661
        %v663 = vpop.f32.mrb[0].mxu0
        %v664 = vpop.f32.mrb[0].mxu0
        %v665 = vadd.f32 %v297, %v664
        %v666 = vpop.f32.mrb[0].mxu0
        %667 = vmatprep.mubr.bf16.mxu0 0
        %668 = vmatmul.mubr.bf16.gmra.mrb[0].mxu0 %v506
        %v669 = vpop.f32.mrb[0].mxu0
        %v670 = vadd.f32 %v297, %v669
        %v671 = vpop.f32.mrb[0].mxu0
        %v672 = vpop.f32.mrb[0].mxu0
        %v673 = vadd.f32 %v297, %v672
        %v674 = vpop.f32.mrb[0].mxu0
        %675 = vmatprep.mubr.bf16.mxu0 0
        %676 = vmatmul.mubr.bf16.gmra.mrb[0].mxu0 %v509
        %v677 = vpop.f32.mrb[0].mxu0
        %v678 = vadd.f32 %v297, %v677
        %v679 = vpop.f32.mrb[0].mxu0
        %v680 = vpop.f32.mrb[0].mxu0
        %v681 = vadd.f32 %v297, %v680
        %v682 = vpop.f32.mrb[0].mxu0
        %683 = vmatprep.mubr.bf16.mxu0 0
        %684 = vmatmul.mubr.bf16.gmra.mrb[0].mxu0 %v512
        %v685 = vpop.f32.mrb[0].mxu0
        %v686 = vadd.f32 %v297, %v685
        %v687 = vpop.f32.mrb[0].mxu0
        %v688 = vpop.f32.mrb[0].mxu0
        %v689 = vadd.f32 %v297, %v688
        %v690 = vpop.f32.mrb[0].mxu0
        %691 = vmatprep.mubr.bf16.mxu0 0
        %692 = vmatmul.mubr.bf16.gmra.mrb[0].mxu0 %v515
        %v693 = vpop.f32.mrb[0].mxu0
        %v694 = vadd.f32 %v297, %v693
        %v695 = vpop.f32.mrb[0].mxu0
        %v696 = vpop.f32.mrb[0].mxu0
        %v697 = vadd.f32 %v297, %v696
        %v698 = vpop.f32.mrb[0].mxu0
        %699 = vmatprep.mubr.bf16.mxu0 0
        %700 = vmatmul.mubr.bf16.gmra.mrb[0].mxu0 %v518
        %v701 = vpop.f32.mrb[0].mxu0
        %v702 = vadd.f32 %v297, %v701
        %v703 = vpop.f32.mrb[0].mxu0
        %v704 = vpop.f32.mrb[0].mxu0
        %v705 = vadd.f32 %v297, %v704
        %v706 = vpop.f32.mrb[0].mxu0
        %707 = vmatprep.mubr.bf16.mxu0 0
        %708 = vmatmul.mubr.bf16.gmra.mrb[0].mxu0 %v521
        %v709 = vpop.f32.mrb[0].mxu0
        %v710 = vadd.f32 %v297, %v709
        %v711 = vpop.f32.mrb[0].mxu0
        %v712 = vpop.f32.mrb[0].mxu0
        %v713 = vadd.f32 %v297, %v712
        %v714 = vpop.f32.mrb[0].mxu0
        %715 = vmatprep.mubr.bf16.mxu0 0
        %716 = vmatmul.mubr.bf16.gmra.mrb[0].mxu0 %v524
        %v717 = vpop.f32.mrb[0].mxu0
        %v718 = vadd.f32 %v297, %v717
        %v719 = vpop.f32.mrb[0].mxu0
        %v720 = vpop.f32.mrb[0].mxu0
        %v721 = vadd.f32 %v297, %v720
        %v722 = vpop.f32.mrb[0].mxu0
        %723 = vmatprep.mubr.bf16.mxu0 0
        %724 = vmatmul.mubr.bf16.gmra.mrb[0].mxu0 %v527
        %v725 = vpop.f32.mrb[0].mxu0
        %v726 = vadd.f32 %v297, %v725
        %v727 = vpop.f32.mrb[0].mxu0
        %v728 = vpop.f32.mrb[0].mxu0
        %v729 = vadd.f32 %v297, %v728
        %v730 = vpop.f32.mrb[0].mxu0
        %731 = vmatprep.mubr.bf16.mxu0 0
        %732 = vmatmul.mubr.bf16.gmra.mrb[0].mxu0 %v530
        %v733 = vpop.f32.mrb[0].mxu0
        %v734 = vadd.f32 %v297, %v733
        %v735 = vpop.f32.mrb[0].mxu0
        %v736 = vpop.f32.mrb[0].mxu0
        %v737 = vadd.f32 %v297, %v736
        %v738 = vpop.f32.mrb[0].mxu0
        %739 = vmatprep.mubr.bf16.mxu0 0
        %740 = vmatmul.mubr.bf16.gmra.mrb[0].mxu0 %v533
        %v741 = vpop.f32.mrb[0].mxu0
        %v742 = vadd.f32 %v297, %v741
        %v743 = vpop.f32.mrb[0].mxu0
        %v744 = vpop.f32.mrb[0].mxu0
        %v745 = vadd.f32 %v297, %v744
        %v746 = vpop.f32.mrb[0].mxu0
        %747 = vmatprep.mubr.bf16.mxu0 0
        %748 = vmatmul.mubr.bf16.gmra.mrb[0].mxu0 %v536
        %v749 = vpop.f32.mrb[0].mxu0
        %v750 = vadd.f32 %v297, %v749
        %v751 = vpop.f32.mrb[0].mxu0
        %v752 = vpop.f32.mrb[0].mxu0
        %v753 = vadd.f32 %v297, %v752
        %v754 = vpop.f32.mrb[0].mxu0
        %755 = vmatprep.mubr.bf16.mxu0 0
        %756 = vmatmul.mubr.bf16.gmra.mrb[0].mxu0 %v539
        %v757 = vpop.f32.mrb[0].mxu0
        %v758 = vadd.f32 %v297, %v757
        %v759 = vpop.f32.mrb[0].mxu0
        %v760 = vpop.f32.mrb[0].mxu0
        %v761 = vadd.f32 %v297, %v760
        %v762 = vpop.f32.mrb[0].mxu0
        %763 = vmatprep.mubr.bf16.mxu0 0
        %764 = vmatmul.mubr.bf16.gmra.mrb[0].mxu0 %v542
        %v765 = vpop.f32.mrb[0].mxu0
        %v766 = vadd.f32 %v297, %v765
        %v767 = vpop.f32.mrb[0].mxu0
        %v768 = vpop.f32.mrb[0].mxu0
        %v769 = vadd.f32 %v297, %v768
        %v770 = vpop.f32.mrb[0].mxu0
        %771 = vmatprep.mubr.bf16.mxu0 0
        %772 = vmatmul.mubr.bf16.gmra.mrb[0].mxu0 %v545
        %v773 = vpop.f32.mrb[0].mxu0
        %v774 = vadd.f32 %v297, %v773
        %v775 = vpop.f32.mrb[0].mxu0
        %v776 = vpop.f32.mrb[0].mxu0
        %v777 = vadd.f32 %v297, %v776
        %v778 = vpop.f32.mrb[0].mxu0
        %779 = vmatprep.mubr.bf16.mxu0 0
        %780 = vmatmul.mubr.bf16.gmra.mrb[0].mxu0 %v548
        %v781 = vpop.f32.mrb[0].mxu0
        %v782 = vadd.f32 %v297, %v781
        %v783 = vpop.f32.mrb[0].mxu0
        %v784 = vpop.f32.mrb[0].mxu0
        %v785 = vadd.f32 %v297, %v784
        %v786 = vpop.f32.mrb[0].mxu0
        %787 = vmatprep.mubr.bf16.mxu0 0
        %788 = vmatmul.mubr.bf16.gmra.mrb[0].mxu0 %v551
        %v789 = vpop.f32.mrb[0].mxu0
        %v790 = vadd.f32 %v297, %v789
        %v791 = vpop.f32.mrb[0].mxu0
        %v792 = vpop.f32.mrb[0].mxu0
        %v793 = vadd.f32 %v297, %v792
        %v794 = vpop.f32.mrb[0].mxu0
        %795 = vmatprep.mubr.bf16.mxu0 0
        %796 = vmatmul.mubr.bf16.gmra.mrb[0].mxu0 %v554
        %v797 = vpop.f32.mrb[0].mxu0
        %v798 = vadd.f32 %v297, %v797
        %v799 = vpop.f32.mrb[0].mxu0
        %v800 = vpop.f32.mrb[0].mxu0
        %v801 = vadd.f32 %v297, %v800
        %v802 = vpop.f32.mrb[0].mxu0
        %803 = vmatprep.mubr.bf16.mxu0 0
        %804 = vmatmul.mubr.bf16.gmra.mrb[0].mxu0 %v557
        %v805 = vpop.f32.mrb[0].mxu0
        %v806 = vadd.f32 %v297, %v805
        %v807 = vpop.f32.mrb[0].mxu0
        %v808 = vpop.f32.mrb[0].mxu0
        %v809 = vadd.f32 %v297, %v808
        %v810 = vpop.f32.mrb[0].mxu0
        %811 = vmatprep.mubr.bf16.mxu0 0
        %812 = vmatmul.mubr.bf16.gmra.mrb[0].mxu0 %v560
        %v813 = vpop.f32.mrb[0].mxu0
        %v814 = vadd.f32 %v297, %v813
        %v815 = vpop.f32.mrb[0].mxu0
        %v816 = vpop.f32.mrb[0].mxu0
        %v817 = vadd.f32 %v297, %v816
        %v818 = vpop.f32.mrb[0].mxu0
        %819 = vmatprep.mubr.bf16.mxu0 0
        %820 = vmatmul.mubr.bf16.gmra.mrb[0].mxu0 %v563
        %v821 = vpop.f32.mrb[0].mxu0
        %v822 = vadd.f32 %v297, %v821
        %v823 = vpop.f32.mrb[0].mxu0
        %v824 = vpop.f32.mrb[0].mxu0
        %v825 = vadd.f32 %v297, %v824
        %v826 = vpop.f32.mrb[0].mxu0
        %827 = vmatprep.mubr.bf16.mxu0 0
        %828 = vmatmul.mubr.bf16.gmra.mrb[0].mxu0 %v566
        %v829 = vpop.f32.mrb[0].mxu0
        %v830 = vadd.f32 %v297, %v829
        %v831 = vpop.f32.mrb[0].mxu0
        %v832 = vpop.f32.mrb[0].mxu0
        %v833 = vadd.f32 %v297, %v832
        %v834 = vpop.f32.mrb[0].mxu0
        %835 = vmatprep.mubr.bf16.mxu0 0
        %836 = vmatmul.mubr.bf16.gmra.mrb[0].mxu0 %v569
        %v837 = vpop.f32.mrb[0].mxu0
        %v838 = vadd.f32 %v297, %v837
        %v839 = vpop.f32.mrb[0].mxu0
        %v840 = vpop.f32.mrb[0].mxu0
        %v841 = vadd.f32 %v297, %v840
        %v842 = vpop.f32.mrb[0].mxu0
        %843 = vmatprep.mubr.bf16.mxu0 0
        %844 = vmatmul.mubr.bf16.gmra.mrb[0].mxu0 %v572
        %v845 = vpop.f32.mrb[0].mxu0
        %v846 = vadd.f32 %v297, %v845
        %v847 = vpop.f32.mrb[0].mxu0
        %v848 = vpop.f32.mrb[0].mxu0
        %v849 = vadd.f32 %v297, %v848
        %v850 = vpop.f32.mrb[0].mxu0
        %851 = vmatprep.mubr.bf16.mxu0 0
        %852 = vmatmul.mubr.bf16.gmra.mrb[0].mxu0 %v575
        %v853 = vpop.f32.mrb[0].mxu0
        %v854 = vadd.f32 %v297, %v853
        %v855 = vpop.f32.mrb[0].mxu0
        %v856 = vpop.f32.mrb[0].mxu0
        %v857 = vadd.f32 %v297, %v856
        %v858 = vpop.f32.mrb[0].mxu0
        %859 = vmatprep.mubr.bf16.mxu0 0
        %860 = vmatmul.mubr.bf16.gmra.mrb[0].mxu0 %v578
        %v861 = vpop.f32.mrb[0].mxu0
        %v862 = vadd.f32 %v297, %v861
        %v863 = vpop.f32.mrb[0].mxu0
        %v864 = vpop.f32.mrb[0].mxu0
        %v865 = vadd.f32 %v297, %v864
        %v866 = vpop.f32.mrb[0].mxu0
        %867 = vmatprep.mubr.bf16.mxu0 0
        %868 = vmatmul.mubr.bf16.gmra.mrb[0].mxu0 %v581
        %v869 = vpop.f32.mrb[0].mxu0
        %v870 = vadd.f32 %v297, %v869
        %v871 = vpop.f32.mrb[0].mxu0
        %v872 = vpop.f32.mrb[0].mxu0
        %v873 = vadd.f32 %v297, %v872
        %v874 = vpop.f32.mrb[0].mxu0
        %875 = vdwg.mxu0
        %v876 = vtanh.pop %v622
        %v877 = vtanh.pop %v625
        %v878 = vtanh.pop %v630
        %v879 = vtanh.pop %v633
        %v880 = vtanh.pop %v638
        %v881 = vtanh.pop %v641
        %v882 = vtanh.pop %v646
        %v883 = vtanh.pop %v649
        %v884 = vtanh.pop %v654
        %v885 = vtanh.pop %v657
        %v886 = vtanh.pop %v662
        %v887 = vtanh.pop %v665
        %v888 = vtanh.pop %v670
        %v889 = vtanh.pop %v673
        %v890 = vtanh.pop %v678
        %v891 = vtanh.pop %v681
        %v892 = vtanh.pop %v686
        %v893 = vtanh.pop %v689
        %v894 = vtanh.pop %v694
        %v895 = vtanh.pop %v697
        %v896 = vtanh.pop %v702
        %v897 = vtanh.pop %v705
        %v898 = vtanh.pop %v710
        %v899 = vtanh.pop %v713
        %v900 = vtanh.pop %v718
        %v901 = vtanh.pop %v721
        %v902 = vtanh.pop %v726
        %v903 = vtanh.pop %v729
        %v904 = vtanh.pop %v734
        %v905 = vtanh.pop %v737
        %v906 = vtanh.pop %v742
        %v907 = vtanh.pop %v745
        %v908 = vtanh.pop %v750
        %v909 = vtanh.pop %v753
        %v910 = vtanh.pop %v758
        %v911 = vtanh.pop %v761
        %v912 = vtanh.pop %v766
        %v913 = vtanh.pop %v769
        %v914 = vtanh.pop %v774
        %v915 = vtanh.pop %v777
        %v916 = vtanh.pop %v782
        %v917 = vtanh.pop %v785
        %v918 = vtanh.pop %v790
        %v919 = vtanh.pop %v793
        %v920 = vtanh.pop %v798
        %v921 = vtanh.pop %v801
        %v922 = vtanh.pop %v806
        %v923 = vtanh.pop %v809
        %v924 = vtanh.pop %v814
        %v925 = vtanh.pop %v817
        %v926 = vtanh.pop %v822
        %v927 = vtanh.pop %v825
        %v928 = vtanh.pop %v830
        %v929 = vtanh.pop %v833
        %v930 = vtanh.pop %v838
        %v931 = vtanh.pop %v841
        %v932 = vtanh.pop %v846
        %v933 = vtanh.pop %v849
        %v934 = vtanh.pop %v854
        %v935 = vtanh.pop %v857
        %v936 = vtanh.pop %v862
        %v937 = vtanh.pop %v865
        %v938 = vtanh.pop %v870
        %v939 = vtanh.pop %v873
        %vm940 = vcmask 23552
        %941 = vst.msk [vmem:[%s215] sm:$0xff] %vm940, %v876
        %942 = vst.msk [vmem:[%s215 + $0x8] sm:$0xff] %vm940, %v877
        %943 = vst.msk [vmem:[%s215 + $0x10] sm:$0xff] %vm940, %v878
        %944 = vst.msk [vmem:[%s215 + $0x18] sm:$0xff] %vm940, %v879
        %945 = vst.msk [vmem:[%s215 + $0x20] sm:$0xff] %vm940, %v880
        %946 = vst.msk [vmem:[%s215 + $0x28] sm:$0xff] %vm940, %v881
        %947 = vst.msk [vmem:[%s215 + $0x30] sm:$0xff] %vm940, %v882
        %948 = vst.msk [vmem:[%s215 + $0x38] sm:$0xff] %vm940, %v883
        %949 = vst.msk [vmem:[%s215 + $0x40] sm:$0xff] %vm940, %v884
        %950 = vst.msk [vmem:[%s215 + $0x48] sm:$0xff] %vm940, %v885
        %951 = vst.msk [vmem:[%s215 + $0x50] sm:$0xff] %vm940, %v886
        %952 = vst.msk [vmem:[%s215 + $0x58] sm:$0xff] %vm940, %v887
        %953 = vst.msk [vmem:[%s215 + $0x60] sm:$0xff] %vm940, %v888
        %954 = vst.msk [vmem:[%s215 + $0x68] sm:$0xff] %vm940, %v889
        %955 = vst.msk [vmem:[%s215 + $0x70] sm:$0xff] %vm940, %v890
        %956 = vst.msk [vmem:[%s215 + $0x78] sm:$0xff] %vm940, %v891
        %957 = vst.msk [vmem:[%s215 + $0x80] sm:$0xff] %vm940, %v892
        %958 = vst.msk [vmem:[%s215 + $0x88] sm:$0xff] %vm940, %v893
        %959 = vst.msk [vmem:[%s215 + $0x90] sm:$0xff] %vm940, %v894
        %960 = vst.msk [vmem:[%s215 + $0x98] sm:$0xff] %vm940, %v895
        %961 = vst.msk [vmem:[%s215 + $0xa0] sm:$0xff] %vm940, %v896
        %962 = vst.msk [vmem:[%s215 + $0xa8] sm:$0xff] %vm940, %v897
        %963 = vst.msk [vmem:[%s215 + $0xb0] sm:$0xff] %vm940, %v898
        %964 = vst.msk [vmem:[%s215 + $0xb8] sm:$0xff] %vm940, %v899
        %965 = vst.msk [vmem:[%s215 + $0xc0] sm:$0xff] %vm940, %v900
        %966 = vst.msk [vmem:[%s215 + $0xc8] sm:$0xff] %vm940, %v901
        %967 = vst.msk [vmem:[%s215 + $0xd0] sm:$0xff] %vm940, %v902
        %968 = vst.msk [vmem:[%s215 + $0xd8] sm:$0xff] %vm940, %v903
        %969 = vst.msk [vmem:[%s215 + $0xe0] sm:$0xff] %vm940, %v904
        %970 = vst.msk [vmem:[%s215 + $0xe8] sm:$0xff] %vm940, %v905
        %971 = vst.msk [vmem:[%s215 + $0xf0] sm:$0xff] %vm940, %v906
        %972 = vst.msk [vmem:[%s215 + $0xf8] sm:$0xff] %vm940, %v907
        %973 = vst.msk [vmem:[%s215 + $0x100] sm:$0xff] %vm940, %v908
        %974 = vst.msk [vmem:[%s215 + $0x108] sm:$0xff] %vm940, %v909
        %975 = vst.msk [vmem:[%s215 + $0x110] sm:$0xff] %vm940, %v910
        %976 = vst.msk [vmem:[%s215 + $0x118] sm:$0xff] %vm940, %v911
        %977 = vst.msk [vmem:[%s215 + $0x120] sm:$0xff] %vm940, %v912
        %978 = vst.msk [vmem:[%s215 + $0x128] sm:$0xff] %vm940, %v913
        %979 = vst.msk [vmem:[%s215 + $0x130] sm:$0xff] %vm940, %v914
        %980 = vst.msk [vmem:[%s215 + $0x138] sm:$0xff] %vm940, %v915
        %981 = vst.msk [vmem:[%s215 + $0x140] sm:$0xff] %vm940, %v916
        %982 = vst.msk [vmem:[%s215 + $0x148] sm:$0xff] %vm940, %v917
        %983 = vst.msk [vmem:[%s215 + $0x150] sm:$0xff] %vm940, %v918
        %984 = vst.msk [vmem:[%s215 + $0x158] sm:$0xff] %vm940, %v919
        %985 = vst.msk [vmem:[%s215 + $0x160] sm:$0xff] %vm940, %v920
        %986 = vst.msk [vmem:[%s215 + $0x168] sm:$0xff] %vm940, %v921
        %987 = vst.msk [vmem:[%s215 + $0x170] sm:$0xff] %vm940, %v922
        %988 = vst.msk [vmem:[%s215 + $0x178] sm:$0xff] %vm940, %v923
        %989 = vst.msk [vmem:[%s215 + $0x180] sm:$0xff] %vm940, %v924
        %990 = vst.msk [vmem:[%s215 + $0x188] sm:$0xff] %vm940, %v925
        %991 = vst.msk [vmem:[%s215 + $0x190] sm:$0xff] %vm940, %v926
        %992 = vst.msk [vmem:[%s215 + $0x198] sm:$0xff] %vm940, %v927
        %993 = vst.msk [vmem:[%s215 + $0x1a0] sm:$0xff] %vm940, %v928
        %994 = vst.msk [vmem:[%s215 + $0x1a8] sm:$0xff] %vm940, %v929
        %995 = vst.msk [vmem:[%s215 + $0x1b0] sm:$0xff] %vm940, %v930
        %996 = vst.msk [vmem:[%s215 + $0x1b8] sm:$0xff] %vm940, %v931
        %997 = vst.msk [vmem:[%s215 + $0x1c0] sm:$0xff] %vm940, %v932
        %998 = vst.msk [vmem:[%s215 + $0x1c8] sm:$0xff] %vm940, %v933
        %999 = vst.msk [vmem:[%s215 + $0x1d0] sm:$0xff] %vm940, %v934
        %1000 = vst.msk [vmem:[%s215 + $0x1d8] sm:$0xff] %vm940, %v935
        %1001 = vst.msk [vmem:[%s215 + $0x1e0] sm:$0xff] %vm940, %v936
        %1002 = vst.msk [vmem:[%s215 + $0x1e8] sm:$0xff] %vm940, %v937
        %1003 = vst.msk [vmem:[%s215 + $0x1f0] sm:$0xff] %vm940, %v938
        %1004 = vst.msk [vmem:[%s215 + $0x1f8] sm:$0xff] %vm940, %v939
        %s1005 = sand.u32 %s97, 1
        %s1006 = scalar_lea.sflag [#allocation4], %s1005
        %s1007 = sand.u32 %s97, 1
        %s1008 = smul.addr %s1007, 512
        %s1009 = scalar_lea.vmem [#allocation8], %s1008
        // Predicated region
        $region45: #{dcgan_generator_forward.17} parent=31 // pred_check
          %p1010 = pneg %p107
        $region46: #{dcgan_generator_forward.17} parent=31 // pred_check_branch
          %1012 = sbr.rel (%p1010) target = $region48
        $region47: #{dcgan_generator_forward.17} parent=31 // pred_region
          %s1013 = smul.u32 64, %s21
          %s1015 = ssub.s32 8192, 8192
          %1016 = vsyncadd %s1006, %s1015
          %s1017 = smul.addr %s1013, 128
          %s1018 = scalar_lea.hbm %s3, %s1017
          %s1019 = sshll.u32 %s1009, 4
          %s1020 = int_to_ptr.vmem [resolvable:$true] %s1019
          %1025 = dma.vmem_to_hbm [thread:$0]  %s1020, 8192, %s1018, %s1006, 128, 128, 8
        $region48: #{dcgan_generator_forward.17} parent=31 // pred_fallthru
          _
      $region32: #{dcgan_generator_forward.17} parent=5 // pred_fallthru
        _
      %p1026 = scmp.le.s32.totalorder 2, %s16
      // Predicated region
      $region49: #{dcgan_generator_forward.17} parent=5 // pred_check
        %p1027 = pneg %p1026
      $region50: #{dcgan_generator_forward.17} parent=5 // pred_check_branch
        %1029 = sbr.rel (%p1027) target = $region52
      $region51: #{dcgan_generator_forward.17} parent=5 // pred_region
        %s1030 = ssub.s32 %s16, 2
        // Predicated region
        $region53: #{dcgan_generator_forward.17} parent=51 // pred_check
          %p1031 = pneg %p113
        $region54: #{dcgan_generator_forward.17} parent=51 // pred_check_branch
          %1033 = sbr.rel (%p1031) target = $region56
        $region55: #{dcgan_generator_forward.17} parent=51 // pred_region
          %s1034 = sand.u32 %s98, 1
          %s1035 = scalar_lea.sflag [#allocation4], %s1034
          %s1036 = sand.u32 %s98, 1
          %s1037 = smul.addr %s1036, 512
          %s1038 = scalar_lea.vmem [#allocation8], %s1037
          %1039 = dma.done %s1035, 8192
        $region56: #{dcgan_generator_forward.17} parent=51 // pred_fallthru
          _
      $region52: #{dcgan_generator_forward.17} parent=5 // pred_fallthru
        _
    $region6: #{dcgan_generator_forward.17} parent=1 // loop_footer
      %s20 = sadd.s32 1, %s16
    $region7: #{dcgan_generator_forward.17} parent=1 // loop_footer_branch
      %15 = sbr.rel target = $region3
    $region8: #{dcgan_generator_forward.17} parent=1 // loop_exit
      _
    %1040 = vsyncpa [#allocation3], 1
    %s1041 = scalar_lea.sflag [#allocation3], 1
    %1042 = vsyncpa %s1041, 1
    %1043 = vsyncpa [#allocation6], 1
    %1044 = vsyncpa [#allocation4], 1
    %s1045 = scalar_lea.sflag [#allocation4], 1
    %1046 = vsyncpa %s1045, 1

</llo_original>
